<compile_context>
chip_gen: v7x
topology: tpu7x:2x2x1
jax: 0.10.0
libtpu: 0.0.40
codegen_flags: <defaults>
</compile_context>

<pallas_src>
import functools

import jax
import jax.numpy as jnp
from jax.experimental import pallas as pl
from jax.experimental.pallas import tpu as pltpu

PAD_VAL = -2.0
LEAKY_SLOPE = 0.2


def _disc_kernel(xi_ref, valid_ref,
                 wih0_ref, gb0_ref, whh0_ref, bhn0_ref,
                 wih1_ref, gb1_ref, whh1_ref, bhn1_ref,
                 w1h_ref, w1x_ref, b1_ref, w2_ref, b2_ref,
                 out_ref, *, T, B):
    # xi_ref    : (T*B, Zcat) f32  time-major flattened noisy input (row t*B+b)
    # valid_ref : (T*B, 1)    f32  1.0 where t < T_in[b] else 0.0
    # wih*      : (in, 3H)  gate-stacked [r|z|n] input weights
    # gb*       : (1, 3H)   [b_ir+b_hr | b_iz+b_hz | b_in]
    # whh*      : (H, 3H)   gate-stacked hidden weights,  bhn*: (1, H) = b_hn
    # w1h/w1x   : (H, H)/(Zcat, H)  split first Linear, b1: (1, H)
    # w2        : (1, H), b2: (1, 1)
    # out_ref   : (T*B, 1) f32
    H = whh0_ref.shape[0]
    f32 = jnp.float32

    xi = xi_ref[...]                                            # (T*B, Zcat)

    # ---- Layer-0 input projection: ONE batched MXU matmul over T*B rows. ----
    gi0 = jnp.dot(xi, wih0_ref[...], preferred_element_type=f32) + gb0_ref[...]

    whh0 = whh0_ref[...]
    whh1 = whh1_ref[...]
    wih1 = wih1_ref[...]
    # Hoisted broadcasts (JAX does not CSE broadcast_in_dim inside the loop).
    bhn0 = jnp.broadcast_to(bhn0_ref[...], (B, H))
    bhn1 = jnp.broadcast_to(bhn1_ref[...], (B, H))
    gb1 = jnp.broadcast_to(gb1_ref[...], (B, 3 * H))

    def gate_update(gi_t, gh, bhn, h):
        # gi_t/gh: (B, 3H) gate-stacked; static lane slices extract r/z/n.
        r = jax.nn.sigmoid(gi_t[:, 0 * H:1 * H] + gh[:, 0 * H:1 * H])
        z = jax.nn.sigmoid(gi_t[:, 1 * H:2 * H] + gh[:, 1 * H:2 * H])
        n = jnp.tanh(gi_t[:, 2 * H:3 * H] + r * (gh[:, 2 * H:3 * H] + bhn))
        return (1.0 - z) * n + z * h

    # ---- Wavefront recurrence: layer-0 step t and layer-1 step t-1 are ------
    # ---- independent within one iteration (double ILP on the serial chain). -
    h0 = jnp.zeros((B, H), f32)
    h1 = jnp.zeros((B, H), f32)
    gi1_prev = None
    h1_rows = []
    # Static unroll: T is a small compile-time constant -> all slices static.
    for t in range(T):
        gh0 = jnp.dot(h0, whh0, preferred_element_type=f32)     # 1 MXU push
        h0_new = gate_update(gi0[t * B:(t + 1) * B, :], gh0, bhn0, h0)
        if t > 0:
            gh1 = jnp.dot(h1, whh1, preferred_element_type=f32)  # independent
            h1 = gate_update(gi1_prev, gh1, bhn1, h1)
            h1_rows.append(h1)
        # Layer-1 input projection for step t: off the h0 -> h0 dependent
        # chain, overlaps with the next iteration's layer-0 work.
        gi1_prev = jnp.dot(h0_new, wih1, preferred_element_type=f32) + gb1
        h0 = h0_new
    # Tail: layer-1 step T-1.
    gh1 = jnp.dot(h1, whh1, preferred_element_type=f32)
    h1 = gate_update(gi1_prev, gh1, bhn1, h1)
    h1_rows.append(h1)

    # Hidden sequence stays in vregs; one concatenate, no VMEM scratch.
    h1_seq = jnp.concatenate(h1_rows, axis=0)                   # (T*B, H)

    # ---- pad_packed masking + output MLP, fully batched over T*B rows. ------
    valid = valid_ref[...] > 0.5                                 # (T*B, 1)
    gru_out = jnp.where(valid, h1_seq, PAD_VAL)                  # (T*B, H)
    hid = (jnp.dot(gru_out, w1h_ref[...], preferred_element_type=f32)
           + jnp.dot(xi, w1x_ref[...], preferred_element_type=f32)
           + b1_ref[...])
    hid = jnp.where(hid >= 0.0, hid, LEAKY_SLOPE * hid)          # LeakyReLU(0.2)
    y = jnp.sum(hid * w2_ref[...], axis=-1, keepdims=True) + b2_ref[...]
    out_ref[...] = y                                             # single store


def init_params(key, F_dim, S_dim, nhidden=32):
    """Deterministic init matching PyTorch shapes (GRU layers=2 hardcoded)."""
    Zcat = F_dim + S_dim
    H = nhidden
    bound = 1.0 / jnp.sqrt(H)
    ks = jax.random.split(key, 12)

    def u(k, shape):
        return jax.random.uniform(k, shape, jnp.float32, -bound, bound)

    # PyTorch GRU: weight_ih_l0 (3H, Zcat), weight_hh_l0 (3H, H), biases (3H,)
    p = {
        "wih0_t": u(ks[0], (3 * H, Zcat)).T,   # -> (Zcat, 3H)
        "whh0_t": u(ks[1], (3 * H, H)).T,      # -> (H, 3H)
        "bih0": u(ks[2], (3 * H,))[None, :],   # -> (1, 3H)
        "bhh0": u(ks[3], (3 * H,))[None, :],
        "wih1_t": u(ks[4], (3 * H, H)).T,
        "whh1_t": u(ks[5], (3 * H, H)).T,
        "bih1": u(ks[6], (3 * H,))[None, :],
        "bhh1": u(ks[7], (3 * H,))[None, :],
        # out_linear: Linear(H+Zcat, H) then Linear(H, 1)
        "w1_t": u(ks[8], (H, H + Zcat)).T,     # -> (H+Zcat, H)
        "b1": u(ks[9], (H,))[None, :],         # -> (1, H)
        "w2_t": u(ks[10], (1, H)).T,           # -> (H, 1)
        "b2": u(ks[11], (1,))[None, :],        # -> (1, 1)
    }
    return p


def _split_params(p, H):
    """Wrapper-side (XLA) pre-processing: folded gate biases, split first
    Linear weight.  All free at runtime (done once, outside the kernel)."""
    def gate_bias(bih, bhh):       # fold b_ih + b_hh for r,z; b_ih only for n
        return jnp.concatenate(
            [bih[:, :H] + bhh[:, :H],
             bih[:, H:2 * H] + bhh[:, H:2 * H],
             bih[:, 2 * H:]], axis=-1)

    return dict(
        wih0=p["wih0_t"], gb0=gate_bias(p["bih0"], p["bhh0"]),
        whh0=p["whh0_t"], bhn0=p["bhh0"][:, 2 * H:],
        wih1=p["wih1_t"], gb1=gate_bias(p["bih1"], p["bhh1"]),
        whh1=p["whh1_t"], bhn1=p["bhh1"][:, 2 * H:],
        w1h=p["w1_t"][:H, :], w1x=p["w1_t"][H:, :], b1=p["b1"],
        w2=p["w2_t"].reshape(1, H), b2=p["b2"],
    )


def discriminator_forward(x, T_in, params, s=None, noise_key=None, nhidden=32):
    """x: (B, T, F_dim) batch-first; T_in: (B,) int lengths; s: (B,T,S_dim)|None.

    Note: like the PyTorch module (whose torch.cat([out, xi], -1) requires
    max(T_in) == T), this assumes the padded GRU output spans all T steps.
    """
    B, T, _ = x.shape
    noise = 0.02 * jax.random.normal(noise_key, x.shape, x.dtype)
    xi = x + noise
    if s is not None:
        xi = jnp.concatenate([xi, s], axis=-1)                   # (B, T, Zcat)
    Zcat = xi.shape[-1]
    H = nhidden

    # Time-major, flattened to (T*B, Zcat): row t*B + b  <->  xi[b, t].
    xi_tm = jnp.transpose(xi, (1, 0, 2)).astype(jnp.float32)     # (T, B, Zcat)
    xi2d = xi_tm.reshape(T * B, Zcat)
    valid = (jnp.arange(T)[:, None] < jnp.asarray(T_in)[None, :])  # (T, B)
    valid2d = valid.reshape(T * B, 1).astype(jnp.float32)

    sp = _split_params(params, H)
    vspec = pl.BlockSpec(memory_space=pltpu.MemorySpace.VMEM)

    out2d = pl.pallas_call(
        functools.partial(_disc_kernel, T=T, B=B),
        out_shape=jax.ShapeDtypeStruct((T * B, 1), jnp.float32),
        in_specs=[vspec] * 15,
        out_specs=vspec,
    )(xi2d, valid2d,
      sp["wih0"], sp["gb0"], sp["whh0"], sp["bhn0"],
      sp["wih1"], sp["gb1"], sp["whh1"], sp["bhn1"],
      sp["w1h"], sp["w1x"], sp["b1"], sp["w2"], sp["b2"])

    out = jnp.transpose(out2d.reshape(T, B, 1), (1, 0, 2))       # (B, T, 1)
    return out, xi


def reference_forward(xi, T_in, p):
    """Pure-JAX reference with identical semantics (for validation)."""
    B, T, _ = xi.shape
    H = p["whh0_t"].shape[0]

    def cell(x_t, h, wih, whh, bih, bhh):
        gi = x_t @ wih + bih
        gh = h @ whh + bhh
        r = jax.nn.sigmoid(gi[:, :H] + gh[:, :H])
        z = jax.nn.sigmoid(gi[:, H:2 * H] + gh[:, H:2 * H])
        n = jnp.tanh(gi[:, 2 * H:] + r * gh[:, 2 * H:])
        return (1.0 - z) * n + z * h

    h0 = jnp.zeros((B, H), jnp.float32)
    h1 = jnp.zeros((B, H), jnp.float32)
    outs = []
    for t in range(T):
        x_t = xi[:, t, :]
        h0 = cell(x_t, h0, p["wih0_t"], p["whh0_t"], p["bih0"], p["bhh0"])
        h1 = cell(h0, h1, p["wih1_t"], p["whh1_t"], p["bih1"], p["bhh1"])
        m = (t < T_in)[:, None]
        gru_out = jnp.where(m, h1, PAD_VAL)
        feat = jnp.concatenate([gru_out, x_t], -1)
        hid = feat @ p["w1_t"] + p["b1"]
        hid = jnp.where(hid >= 0.0, hid, LEAKY_SLOPE * hid)
        outs.append(hid @ p["w2_t"] + p["b2"])
    return jnp.stack(outs, axis=1)                               # (B, T, 1)


if __name__ == "__main__":
    key = jax.random.PRNGKey(0)
    k_param, k_x, k_s, k_noise = jax.random.split(key, 4)

    B, T = 2, 8
    F_dim, S_dim, nhidden = 4, 2, 32

    x = jax.random.normal(k_x, (B, T, F_dim), jnp.float32)
    s = jax.random.normal(k_s, (B, T, S_dim), jnp.float32)
    T_in = jnp.array([8, 5], jnp.int32)
    # PyTorch's forward would fail (cat dim mismatch) if max(T_in) != T; the
    # kernel assumes the same precondition.
    assert int(jnp.max(T_in)) == T

    params = init_params(k_param, F_dim, S_dim, nhidden)

    out, xi = discriminator_forward(x, T_in, params, s=s, noise_key=k_noise,
                                    nhidden=nhidden)
    out = jax.block_until_ready(out)

    ref = reference_forward(xi, T_in, params)
    assert out.shape == (B, T, 1)
    # All-f32 kernel with f32 MXU accumulation: tight tolerance.
    max_err = float(jnp.max(jnp.abs(out - ref)))
    assert jnp.allclose(out, ref, rtol=1e-4, atol=1e-4), (
        f"mismatch: max abs err {max_err}")

    print("KERNEL_OK")
</pallas_src>

<mosaic_0001>
module attributes {stable_mosaic.version = 11 : i64} {
  func.func @_disc_kernel(%arg0: memref<16x6xf32, #tpu.memory_space<vmem>>, %arg1: memref<16x1xf32, #tpu.memory_space<vmem>>, %arg2: memref<6x96xf32, #tpu.memory_space<vmem>>, %arg3: memref<1x96xf32, #tpu.memory_space<vmem>>, %arg4: memref<32x96xf32, #tpu.memory_space<vmem>>, %arg5: memref<1x32xf32, #tpu.memory_space<vmem>>, %arg6: memref<32x96xf32, #tpu.memory_space<vmem>>, %arg7: memref<1x96xf32, #tpu.memory_space<vmem>>, %arg8: memref<32x96xf32, #tpu.memory_space<vmem>>, %arg9: memref<1x32xf32, #tpu.memory_space<vmem>>, %arg10: memref<32x32xf32, #tpu.memory_space<vmem>>, %arg11: memref<6x32xf32, #tpu.memory_space<vmem>>, %arg12: memref<1x32xf32, #tpu.memory_space<vmem>>, %arg13: memref<1x32xf32, #tpu.memory_space<vmem>>, %arg14: memref<1x1xf32, #tpu.memory_space<vmem>>, %arg15: memref<16x1xf32, #tpu.memory_space<vmem>>) attributes {dimension_semantics = [], scalar_prefetch = 0 : i64, scratch_operands = 0 : i64, tpu.core_type = #tpu.core_type<tc>} {
    %c0 = arith.constant 0 : index
    %c0_0 = arith.constant 0 : index
    %0 = vector.load %arg0[%c0, %c0_0] : memref<16x6xf32, #tpu.memory_space<vmem>>, vector<16x6xf32>
    %c0_1 = arith.constant 0 : index
    %c0_2 = arith.constant 0 : index
    %1 = vector.load %arg2[%c0_1, %c0_2] : memref<6x96xf32, #tpu.memory_space<vmem>>, vector<6x96xf32>
    %cst = arith.constant dense<0.000000e+00> : vector<16x96xf32>
    %2 = tpu.matmul %0, %1, %cst {dimension_numbers = #tpu.dot_dimension_numbers<[1], [0], [0], [1], [0, 0, 1, 1], [], []>} : vector<16x6xf32>, vector<6x96xf32>, vector<16x96xf32> -> vector<16x96xf32>
    %c0_3 = arith.constant 0 : index
    %c0_4 = arith.constant 0 : index
    %3 = vector.load %arg3[%c0_3, %c0_4] : memref<1x96xf32, #tpu.memory_space<vmem>>, vector<1x96xf32>
    %4 = vector.broadcast %3 : vector<1x96xf32> to vector<16x96xf32>
    %5 = arith.addf %2, %4 : vector<16x96xf32>
    %c0_5 = arith.constant 0 : index
    %c0_6 = arith.constant 0 : index
    %6 = vector.load %arg4[%c0_5, %c0_6] : memref<32x96xf32, #tpu.memory_space<vmem>>, vector<32x96xf32>
    %c0_7 = arith.constant 0 : index
    %c0_8 = arith.constant 0 : index
    %7 = vector.load %arg8[%c0_7, %c0_8] : memref<32x96xf32, #tpu.memory_space<vmem>>, vector<32x96xf32>
    %c0_9 = arith.constant 0 : index
    %c0_10 = arith.constant 0 : index
    %8 = vector.load %arg6[%c0_9, %c0_10] : memref<32x96xf32, #tpu.memory_space<vmem>>, vector<32x96xf32>
    %c0_11 = arith.constant 0 : index
    %c0_12 = arith.constant 0 : index
    %9 = vector.load %arg5[%c0_11, %c0_12] : memref<1x32xf32, #tpu.memory_space<vmem>>, vector<1x32xf32>
    %10 = vector.shape_cast %9 : vector<1x32xf32> to vector<1x32xf32>
    %11 = vector.broadcast %10 : vector<1x32xf32> to vector<2x32xf32>
    %c0_13 = arith.constant 0 : index
    %c0_14 = arith.constant 0 : index
    %12 = vector.load %arg9[%c0_13, %c0_14] : memref<1x32xf32, #tpu.memory_space<vmem>>, vector<1x32xf32>
    %13 = vector.shape_cast %12 : vector<1x32xf32> to vector<1x32xf32>
    %14 = vector.broadcast %13 : vector<1x32xf32> to vector<2x32xf32>
    %c0_15 = arith.constant 0 : index
    %c0_16 = arith.constant 0 : index
    %15 = vector.load %arg7[%c0_15, %c0_16] : memref<1x96xf32, #tpu.memory_space<vmem>>, vector<1x96xf32>
    %16 = vector.shape_cast %15 : vector<1x96xf32> to vector<1x96xf32>
    %17 = vector.broadcast %16 : vector<1x96xf32> to vector<2x96xf32>
    %cst_17 = arith.constant 0.000000e+00 : f32
    %18 = vector.broadcast %cst_17 : f32 to vector<2x32xf32>
    %cst_18 = arith.constant 0.000000e+00 : f32
    %19 = vector.broadcast %cst_18 : f32 to vector<2x32xf32>
    %cst_19 = arith.constant dense<0.000000e+00> : vector<2x96xf32>
    %20 = tpu.matmul %18, %6, %cst_19 {dimension_numbers = #tpu.dot_dimension_numbers<[1], [0], [0], [1], [0, 0, 1, 1], [], []>} : vector<2x32xf32>, vector<32x96xf32>, vector<2x96xf32> -> vector<2x96xf32>
    %21 = vector.extract_strided_slice %5 {offsets = [0, 0], sizes = [2, 96], strides = [1, 1]} : vector<16x96xf32> to vector<2x96xf32>
    %22 = vector.extract_strided_slice %21 {offsets = [0, 0], sizes = [2, 32], strides = [1, 1]} : vector<2x96xf32> to vector<2x32xf32>
    %23 = vector.extract_strided_slice %20 {offsets = [0, 0], sizes = [2, 32], strides = [1, 1]} : vector<2x96xf32> to vector<2x32xf32>
    %24 = arith.addf %22, %23 : vector<2x32xf32>
    %25 = arith.negf %24 : vector<2x32xf32>
    %26 = math.exp %25 : vector<2x32xf32>
    %cst_20 = arith.constant 1.000000e+00 : f32
    %27 = vector.broadcast %cst_20 : f32 to vector<2x32xf32>
    %28 = arith.addf %27, %26 : vector<2x32xf32>
    %29 = arith.divf %27, %28 : vector<2x32xf32>
    %30 = vector.extract_strided_slice %21 {offsets = [0, 32], sizes = [2, 32], strides = [1, 1]} : vector<2x96xf32> to vector<2x32xf32>
    %31 = vector.extract_strided_slice %20 {offsets = [0, 32], sizes = [2, 32], strides = [1, 1]} : vector<2x96xf32> to vector<2x32xf32>
    %32 = arith.addf %30, %31 : vector<2x32xf32>
    %33 = arith.negf %32 : vector<2x32xf32>
    %34 = math.exp %33 : vector<2x32xf32>
    %cst_21 = arith.constant 1.000000e+00 : f32
    %35 = vector.broadcast %cst_21 : f32 to vector<2x32xf32>
    %36 = arith.addf %35, %34 : vector<2x32xf32>
    %37 = arith.divf %35, %36 : vector<2x32xf32>
    %38 = vector.extract_strided_slice %21 {offsets = [0, 64], sizes = [2, 32], strides = [1, 1]} : vector<2x96xf32> to vector<2x32xf32>
    %39 = vector.extract_strided_slice %20 {offsets = [0, 64], sizes = [2, 32], strides = [1, 1]} : vector<2x96xf32> to vector<2x32xf32>
    %40 = arith.addf %39, %11 : vector<2x32xf32>
    %41 = arith.mulf %29, %40 : vector<2x32xf32>
    %42 = arith.addf %38, %41 : vector<2x32xf32>
    %43 = math.tanh %42 : vector<2x32xf32>
    %cst_22 = arith.constant 1.000000e+00 : f32
    %44 = vector.broadcast %cst_22 : f32 to vector<2x32xf32>
    %45 = arith.subf %44, %37 : vector<2x32xf32>
    %46 = arith.mulf %45, %43 : vector<2x32xf32>
    %47 = arith.mulf %37, %18 : vector<2x32xf32>
    %48 = arith.addf %46, %47 : vector<2x32xf32>
    %cst_23 = arith.constant dense<0.000000e+00> : vector<2x96xf32>
    %49 = tpu.matmul %48, %8, %cst_23 {dimension_numbers = #tpu.dot_dimension_numbers<[1], [0], [0], [1], [0, 0, 1, 1], [], []>} : vector<2x32xf32>, vector<32x96xf32>, vector<2x96xf32> -> vector<2x96xf32>
    %50 = arith.addf %49, %17 : vector<2x96xf32>
    %cst_24 = arith.constant dense<0.000000e+00> : vector<2x96xf32>
    %51 = tpu.matmul %48, %6, %cst_24 {dimension_numbers = #tpu.dot_dimension_numbers<[1], [0], [0], [1], [0, 0, 1, 1], [], []>} : vector<2x32xf32>, vector<32x96xf32>, vector<2x96xf32> -> vector<2x96xf32>
    %52 = vector.extract_strided_slice %5 {offsets = [2, 0], sizes = [2, 96], strides = [1, 1]} : vector<16x96xf32> to vector<2x96xf32>
    %53 = vector.extract_strided_slice %52 {offsets = [0, 0], sizes = [2, 32], strides = [1, 1]} : vector<2x96xf32> to vector<2x32xf32>
    %54 = vector.extract_strided_slice %51 {offsets = [0, 0], sizes = [2, 32], strides = [1, 1]} : vector<2x96xf32> to vector<2x32xf32>
    %55 = arith.addf %53, %54 : vector<2x32xf32>
    %56 = arith.negf %55 : vector<2x32xf32>
    %57 = math.exp %56 : vector<2x32xf32>
    %cst_25 = arith.constant 1.000000e+00 : f32
    %58 = vector.broadcast %cst_25 : f32 to vector<2x32xf32>
    %59 = arith.addf %58, %57 : vector<2x32xf32>
    %60 = arith.divf %58, %59 : vector<2x32xf32>
    %61 = vector.extract_strided_slice %52 {offsets = [0, 32], sizes = [2, 32], strides = [1, 1]} : vector<2x96xf32> to vector<2x32xf32>
    %62 = vector.extract_strided_slice %51 {offsets = [0, 32], sizes = [2, 32], strides = [1, 1]} : vector<2x96xf32> to vector<2x32xf32>
    %63 = arith.addf %61, %62 : vector<2x32xf32>
    %64 = arith.negf %63 : vector<2x32xf32>
    %65 = math.exp %64 : vector<2x32xf32>
    %cst_26 = arith.constant 1.000000e+00 : f32
    %66 = vector.broadcast %cst_26 : f32 to vector<2x32xf32>
    %67 = arith.addf %66, %65 : vector<2x32xf32>
    %68 = arith.divf %66, %67 : vector<2x32xf32>
    %69 = vector.extract_strided_slice %52 {offsets = [0, 64], sizes = [2, 32], strides = [1, 1]} : vector<2x96xf32> to vector<2x32xf32>
    %70 = vector.extract_strided_slice %51 {offsets = [0, 64], sizes = [2, 32], strides = [1, 1]} : vector<2x96xf32> to vector<2x32xf32>
    %71 = arith.addf %70, %11 : vector<2x32xf32>
    %72 = arith.mulf %60, %71 : vector<2x32xf32>
    %73 = arith.addf %69, %72 : vector<2x32xf32>
    %74 = math.tanh %73 : vector<2x32xf32>
    %cst_27 = arith.constant 1.000000e+00 : f32
    %75 = vector.broadcast %cst_27 : f32 to vector<2x32xf32>
    %76 = arith.subf %75, %68 : vector<2x32xf32>
    %77 = arith.mulf %76, %74 : vector<2x32xf32>
    %78 = arith.mulf %68, %48 : vector<2x32xf32>
    %79 = arith.addf %77, %78 : vector<2x32xf32>
    %cst_28 = arith.constant dense<0.000000e+00> : vector<2x96xf32>
    %80 = tpu.matmul %19, %7, %cst_28 {dimension_numbers = #tpu.dot_dimension_numbers<[1], [0], [0], [1], [0, 0, 1, 1], [], []>} : vector<2x32xf32>, vector<32x96xf32>, vector<2x96xf32> -> vector<2x96xf32>
    %81 = vector.extract_strided_slice %50 {offsets = [0, 0], sizes = [2, 32], strides = [1, 1]} : vector<2x96xf32> to vector<2x32xf32>
    %82 = vector.extract_strided_slice %80 {offsets = [0, 0], sizes = [2, 32], strides = [1, 1]} : vector<2x96xf32> to vector<2x32xf32>
    %83 = arith.addf %81, %82 : vector<2x32xf32>
    %84 = arith.negf %83 : vector<2x32xf32>
    %85 = math.exp %84 : vector<2x32xf32>
    %cst_29 = arith.constant 1.000000e+00 : f32
    %86 = vector.broadcast %cst_29 : f32 to vector<2x32xf32>
    %87 = arith.addf %86, %85 : vector<2x32xf32>
    %88 = arith.divf %86, %87 : vector<2x32xf32>
    %89 = vector.extract_strided_slice %50 {offsets = [0, 32], sizes = [2, 32], strides = [1, 1]} : vector<2x96xf32> to vector<2x32xf32>
    %90 = vector.extract_strided_slice %80 {offsets = [0, 32], sizes = [2, 32], strides = [1, 1]} : vector<2x96xf32> to vector<2x32xf32>
    %91 = arith.addf %89, %90 : vector<2x32xf32>
    %92 = arith.negf %91 : vector<2x32xf32>
    %93 = math.exp %92 : vector<2x32xf32>
    %cst_30 = arith.constant 1.000000e+00 : f32
    %94 = vector.broadcast %cst_30 : f32 to vector<2x32xf32>
    %95 = arith.addf %94, %93 : vector<2x32xf32>
    %96 = arith.divf %94, %95 : vector<2x32xf32>
    %97 = vector.extract_strided_slice %50 {offsets = [0, 64], sizes = [2, 32], strides = [1, 1]} : vector<2x96xf32> to vector<2x32xf32>
    %98 = vector.extract_strided_slice %80 {offsets = [0, 64], sizes = [2, 32], strides = [1, 1]} : vector<2x96xf32> to vector<2x32xf32>
    %99 = arith.addf %98, %14 : vector<2x32xf32>
    %100 = arith.mulf %88, %99 : vector<2x32xf32>
    %101 = arith.addf %97, %100 : vector<2x32xf32>
    %102 = math.tanh %101 : vector<2x32xf32>
    %cst_31 = arith.constant 1.000000e+00 : f32
    %103 = vector.broadcast %cst_31 : f32 to vector<2x32xf32>
    %104 = arith.subf %103, %96 : vector<2x32xf32>
    %105 = arith.mulf %104, %102 : vector<2x32xf32>
    %106 = arith.mulf %96, %19 : vector<2x32xf32>
    %107 = arith.addf %105, %106 : vector<2x32xf32>
    %cst_32 = arith.constant dense<0.000000e+00> : vector<2x96xf32>
    %108 = tpu.matmul %79, %8, %cst_32 {dimension_numbers = #tpu.dot_dimension_numbers<[1], [0], [0], [1], [0, 0, 1, 1], [], []>} : vector<2x32xf32>, vector<32x96xf32>, vector<2x96xf32> -> vector<2x96xf32>
    %109 = arith.addf %108, %17 : vector<2x96xf32>
    %cst_33 = arith.constant dense<0.000000e+00> : vector<2x96xf32>
    %110 = tpu.matmul %79, %6, %cst_33 {dimension_numbers = #tpu.dot_dimension_numbers<[1], [0], [0], [1], [0, 0, 1, 1], [], []>} : vector<2x32xf32>, vector<32x96xf32>, vector<2x96xf32> -> vector<2x96xf32>
    %111 = vector.extract_strided_slice %5 {offsets = [4, 0], sizes = [2, 96], strides = [1, 1]} : vector<16x96xf32> to vector<2x96xf32>
    %112 = vector.extract_strided_slice %111 {offsets = [0, 0], sizes = [2, 32], strides = [1, 1]} : vector<2x96xf32> to vector<2x32xf32>
    %113 = vector.extract_strided_slice %110 {offsets = [0, 0], sizes = [2, 32], strides = [1, 1]} : vector<2x96xf32> to vector<2x32xf32>
    %114 = arith.addf %112, %113 : vector<2x32xf32>
    %115 = arith.negf %114 : vector<2x32xf32>
    %116 = math.exp %115 : vector<2x32xf32>
    %cst_34 = arith.constant 1.000000e+00 : f32
    %117 = vector.broadcast %cst_34 : f32 to vector<2x32xf32>
    %118 = arith.addf %117, %116 : vector<2x32xf32>
    %119 = arith.divf %117, %118 : vector<2x32xf32>
    %120 = vector.extract_strided_slice %111 {offsets = [0, 32], sizes = [2, 32], strides = [1, 1]} : vector<2x96xf32> to vector<2x32xf32>
    %121 = vector.extract_strided_slice %110 {offsets = [0, 32], sizes = [2, 32], strides = [1, 1]} : vector<2x96xf32> to vector<2x32xf32>
    %122 = arith.addf %120, %121 : vector<2x32xf32>
    %123 = arith.negf %122 : vector<2x32xf32>
    %124 = math.exp %123 : vector<2x32xf32>
    %cst_35 = arith.constant 1.000000e+00 : f32
    %125 = vector.broadcast %cst_35 : f32 to vector<2x32xf32>
    %126 = arith.addf %125, %124 : vector<2x32xf32>
    %127 = arith.divf %125, %126 : vector<2x32xf32>
    %128 = vector.extract_strided_slice %111 {offsets = [0, 64], sizes = [2, 32], strides = [1, 1]} : vector<2x96xf32> to vector<2x32xf32>
    %129 = vector.extract_strided_slice %110 {offsets = [0, 64], sizes = [2, 32], strides = [1, 1]} : vector<2x96xf32> to vector<2x32xf32>
    %130 = arith.addf %129, %11 : vector<2x32xf32>
    %131 = arith.mulf %119, %130 : vector<2x32xf32>
    %132 = arith.addf %128, %131 : vector<2x32xf32>
    %133 = math.tanh %132 : vector<2x32xf32>
    %cst_36 = arith.constant 1.000000e+00 : f32
    %134 = vector.broadcast %cst_36 : f32 to vector<2x32xf32>
    %135 = arith.subf %134, %127 : vector<2x32xf32>
    %136 = arith.mulf %135, %133 : vector<2x32xf32>
    %137 = arith.mulf %127, %79 : vector<2x32xf32>
    %138 = arith.addf %136, %137 : vector<2x32xf32>
    %cst_37 = arith.constant dense<0.000000e+00> : vector<2x96xf32>
    %139 = tpu.matmul %107, %7, %cst_37 {dimension_numbers = #tpu.dot_dimension_numbers<[1], [0], [0], [1], [0, 0, 1, 1], [], []>} : vector<2x32xf32>, vector<32x96xf32>, vector<2x96xf32> -> vector<2x96xf32>
    %140 = vector.extract_strided_slice %109 {offsets = [0, 0], sizes = [2, 32], strides = [1, 1]} : vector<2x96xf32> to vector<2x32xf32>
    %141 = vector.extract_strided_slice %139 {offsets = [0, 0], sizes = [2, 32], strides = [1, 1]} : vector<2x96xf32> to vector<2x32xf32>
    %142 = arith.addf %140, %141 : vector<2x32xf32>
    %143 = arith.negf %142 : vector<2x32xf32>
    %144 = math.exp %143 : vector<2x32xf32>
    %cst_38 = arith.constant 1.000000e+00 : f32
    %145 = vector.broadcast %cst_38 : f32 to vector<2x32xf32>
    %146 = arith.addf %145, %144 : vector<2x32xf32>
    %147 = arith.divf %145, %146 : vector<2x32xf32>
    %148 = vector.extract_strided_slice %109 {offsets = [0, 32], sizes = [2, 32], strides = [1, 1]} : vector<2x96xf32> to vector<2x32xf32>
    %149 = vector.extract_strided_slice %139 {offsets = [0, 32], sizes = [2, 32], strides = [1, 1]} : vector<2x96xf32> to vector<2x32xf32>
    %150 = arith.addf %148, %149 : vector<2x32xf32>
    %151 = arith.negf %150 : vector<2x32xf32>
    %152 = math.exp %151 : vector<2x32xf32>
    %cst_39 = arith.constant 1.000000e+00 : f32
    %153 = vector.broadcast %cst_39 : f32 to vector<2x32xf32>
    %154 = arith.addf %153, %152 : vector<2x32xf32>
    %155 = arith.divf %153, %154 : vector<2x32xf32>
    %156 = vector.extract_strided_slice %109 {offsets = [0, 64], sizes = [2, 32], strides = [1, 1]} : vector<2x96xf32> to vector<2x32xf32>
    %157 = vector.extract_strided_slice %139 {offsets = [0, 64], sizes = [2, 32], strides = [1, 1]} : vector<2x96xf32> to vector<2x32xf32>
    %158 = arith.addf %157, %14 : vector<2x32xf32>
    %159 = arith.mulf %147, %158 : vector<2x32xf32>
    %160 = arith.addf %156, %159 : vector<2x32xf32>
    %161 = math.tanh %160 : vector<2x32xf32>
    %cst_40 = arith.constant 1.000000e+00 : f32
    %162 = vector.broadcast %cst_40 : f32 to vector<2x32xf32>
    %163 = arith.subf %162, %155 : vector<2x32xf32>
    %164 = arith.mulf %163, %161 : vector<2x32xf32>
    %165 = arith.mulf %155, %107 : vector<2x32xf32>
    %166 = arith.addf %164, %165 : vector<2x32xf32>
    %cst_41 = arith.constant dense<0.000000e+00> : vector<2x96xf32>
    %167 = tpu.matmul %138, %8, %cst_41 {dimension_numbers = #tpu.dot_dimension_numbers<[1], [0], [0], [1], [0, 0, 1, 1], [], []>} : vector<2x32xf32>, vector<32x96xf32>, vector<2x96xf32> -> vector<2x96xf32>
    %168 = arith.addf %167, %17 : vector<2x96xf32>
    %cst_42 = arith.constant dense<0.000000e+00> : vector<2x96xf32>
    %169 = tpu.matmul %138, %6, %cst_42 {dimension_numbers = #tpu.dot_dimension_numbers<[1], [0], [0], [1], [0, 0, 1, 1], [], []>} : vector<2x32xf32>, vector<32x96xf32>, vector<2x96xf32> -> vector<2x96xf32>
    %170 = vector.extract_strided_slice %5 {offsets = [6, 0], sizes = [2, 96], strides = [1, 1]} : vector<16x96xf32> to vector<2x96xf32>
    %171 = vector.extract_strided_slice %170 {offsets = [0, 0], sizes = [2, 32], strides = [1, 1]} : vector<2x96xf32> to vector<2x32xf32>
    %172 = vector.extract_strided_slice %169 {offsets = [0, 0], sizes = [2, 32], strides = [1, 1]} : vector<2x96xf32> to vector<2x32xf32>
    %173 = arith.addf %171, %172 : vector<2x32xf32>
    %174 = arith.negf %173 : vector<2x32xf32>
    %175 = math.exp %174 : vector<2x32xf32>
    %cst_43 = arith.constant 1.000000e+00 : f32
    %176 = vector.broadcast %cst_43 : f32 to vector<2x32xf32>
    %177 = arith.addf %176, %175 : vector<2x32xf32>
    %178 = arith.divf %176, %177 : vector<2x32xf32>
    %179 = vector.extract_strided_slice %170 {offsets = [0, 32], sizes = [2, 32], strides = [1, 1]} : vector<2x96xf32> to vector<2x32xf32>
    %180 = vector.extract_strided_slice %169 {offsets = [0, 32], sizes = [2, 32], strides = [1, 1]} : vector<2x96xf32> to vector<2x32xf32>
    %181 = arith.addf %179, %180 : vector<2x32xf32>
    %182 = arith.negf %181 : vector<2x32xf32>
    %183 = math.exp %182 : vector<2x32xf32>
    %cst_44 = arith.constant 1.000000e+00 : f32
    %184 = vector.broadcast %cst_44 : f32 to vector<2x32xf32>
    %185 = arith.addf %184, %183 : vector<2x32xf32>
    %186 = arith.divf %184, %185 : vector<2x32xf32>
    %187 = vector.extract_strided_slice %170 {offsets = [0, 64], sizes = [2, 32], strides = [1, 1]} : vector<2x96xf32> to vector<2x32xf32>
    %188 = vector.extract_strided_slice %169 {offsets = [0, 64], sizes = [2, 32], strides = [1, 1]} : vector<2x96xf32> to vector<2x32xf32>
    %189 = arith.addf %188, %11 : vector<2x32xf32>
    %190 = arith.mulf %178, %189 : vector<2x32xf32>
    %191 = arith.addf %187, %190 : vector<2x32xf32>
    %192 = math.tanh %191 : vector<2x32xf32>
    %cst_45 = arith.constant 1.000000e+00 : f32
    %193 = vector.broadcast %cst_45 : f32 to vector<2x32xf32>
    %194 = arith.subf %193, %186 : vector<2x32xf32>
    %195 = arith.mulf %194, %192 : vector<2x32xf32>
    %196 = arith.mulf %186, %138 : vector<2x32xf32>
    %197 = arith.addf %195, %196 : vector<2x32xf32>
    %cst_46 = arith.constant dense<0.000000e+00> : vector<2x96xf32>
    %198 = tpu.matmul %166, %7, %cst_46 {dimension_numbers = #tpu.dot_dimension_numbers<[1], [0], [0], [1], [0, 0, 1, 1], [], []>} : vector<2x32xf32>, vector<32x96xf32>, vector<2x96xf32> -> vector<2x96xf32>
    %199 = vector.extract_strided_slice %168 {offsets = [0, 0], sizes = [2, 32], strides = [1, 1]} : vector<2x96xf32> to vector<2x32xf32>
    %200 = vector.extract_strided_slice %198 {offsets = [0, 0], sizes = [2, 32], strides = [1, 1]} : vector<2x96xf32> to vector<2x32xf32>
    %201 = arith.addf %199, %200 : vector<2x32xf32>
    %202 = arith.negf %201 : vector<2x32xf32>
    %203 = math.exp %202 : vector<2x32xf32>
    %cst_47 = arith.constant 1.000000e+00 : f32
    %204 = vector.broadcast %cst_47 : f32 to vector<2x32xf32>
    %205 = arith.addf %204, %203 : vector<2x32xf32>
    %206 = arith.divf %204, %205 : vector<2x32xf32>
    %207 = vector.extract_strided_slice %168 {offsets = [0, 32], sizes = [2, 32], strides = [1, 1]} : vector<2x96xf32> to vector<2x32xf32>
    %208 = vector.extract_strided_slice %198 {offsets = [0, 32], sizes = [2, 32], strides = [1, 1]} : vector<2x96xf32> to vector<2x32xf32>
    %209 = arith.addf %207, %208 : vector<2x32xf32>
    %210 = arith.negf %209 : vector<2x32xf32>
    %211 = math.exp %210 : vector<2x32xf32>
    %cst_48 = arith.constant 1.000000e+00 : f32
    %212 = vector.broadcast %cst_48 : f32 to vector<2x32xf32>
    %213 = arith.addf %212, %211 : vector<2x32xf32>
    %214 = arith.divf %212, %213 : vector<2x32xf32>
    %215 = vector.extract_strided_slice %168 {offsets = [0, 64], sizes = [2, 32], strides = [1, 1]} : vector<2x96xf32> to vector<2x32xf32>
    %216 = vector.extract_strided_slice %198 {offsets = [0, 64], sizes = [2, 32], strides = [1, 1]} : vector<2x96xf32> to vector<2x32xf32>
    %217 = arith.addf %216, %14 : vector<2x32xf32>
    %218 = arith.mulf %206, %217 : vector<2x32xf32>
    %219 = arith.addf %215, %218 : vector<2x32xf32>
    %220 = math.tanh %219 : vector<2x32xf32>
    %cst_49 = arith.constant 1.000000e+00 : f32
    %221 = vector.broadcast %cst_49 : f32 to vector<2x32xf32>
    %222 = arith.subf %221, %214 : vector<2x32xf32>
    %223 = arith.mulf %222, %220 : vector<2x32xf32>
    %224 = arith.mulf %214, %166 : vector<2x32xf32>
    %225 = arith.addf %223, %224 : vector<2x32xf32>
    %cst_50 = arith.constant dense<0.000000e+00> : vector<2x96xf32>
    %226 = tpu.matmul %197, %8, %cst_50 {dimension_numbers = #tpu.dot_dimension_numbers<[1], [0], [0], [1], [0, 0, 1, 1], [], []>} : vector<2x32xf32>, vector<32x96xf32>, vector<2x96xf32> -> vector<2x96xf32>
    %227 = arith.addf %226, %17 : vector<2x96xf32>
    %cst_51 = arith.constant dense<0.000000e+00> : vector<2x96xf32>
    %228 = tpu.matmul %197, %6, %cst_51 {dimension_numbers = #tpu.dot_dimension_numbers<[1], [0], [0], [1], [0, 0, 1, 1], [], []>} : vector<2x32xf32>, vector<32x96xf32>, vector<2x96xf32> -> vector<2x96xf32>
    %229 = vector.extract_strided_slice %5 {offsets = [8, 0], sizes = [2, 96], strides = [1, 1]} : vector<16x96xf32> to vector<2x96xf32>
    %230 = vector.extract_strided_slice %229 {offsets = [0, 0], sizes = [2, 32], strides = [1, 1]} : vector<2x96xf32> to vector<2x32xf32>
    %231 = vector.extract_strided_slice %228 {offsets = [0, 0], sizes = [2, 32], strides = [1, 1]} : vector<2x96xf32> to vector<2x32xf32>
    %232 = arith.addf %230, %231 : vector<2x32xf32>
    %233 = arith.negf %232 : vector<2x32xf32>
    %234 = math.exp %233 : vector<2x32xf32>
    %cst_52 = arith.constant 1.000000e+00 : f32
    %235 = vector.broadcast %cst_52 : f32 to vector<2x32xf32>
    %236 = arith.addf %235, %234 : vector<2x32xf32>
    %237 = arith.divf %235, %236 : vector<2x32xf32>
    %238 = vector.extract_strided_slice %229 {offsets = [0, 32], sizes = [2, 32], strides = [1, 1]} : vector<2x96xf32> to vector<2x32xf32>
    %239 = vector.extract_strided_slice %228 {offsets = [0, 32], sizes = [2, 32], strides = [1, 1]} : vector<2x96xf32> to vector<2x32xf32>
    %240 = arith.addf %238, %239 : vector<2x32xf32>
    %241 = arith.negf %240 : vector<2x32xf32>
    %242 = math.exp %241 : vector<2x32xf32>
    %cst_53 = arith.constant 1.000000e+00 : f32
    %243 = vector.broadcast %cst_53 : f32 to vector<2x32xf32>
    %244 = arith.addf %243, %242 : vector<2x32xf32>
    %245 = arith.divf %243, %244 : vector<2x32xf32>
    %246 = vector.extract_strided_slice %229 {offsets = [0, 64], sizes = [2, 32], strides = [1, 1]} : vector<2x96xf32> to vector<2x32xf32>
    %247 = vector.extract_strided_slice %228 {offsets = [0, 64], sizes = [2, 32], strides = [1, 1]} : vector<2x96xf32> to vector<2x32xf32>
    %248 = arith.addf %247, %11 : vector<2x32xf32>
    %249 = arith.mulf %237, %248 : vector<2x32xf32>
    %250 = arith.addf %246, %249 : vector<2x32xf32>
    %251 = math.tanh %250 : vector<2x32xf32>
    %cst_54 = arith.constant 1.000000e+00 : f32
    %252 = vector.broadcast %cst_54 : f32 to vector<2x32xf32>
    %253 = arith.subf %252, %245 : vector<2x32xf32>
    %254 = arith.mulf %253, %251 : vector<2x32xf32>
    %255 = arith.mulf %245, %197 : vector<2x32xf32>
    %256 = arith.addf %254, %255 : vector<2x32xf32>
    %cst_55 = arith.constant dense<0.000000e+00> : vector<2x96xf32>
    %257 = tpu.matmul %225, %7, %cst_55 {dimension_numbers = #tpu.dot_dimension_numbers<[1], [0], [0], [1], [0, 0, 1, 1], [], []>} : vector<2x32xf32>, vector<32x96xf32>, vector<2x96xf32> -> vector<2x96xf32>
    %258 = vector.extract_strided_slice %227 {offsets = [0, 0], sizes = [2, 32], strides = [1, 1]} : vector<2x96xf32> to vector<2x32xf32>
    %259 = vector.extract_strided_slice %257 {offsets = [0, 0], sizes = [2, 32], strides = [1, 1]} : vector<2x96xf32> to vector<2x32xf32>
    %260 = arith.addf %258, %259 : vector<2x32xf32>
    %261 = arith.negf %260 : vector<2x32xf32>
    %262 = math.exp %261 : vector<2x32xf32>
    %cst_56 = arith.constant 1.000000e+00 : f32
    %263 = vector.broadcast %cst_56 : f32 to vector<2x32xf32>
    %264 = arith.addf %263, %262 : vector<2x32xf32>
    %265 = arith.divf %263, %264 : vector<2x32xf32>
    %266 = vector.extract_strided_slice %227 {offsets = [0, 32], sizes = [2, 32], strides = [1, 1]} : vector<2x96xf32> to vector<2x32xf32>
    %267 = vector.extract_strided_slice %257 {offsets = [0, 32], sizes = [2, 32], strides = [1, 1]} : vector<2x96xf32> to vector<2x32xf32>
    %268 = arith.addf %266, %267 : vector<2x32xf32>
    %269 = arith.negf %268 : vector<2x32xf32>
    %270 = math.exp %269 : vector<2x32xf32>
    %cst_57 = arith.constant 1.000000e+00 : f32
    %271 = vector.broadcast %cst_57 : f32 to vector<2x32xf32>
    %272 = arith.addf %271, %270 : vector<2x32xf32>
    %273 = arith.divf %271, %272 : vector<2x32xf32>
    %274 = vector.extract_strided_slice %227 {offsets = [0, 64], sizes = [2, 32], strides = [1, 1]} : vector<2x96xf32> to vector<2x32xf32>
    %275 = vector.extract_strided_slice %257 {offsets = [0, 64], sizes = [2, 32], strides = [1, 1]} : vector<2x96xf32> to vector<2x32xf32>
    %276 = arith.addf %275, %14 : vector<2x32xf32>
    %277 = arith.mulf %265, %276 : vector<2x32xf32>
    %278 = arith.addf %274, %277 : vector<2x32xf32>
    %279 = math.tanh %278 : vector<2x32xf32>
    %cst_58 = arith.constant 1.000000e+00 : f32
    %280 = vector.broadcast %cst_58 : f32 to vector<2x32xf32>
    %281 = arith.subf %280, %273 : vector<2x32xf32>
    %282 = arith.mulf %281, %279 : vector<2x32xf32>
    %283 = arith.mulf %273, %225 : vector<2x32xf32>
    %284 = arith.addf %282, %283 : vector<2x32xf32>
    %cst_59 = arith.constant dense<0.000000e+00> : vector<2x96xf32>
    %285 = tpu.matmul %256, %8, %cst_59 {dimension_numbers = #tpu.dot_dimension_numbers<[1], [0], [0], [1], [0, 0, 1, 1], [], []>} : vector<2x32xf32>, vector<32x96xf32>, vector<2x96xf32> -> vector<2x96xf32>
    %286 = arith.addf %285, %17 : vector<2x96xf32>
    %cst_60 = arith.constant dense<0.000000e+00> : vector<2x96xf32>
    %287 = tpu.matmul %256, %6, %cst_60 {dimension_numbers = #tpu.dot_dimension_numbers<[1], [0], [0], [1], [0, 0, 1, 1], [], []>} : vector<2x32xf32>, vector<32x96xf32>, vector<2x96xf32> -> vector<2x96xf32>
    %288 = vector.extract_strided_slice %5 {offsets = [10, 0], sizes = [2, 96], strides = [1, 1]} : vector<16x96xf32> to vector<2x96xf32>
    %289 = vector.extract_strided_slice %288 {offsets = [0, 0], sizes = [2, 32], strides = [1, 1]} : vector<2x96xf32> to vector<2x32xf32>
    %290 = vector.extract_strided_slice %287 {offsets = [0, 0], sizes = [2, 32], strides = [1, 1]} : vector<2x96xf32> to vector<2x32xf32>
    %291 = arith.addf %289, %290 : vector<2x32xf32>
    %292 = arith.negf %291 : vector<2x32xf32>
    %293 = math.exp %292 : vector<2x32xf32>
    %cst_61 = arith.constant 1.000000e+00 : f32
    %294 = vector.broadcast %cst_61 : f32 to vector<2x32xf32>
    %295 = arith.addf %294, %293 : vector<2x32xf32>
    %296 = arith.divf %294, %295 : vector<2x32xf32>
    %297 = vector.extract_strided_slice %288 {offsets = [0, 32], sizes = [2, 32], strides = [1, 1]} : vector<2x96xf32> to vector<2x32xf32>
    %298 = vector.extract_strided_slice %287 {offsets = [0, 32], sizes = [2, 32], strides = [1, 1]} : vector<2x96xf32> to vector<2x32xf32>
    %299 = arith.addf %297, %298 : vector<2x32xf32>
    %300 = arith.negf %299 : vector<2x32xf32>
    %301 = math.exp %300 : vector<2x32xf32>
    %cst_62 = arith.constant 1.000000e+00 : f32
    %302 = vector.broadcast %cst_62 : f32 to vector<2x32xf32>
    %303 = arith.addf %302, %301 : vector<2x32xf32>
    %304 = arith.divf %302, %303 : vector<2x32xf32>
    %305 = vector.extract_strided_slice %288 {offsets = [0, 64], sizes = [2, 32], strides = [1, 1]} : vector<2x96xf32> to vector<2x32xf32>
    %306 = vector.extract_strided_slice %287 {offsets = [0, 64], sizes = [2, 32], strides = [1, 1]} : vector<2x96xf32> to vector<2x32xf32>
    %307 = arith.addf %306, %11 : vector<2x32xf32>
    %308 = arith.mulf %296, %307 : vector<2x32xf32>
    %309 = arith.addf %305, %308 : vector<2x32xf32>
    %310 = math.tanh %309 : vector<2x32xf32>
    %cst_63 = arith.constant 1.000000e+00 : f32
    %311 = vector.broadcast %cst_63 : f32 to vector<2x32xf32>
    %312 = arith.subf %311, %304 : vector<2x32xf32>
    %313 = arith.mulf %312, %310 : vector<2x32xf32>
    %314 = arith.mulf %304, %256 : vector<2x32xf32>
    %315 = arith.addf %313, %314 : vector<2x32xf32>
    %cst_64 = arith.constant dense<0.000000e+00> : vector<2x96xf32>
    %316 = tpu.matmul %284, %7, %cst_64 {dimension_numbers = #tpu.dot_dimension_numbers<[1], [0], [0], [1], [0, 0, 1, 1], [], []>} : vector<2x32xf32>, vector<32x96xf32>, vector<2x96xf32> -> vector<2x96xf32>
    %317 = vector.extract_strided_slice %286 {offsets = [0, 0], sizes = [2, 32], strides = [1, 1]} : vector<2x96xf32> to vector<2x32xf32>
    %318 = vector.extract_strided_slice %316 {offsets = [0, 0], sizes = [2, 32], strides = [1, 1]} : vector<2x96xf32> to vector<2x32xf32>
    %319 = arith.addf %317, %318 : vector<2x32xf32>
    %320 = arith.negf %319 : vector<2x32xf32>
    %321 = math.exp %320 : vector<2x32xf32>
    %cst_65 = arith.constant 1.000000e+00 : f32
    %322 = vector.broadcast %cst_65 : f32 to vector<2x32xf32>
    %323 = arith.addf %322, %321 : vector<2x32xf32>
    %324 = arith.divf %322, %323 : vector<2x32xf32>
    %325 = vector.extract_strided_slice %286 {offsets = [0, 32], sizes = [2, 32], strides = [1, 1]} : vector<2x96xf32> to vector<2x32xf32>
    %326 = vector.extract_strided_slice %316 {offsets = [0, 32], sizes = [2, 32], strides = [1, 1]} : vector<2x96xf32> to vector<2x32xf32>
    %327 = arith.addf %325, %326 : vector<2x32xf32>
    %328 = arith.negf %327 : vector<2x32xf32>
    %329 = math.exp %328 : vector<2x32xf32>
    %cst_66 = arith.constant 1.000000e+00 : f32
    %330 = vector.broadcast %cst_66 : f32 to vector<2x32xf32>
    %331 = arith.addf %330, %329 : vector<2x32xf32>
    %332 = arith.divf %330, %331 : vector<2x32xf32>
    %333 = vector.extract_strided_slice %286 {offsets = [0, 64], sizes = [2, 32], strides = [1, 1]} : vector<2x96xf32> to vector<2x32xf32>
    %334 = vector.extract_strided_slice %316 {offsets = [0, 64], sizes = [2, 32], strides = [1, 1]} : vector<2x96xf32> to vector<2x32xf32>
    %335 = arith.addf %334, %14 : vector<2x32xf32>
    %336 = arith.mulf %324, %335 : vector<2x32xf32>
    %337 = arith.addf %333, %336 : vector<2x32xf32>
    %338 = math.tanh %337 : vector<2x32xf32>
    %cst_67 = arith.constant 1.000000e+00 : f32
    %339 = vector.broadcast %cst_67 : f32 to vector<2x32xf32>
    %340 = arith.subf %339, %332 : vector<2x32xf32>
    %341 = arith.mulf %340, %338 : vector<2x32xf32>
    %342 = arith.mulf %332, %284 : vector<2x32xf32>
    %343 = arith.addf %341, %342 : vector<2x32xf32>
    %cst_68 = arith.constant dense<0.000000e+00> : vector<2x96xf32>
    %344 = tpu.matmul %315, %8, %cst_68 {dimension_numbers = #tpu.dot_dimension_numbers<[1], [0], [0], [1], [0, 0, 1, 1], [], []>} : vector<2x32xf32>, vector<32x96xf32>, vector<2x96xf32> -> vector<2x96xf32>
    %345 = arith.addf %344, %17 : vector<2x96xf32>
    %cst_69 = arith.constant dense<0.000000e+00> : vector<2x96xf32>
    %346 = tpu.matmul %315, %6, %cst_69 {dimension_numbers = #tpu.dot_dimension_numbers<[1], [0], [0], [1], [0, 0, 1, 1], [], []>} : vector<2x32xf32>, vector<32x96xf32>, vector<2x96xf32> -> vector<2x96xf32>
    %347 = vector.extract_strided_slice %5 {offsets = [12, 0], sizes = [2, 96], strides = [1, 1]} : vector<16x96xf32> to vector<2x96xf32>
    %348 = vector.extract_strided_slice %347 {offsets = [0, 0], sizes = [2, 32], strides = [1, 1]} : vector<2x96xf32> to vector<2x32xf32>
    %349 = vector.extract_strided_slice %346 {offsets = [0, 0], sizes = [2, 32], strides = [1, 1]} : vector<2x96xf32> to vector<2x32xf32>
    %350 = arith.addf %348, %349 : vector<2x32xf32>
    %351 = arith.negf %350 : vector<2x32xf32>
    %352 = math.exp %351 : vector<2x32xf32>
    %cst_70 = arith.constant 1.000000e+00 : f32
    %353 = vector.broadcast %cst_70 : f32 to vector<2x32xf32>
    %354 = arith.addf %353, %352 : vector<2x32xf32>
    %355 = arith.divf %353, %354 : vector<2x32xf32>
    %356 = vector.extract_strided_slice %347 {offsets = [0, 32], sizes = [2, 32], strides = [1, 1]} : vector<2x96xf32> to vector<2x32xf32>
    %357 = vector.extract_strided_slice %346 {offsets = [0, 32], sizes = [2, 32], strides = [1, 1]} : vector<2x96xf32> to vector<2x32xf32>
    %358 = arith.addf %356, %357 : vector<2x32xf32>
    %359 = arith.negf %358 : vector<2x32xf32>
    %360 = math.exp %359 : vector<2x32xf32>
    %cst_71 = arith.constant 1.000000e+00 : f32
    %361 = vector.broadcast %cst_71 : f32 to vector<2x32xf32>
    %362 = arith.addf %361, %360 : vector<2x32xf32>
    %363 = arith.divf %361, %362 : vector<2x32xf32>
    %364 = vector.extract_strided_slice %347 {offsets = [0, 64], sizes = [2, 32], strides = [1, 1]} : vector<2x96xf32> to vector<2x32xf32>
    %365 = vector.extract_strided_slice %346 {offsets = [0, 64], sizes = [2, 32], strides = [1, 1]} : vector<2x96xf32> to vector<2x32xf32>
    %366 = arith.addf %365, %11 : vector<2x32xf32>
    %367 = arith.mulf %355, %366 : vector<2x32xf32>
    %368 = arith.addf %364, %367 : vector<2x32xf32>
    %369 = math.tanh %368 : vector<2x32xf32>
    %cst_72 = arith.constant 1.000000e+00 : f32
    %370 = vector.broadcast %cst_72 : f32 to vector<2x32xf32>
    %371 = arith.subf %370, %363 : vector<2x32xf32>
    %372 = arith.mulf %371, %369 : vector<2x32xf32>
    %373 = arith.mulf %363, %315 : vector<2x32xf32>
    %374 = arith.addf %372, %373 : vector<2x32xf32>
    %cst_73 = arith.constant dense<0.000000e+00> : vector<2x96xf32>
    %375 = tpu.matmul %343, %7, %cst_73 {dimension_numbers = #tpu.dot_dimension_numbers<[1], [0], [0], [1], [0, 0, 1, 1], [], []>} : vector<2x32xf32>, vector<32x96xf32>, vector<2x96xf32> -> vector<2x96xf32>
    %376 = vector.extract_strided_slice %345 {offsets = [0, 0], sizes = [2, 32], strides = [1, 1]} : vector<2x96xf32> to vector<2x32xf32>
    %377 = vector.extract_strided_slice %375 {offsets = [0, 0], sizes = [2, 32], strides = [1, 1]} : vector<2x96xf32> to vector<2x32xf32>
    %378 = arith.addf %376, %377 : vector<2x32xf32>
    %379 = arith.negf %378 : vector<2x32xf32>
    %380 = math.exp %379 : vector<2x32xf32>
    %cst_74 = arith.constant 1.000000e+00 : f32
    %381 = vector.broadcast %cst_74 : f32 to vector<2x32xf32>
    %382 = arith.addf %381, %380 : vector<2x32xf32>
    %383 = arith.divf %381, %382 : vector<2x32xf32>
    %384 = vector.extract_strided_slice %345 {offsets = [0, 32], sizes = [2, 32], strides = [1, 1]} : vector<2x96xf32> to vector<2x32xf32>
    %385 = vector.extract_strided_slice %375 {offsets = [0, 32], sizes = [2, 32], strides = [1, 1]} : vector<2x96xf32> to vector<2x32xf32>
    %386 = arith.addf %384, %385 : vector<2x32xf32>
    %387 = arith.negf %386 : vector<2x32xf32>
    %388 = math.exp %387 : vector<2x32xf32>
    %cst_75 = arith.constant 1.000000e+00 : f32
    %389 = vector.broadcast %cst_75 : f32 to vector<2x32xf32>
    %390 = arith.addf %389, %388 : vector<2x32xf32>
    %391 = arith.divf %389, %390 : vector<2x32xf32>
    %392 = vector.extract_strided_slice %345 {offsets = [0, 64], sizes = [2, 32], strides = [1, 1]} : vector<2x96xf32> to vector<2x32xf32>
    %393 = vector.extract_strided_slice %375 {offsets = [0, 64], sizes = [2, 32], strides = [1, 1]} : vector<2x96xf32> to vector<2x32xf32>
    %394 = arith.addf %393, %14 : vector<2x32xf32>
    %395 = arith.mulf %383, %394 : vector<2x32xf32>
    %396 = arith.addf %392, %395 : vector<2x32xf32>
    %397 = math.tanh %396 : vector<2x32xf32>
    %cst_76 = arith.constant 1.000000e+00 : f32
    %398 = vector.broadcast %cst_76 : f32 to vector<2x32xf32>
    %399 = arith.subf %398, %391 : vector<2x32xf32>
    %400 = arith.mulf %399, %397 : vector<2x32xf32>
    %401 = arith.mulf %391, %343 : vector<2x32xf32>
    %402 = arith.addf %400, %401 : vector<2x32xf32>
    %cst_77 = arith.constant dense<0.000000e+00> : vector<2x96xf32>
    %403 = tpu.matmul %374, %8, %cst_77 {dimension_numbers = #tpu.dot_dimension_numbers<[1], [0], [0], [1], [0, 0, 1, 1], [], []>} : vector<2x32xf32>, vector<32x96xf32>, vector<2x96xf32> -> vector<2x96xf32>
    %404 = arith.addf %403, %17 : vector<2x96xf32>
    %cst_78 = arith.constant dense<0.000000e+00> : vector<2x96xf32>
    %405 = tpu.matmul %374, %6, %cst_78 {dimension_numbers = #tpu.dot_dimension_numbers<[1], [0], [0], [1], [0, 0, 1, 1], [], []>} : vector<2x32xf32>, vector<32x96xf32>, vector<2x96xf32> -> vector<2x96xf32>
    %406 = vector.extract_strided_slice %5 {offsets = [14, 0], sizes = [2, 96], strides = [1, 1]} : vector<16x96xf32> to vector<2x96xf32>
    %407 = vector.extract_strided_slice %406 {offsets = [0, 0], sizes = [2, 32], strides = [1, 1]} : vector<2x96xf32> to vector<2x32xf32>
    %408 = vector.extract_strided_slice %405 {offsets = [0, 0], sizes = [2, 32], strides = [1, 1]} : vector<2x96xf32> to vector<2x32xf32>
    %409 = arith.addf %407, %408 : vector<2x32xf32>
    %410 = arith.negf %409 : vector<2x32xf32>
    %411 = math.exp %410 : vector<2x32xf32>
    %cst_79 = arith.constant 1.000000e+00 : f32
    %412 = vector.broadcast %cst_79 : f32 to vector<2x32xf32>
    %413 = arith.addf %412, %411 : vector<2x32xf32>
    %414 = arith.divf %412, %413 : vector<2x32xf32>
    %415 = vector.extract_strided_slice %406 {offsets = [0, 32], sizes = [2, 32], strides = [1, 1]} : vector<2x96xf32> to vector<2x32xf32>
    %416 = vector.extract_strided_slice %405 {offsets = [0, 32], sizes = [2, 32], strides = [1, 1]} : vector<2x96xf32> to vector<2x32xf32>
    %417 = arith.addf %415, %416 : vector<2x32xf32>
    %418 = arith.negf %417 : vector<2x32xf32>
    %419 = math.exp %418 : vector<2x32xf32>
    %cst_80 = arith.constant 1.000000e+00 : f32
    %420 = vector.broadcast %cst_80 : f32 to vector<2x32xf32>
    %421 = arith.addf %420, %419 : vector<2x32xf32>
    %422 = arith.divf %420, %421 : vector<2x32xf32>
    %423 = vector.extract_strided_slice %406 {offsets = [0, 64], sizes = [2, 32], strides = [1, 1]} : vector<2x96xf32> to vector<2x32xf32>
    %424 = vector.extract_strided_slice %405 {offsets = [0, 64], sizes = [2, 32], strides = [1, 1]} : vector<2x96xf32> to vector<2x32xf32>
    %425 = arith.addf %424, %11 : vector<2x32xf32>
    %426 = arith.mulf %414, %425 : vector<2x32xf32>
    %427 = arith.addf %423, %426 : vector<2x32xf32>
    %428 = math.tanh %427 : vector<2x32xf32>
    %cst_81 = arith.constant 1.000000e+00 : f32
    %429 = vector.broadcast %cst_81 : f32 to vector<2x32xf32>
    %430 = arith.subf %429, %422 : vector<2x32xf32>
    %431 = arith.mulf %430, %428 : vector<2x32xf32>
    %432 = arith.mulf %422, %374 : vector<2x32xf32>
    %433 = arith.addf %431, %432 : vector<2x32xf32>
    %cst_82 = arith.constant dense<0.000000e+00> : vector<2x96xf32>
    %434 = tpu.matmul %402, %7, %cst_82 {dimension_numbers = #tpu.dot_dimension_numbers<[1], [0], [0], [1], [0, 0, 1, 1], [], []>} : vector<2x32xf32>, vector<32x96xf32>, vector<2x96xf32> -> vector<2x96xf32>
    %435 = vector.extract_strided_slice %404 {offsets = [0, 0], sizes = [2, 32], strides = [1, 1]} : vector<2x96xf32> to vector<2x32xf32>
    %436 = vector.extract_strided_slice %434 {offsets = [0, 0], sizes = [2, 32], strides = [1, 1]} : vector<2x96xf32> to vector<2x32xf32>
    %437 = arith.addf %435, %436 : vector<2x32xf32>
    %438 = arith.negf %437 : vector<2x32xf32>
    %439 = math.exp %438 : vector<2x32xf32>
    %cst_83 = arith.constant 1.000000e+00 : f32
    %440 = vector.broadcast %cst_83 : f32 to vector<2x32xf32>
    %441 = arith.addf %440, %439 : vector<2x32xf32>
    %442 = arith.divf %440, %441 : vector<2x32xf32>
    %443 = vector.extract_strided_slice %404 {offsets = [0, 32], sizes = [2, 32], strides = [1, 1]} : vector<2x96xf32> to vector<2x32xf32>
    %444 = vector.extract_strided_slice %434 {offsets = [0, 32], sizes = [2, 32], strides = [1, 1]} : vector<2x96xf32> to vector<2x32xf32>
    %445 = arith.addf %443, %444 : vector<2x32xf32>
    %446 = arith.negf %445 : vector<2x32xf32>
    %447 = math.exp %446 : vector<2x32xf32>
    %cst_84 = arith.constant 1.000000e+00 : f32
    %448 = vector.broadcast %cst_84 : f32 to vector<2x32xf32>
    %449 = arith.addf %448, %447 : vector<2x32xf32>
    %450 = arith.divf %448, %449 : vector<2x32xf32>
    %451 = vector.extract_strided_slice %404 {offsets = [0, 64], sizes = [2, 32], strides = [1, 1]} : vector<2x96xf32> to vector<2x32xf32>
    %452 = vector.extract_strided_slice %434 {offsets = [0, 64], sizes = [2, 32], strides = [1, 1]} : vector<2x96xf32> to vector<2x32xf32>
    %453 = arith.addf %452, %14 : vector<2x32xf32>
    %454 = arith.mulf %442, %453 : vector<2x32xf32>
    %455 = arith.addf %451, %454 : vector<2x32xf32>
    %456 = math.tanh %455 : vector<2x32xf32>
    %cst_85 = arith.constant 1.000000e+00 : f32
    %457 = vector.broadcast %cst_85 : f32 to vector<2x32xf32>
    %458 = arith.subf %457, %450 : vector<2x32xf32>
    %459 = arith.mulf %458, %456 : vector<2x32xf32>
    %460 = arith.mulf %450, %402 : vector<2x32xf32>
    %461 = arith.addf %459, %460 : vector<2x32xf32>
    %cst_86 = arith.constant dense<0.000000e+00> : vector<2x96xf32>
    %462 = tpu.matmul %433, %8, %cst_86 {dimension_numbers = #tpu.dot_dimension_numbers<[1], [0], [0], [1], [0, 0, 1, 1], [], []>} : vector<2x32xf32>, vector<32x96xf32>, vector<2x96xf32> -> vector<2x96xf32>
    %463 = arith.addf %462, %17 : vector<2x96xf32>
    %cst_87 = arith.constant dense<0.000000e+00> : vector<2x96xf32>
    %464 = tpu.matmul %461, %7, %cst_87 {dimension_numbers = #tpu.dot_dimension_numbers<[1], [0], [0], [1], [0, 0, 1, 1], [], []>} : vector<2x32xf32>, vector<32x96xf32>, vector<2x96xf32> -> vector<2x96xf32>
    %465 = vector.extract_strided_slice %463 {offsets = [0, 0], sizes = [2, 32], strides = [1, 1]} : vector<2x96xf32> to vector<2x32xf32>
    %466 = vector.extract_strided_slice %464 {offsets = [0, 0], sizes = [2, 32], strides = [1, 1]} : vector<2x96xf32> to vector<2x32xf32>
    %467 = arith.addf %465, %466 : vector<2x32xf32>
    %468 = arith.negf %467 : vector<2x32xf32>
    %469 = math.exp %468 : vector<2x32xf32>
    %cst_88 = arith.constant 1.000000e+00 : f32
    %470 = vector.broadcast %cst_88 : f32 to vector<2x32xf32>
    %471 = arith.addf %470, %469 : vector<2x32xf32>
    %472 = arith.divf %470, %471 : vector<2x32xf32>
    %473 = vector.extract_strided_slice %463 {offsets = [0, 32], sizes = [2, 32], strides = [1, 1]} : vector<2x96xf32> to vector<2x32xf32>
    %474 = vector.extract_strided_slice %464 {offsets = [0, 32], sizes = [2, 32], strides = [1, 1]} : vector<2x96xf32> to vector<2x32xf32>
    %475 = arith.addf %473, %474 : vector<2x32xf32>
    %476 = arith.negf %475 : vector<2x32xf32>
    %477 = math.exp %476 : vector<2x32xf32>
    %cst_89 = arith.constant 1.000000e+00 : f32
    %478 = vector.broadcast %cst_89 : f32 to vector<2x32xf32>
    %479 = arith.addf %478, %477 : vector<2x32xf32>
    %480 = arith.divf %478, %479 : vector<2x32xf32>
    %481 = vector.extract_strided_slice %463 {offsets = [0, 64], sizes = [2, 32], strides = [1, 1]} : vector<2x96xf32> to vector<2x32xf32>
    %482 = vector.extract_strided_slice %464 {offsets = [0, 64], sizes = [2, 32], strides = [1, 1]} : vector<2x96xf32> to vector<2x32xf32>
    %483 = arith.addf %482, %14 : vector<2x32xf32>
    %484 = arith.mulf %472, %483 : vector<2x32xf32>
    %485 = arith.addf %481, %484 : vector<2x32xf32>
    %486 = math.tanh %485 : vector<2x32xf32>
    %cst_90 = arith.constant 1.000000e+00 : f32
    %487 = vector.broadcast %cst_90 : f32 to vector<2x32xf32>
    %488 = arith.subf %487, %480 : vector<2x32xf32>
    %489 = arith.mulf %488, %486 : vector<2x32xf32>
    %490 = arith.mulf %480, %461 : vector<2x32xf32>
    %491 = arith.addf %489, %490 : vector<2x32xf32>
    %492 = tpu.concatenate %107, %166, %225, %284, %343, %402, %461, %491 in 0 : vector<2x32xf32>, vector<2x32xf32>, vector<2x32xf32>, vector<2x32xf32>, vector<2x32xf32>, vector<2x32xf32>, vector<2x32xf32>, vector<2x32xf32> -> vector<16x32xf32>
    %c0_91 = arith.constant 0 : index
    %c0_92 = arith.constant 0 : index
    %493 = vector.load %arg1[%c0_91, %c0_92] : memref<16x1xf32, #tpu.memory_space<vmem>>, vector<16x1xf32>
    %cst_93 = arith.constant 5.000000e-01 : f32
    %494 = vector.broadcast %cst_93 : f32 to vector<16x1xf32>
    %495 = arith.cmpf ogt, %493, %494 : vector<16x1xf32>
    %cst_94 = arith.constant -2.000000e+00 : f32
    %496 = vector.shape_cast %495 : vector<16x1xi1> to vector<16x1xi1>
    %497 = vector.broadcast %496 : vector<16x1xi1> to vector<16x32xi1>
    %498 = vector.broadcast %cst_94 : f32 to vector<16x32xf32>
    %499 = arith.select %497, %492, %498 : vector<16x32xi1>, vector<16x32xf32>
    %c0_95 = arith.constant 0 : index
    %c0_96 = arith.constant 0 : index
    %500 = vector.load %arg10[%c0_95, %c0_96] : memref<32x32xf32, #tpu.memory_space<vmem>>, vector<32x32xf32>
    %cst_97 = arith.constant dense<0.000000e+00> : vector<16x32xf32>
    %501 = tpu.matmul %499, %500, %cst_97 {dimension_numbers = #tpu.dot_dimension_numbers<[1], [0], [0], [1], [0, 0, 1, 1], [], []>} : vector<16x32xf32>, vector<32x32xf32>, vector<16x32xf32> -> vector<16x32xf32>
    %c0_98 = arith.constant 0 : index
    %c0_99 = arith.constant 0 : index
    %502 = vector.load %arg11[%c0_98, %c0_99] : memref<6x32xf32, #tpu.memory_space<vmem>>, vector<6x32xf32>
    %cst_100 = arith.constant dense<0.000000e+00> : vector<16x32xf32>
    %503 = tpu.matmul %0, %502, %cst_100 {dimension_numbers = #tpu.dot_dimension_numbers<[1], [0], [0], [1], [0, 0, 1, 1], [], []>} : vector<16x6xf32>, vector<6x32xf32>, vector<16x32xf32> -> vector<16x32xf32>
    %504 = arith.addf %501, %503 : vector<16x32xf32>
    %c0_101 = arith.constant 0 : index
    %c0_102 = arith.constant 0 : index
    %505 = vector.load %arg12[%c0_101, %c0_102] : memref<1x32xf32, #tpu.memory_space<vmem>>, vector<1x32xf32>
    %506 = vector.broadcast %505 : vector<1x32xf32> to vector<16x32xf32>
    %507 = arith.addf %504, %506 : vector<16x32xf32>
    %cst_103 = arith.constant 0.000000e+00 : f32
    %508 = vector.broadcast %cst_103 : f32 to vector<16x32xf32>
    %509 = arith.cmpf oge, %507, %508 : vector<16x32xf32>
    %cst_104 = arith.constant 2.000000e-01 : f32
    %510 = vector.broadcast %cst_104 : f32 to vector<16x32xf32>
    %511 = arith.mulf %510, %507 : vector<16x32xf32>
    %512 = arith.select %509, %507, %511 : vector<16x32xi1>, vector<16x32xf32>
    %c0_105 = arith.constant 0 : index
    %c0_106 = arith.constant 0 : index
    %513 = vector.load %arg13[%c0_105, %c0_106] : memref<1x32xf32, #tpu.memory_space<vmem>>, vector<1x32xf32>
    %514 = vector.broadcast %513 : vector<1x32xf32> to vector<16x32xf32>
    %515 = arith.mulf %512, %514 : vector<16x32xf32>
    %cst_107 = arith.constant dense<0.000000e+00> : vector<16xf32>
    %516 = vector.multi_reduction <add>, %515, %cst_107 [1] : vector<16x32xf32> to vector<16xf32>
    %517 = vector.shape_cast %516 : vector<16xf32> to vector<16x1xf32>
    %c0_108 = arith.constant 0 : index
    %c0_109 = arith.constant 0 : index
    %518 = vector.load %arg14[%c0_108, %c0_109] : memref<1x1xf32, #tpu.memory_space<vmem>>, vector<1x1xf32>
    %519 = vector.broadcast %518 : vector<1x1xf32> to vector<16x1xf32>
    %520 = arith.addf %517, %519 : vector<16x1xf32>
    %c0_110 = arith.constant 0 : index
    %c0_111 = arith.constant 0 : index
    %521 = vector.load %arg15[%c0_110, %c0_111] : memref<16x1xf32, #tpu.memory_space<vmem>>, vector<16x1xf32>
    tpu.vector_store %arg15[%c0_110, %c0_111], %520 {strides = array<i32>} : memref<16x1xf32, #tpu.memory_space<vmem>>, vector<16x1xf32>,
    return
  }
}

</mosaic_0001>

<llo_original>
// kernel: tpu_custom_call.1
$region0: #{tpu_custom_call.1}
  #allocation0 [shape = 'u32[]', space=smem, size = 0x4, offset = 0x4, fixed_abs, tag = 'smem constant byte address 0x4 - core index']
  #allocation1 [shape = 'u32[144,128]{1,0:T(1,128)}', space=vmem, size = 0x12000, scoped, tag = 'internal scratch']
  #allocation2 [shape = 'f32[1,1]{1,0:T(1,128)S(1)}', space=vmem, size = 0x200, scoped, tag = 'scoped memory for tpu_custom_call.1']
  %s0 = inlined_call_operand.vmem [shape: f32[16,6], index: 0, kind: input, shape index: {}]
  %s1 = inlined_call_operand.vmem [shape: f32[16,1], index: 1, kind: input, shape index: {}]
  %s2 = inlined_call_operand.hbm [shape: f32[6,96], index: 2, kind: input, shape index: {}]
  %s3 = inlined_call_operand.vmem [shape: f32[1,96], index: 3, kind: input, shape index: {}]
  %s4 = inlined_call_operand.vmem [shape: f32[32,96], index: 4, kind: input, shape index: {}]
  %s5 = inlined_call_operand.vmem [shape: f32[1,32], index: 5, kind: input, shape index: {}]
  %s6 = inlined_call_operand.vmem [shape: f32[32,96], index: 6, kind: input, shape index: {}]
  %s7 = inlined_call_operand.vmem [shape: f32[1,96], index: 7, kind: input, shape index: {}]
  %s8 = inlined_call_operand.hbm [shape: f32[32,96], index: 8, kind: input, shape index: {}]
  %s9 = inlined_call_operand.vmem [shape: f32[1,32], index: 9, kind: input, shape index: {}]
  %s10 = inlined_call_operand.hbm [shape: f32[32,32], index: 10, kind: input, shape index: {}]
  %s11 = inlined_call_operand.vmem [shape: f32[6,32], index: 11, kind: input, shape index: {}]
  %s12 = inlined_call_operand.vmem [shape: f32[1,32], index: 12, kind: input, shape index: {}]
  %s13 = inlined_call_operand.vmem [shape: f32[1,32], index: 13, kind: input, shape index: {}]
  %s14 = inlined_call_operand.<no memory space> [shape: f32[1,1], index: 14, kind: input, shape index: {}]
  %s15 = inlined_call_operand.vmem [shape: f32[16,1], index: 15, kind: output, shape index: {}]
  %s16 = sld [smem:[#allocation0]]
  $region82: #{tpu_custom_call.1} parent=0
    _
  %s18 = ssub.s32 1, %s16
  %s19 = scalar_select 0, %s18, %s16
  %v20 = vstv %s14
  %21 = vst [vmem:[#allocation2] sm:$0x1] %v20
  $region1: #{tpu_custom_call.1} parent=0
    #allocation3 [shape = 'u8[4096]{0}', space=vmem, size = 0x1000, scoped, tag = 'input window, operand 2, single buffered']
    #allocation4 [shape = 's32[1]{0}', space=sflag, size = 0x4, scoped, tag = 'scoped memory for tpu_custom_call.1']
    #allocation5 [shape = 'u8[16384]{0}', space=vmem, size = 0x4000, scoped, tag = 'input window, operand 8, single buffered']
    #allocation6 [shape = 's32[1]{0}', space=sflag, size = 0x4, scoped, tag = 'scoped memory for tpu_custom_call.1']
    #allocation7 [shape = 'u8[16384]{0}', space=vmem, size = 0x4000, scoped, tag = 'input window, operand 10, single buffered']
    %22 = vsyncpa [#allocation4], 0
    %23 = vsyncpa [#allocation6], 0
    // Predicated region
    $region2: #{tpu_custom_call.1} parent=1 // pred_check
      _
    $region3: #{tpu_custom_call.1} parent=1 // pred_check_branch
      %25 = sbr.rel (0) target = $region5
    $region4: #{tpu_custom_call.1} parent=1 // pred_region
      _
    $region5: #{tpu_custom_call.1} parent=1 // pred_fallthru
      _
    // Predicated region
    $region6: #{tpu_custom_call.1} parent=1 // pred_check
      _
    $region7: #{tpu_custom_call.1} parent=1 // pred_check_branch
      %27 = sbr.rel (0) target = $region9
    $region8: #{tpu_custom_call.1} parent=1 // pred_region
      _
    $region9: #{tpu_custom_call.1} parent=1 // pred_fallthru
      _
    // Predicated region
    $region10: #{tpu_custom_call.1} parent=1 // pred_check
      _
    $region11: #{tpu_custom_call.1} parent=1 // pred_check_branch
      %29 = sbr.rel (0) target = $region13
    $region12: #{tpu_custom_call.1} parent=1 // pred_region
      %s31 = ssub.s32 128, 128
      %32 = vsyncadd [#allocation4], %s31
      %s34 = sshll.u32 [#allocation3], 4
      %s35 = int_to_ptr.vmem [resolvable:$true] %s34
      %37 = dma.hbm_to_vmem [thread:$0]  %s2, 128, %s35, [#allocation4]
    $region13: #{tpu_custom_call.1} parent=1 // pred_fallthru
      _
    // Predicated region
    $region14: #{tpu_custom_call.1} parent=1 // pred_check
      _
    $region15: #{tpu_custom_call.1} parent=1 // pred_check_branch
      %39 = sbr.rel (0) target = $region17
    $region16: #{tpu_custom_call.1} parent=1 // pred_region
      _
    $region17: #{tpu_custom_call.1} parent=1 // pred_fallthru
      _
    // Predicated region
    $region18: #{tpu_custom_call.1} parent=1 // pred_check
      _
    $region19: #{tpu_custom_call.1} parent=1 // pred_check_branch
      %41 = sbr.rel (0) target = $region21
    $region20: #{tpu_custom_call.1} parent=1 // pred_region
      _
    $region21: #{tpu_custom_call.1} parent=1 // pred_fallthru
      _
    // Predicated region
    $region22: #{tpu_custom_call.1} parent=1 // pred_check
      _
    $region23: #{tpu_custom_call.1} parent=1 // pred_check_branch
      %43 = sbr.rel (0) target = $region25
    $region24: #{tpu_custom_call.1} parent=1 // pred_region
      _
    $region25: #{tpu_custom_call.1} parent=1 // pred_fallthru
      _
    // Predicated region
    $region26: #{tpu_custom_call.1} parent=1 // pred_check
      _
    $region27: #{tpu_custom_call.1} parent=1 // pred_check_branch
      %45 = sbr.rel (0) target = $region29
    $region28: #{tpu_custom_call.1} parent=1 // pred_region
      _
    $region29: #{tpu_custom_call.1} parent=1 // pred_fallthru
      _
    // Predicated region
    $region30: #{tpu_custom_call.1} parent=1 // pred_check
      _
    $region31: #{tpu_custom_call.1} parent=1 // pred_check_branch
      %47 = sbr.rel (0) target = $region33
    $region32: #{tpu_custom_call.1} parent=1 // pred_region
      _
    $region33: #{tpu_custom_call.1} parent=1 // pred_fallthru
      _
    // Predicated region
    $region34: #{tpu_custom_call.1} parent=1 // pred_check
      _
    $region35: #{tpu_custom_call.1} parent=1 // pred_check_branch
      %49 = sbr.rel (0) target = $region37
    $region36: #{tpu_custom_call.1} parent=1 // pred_region
      %s51 = ssub.s32 512, 512
      %52 = vsyncadd [#allocation6], %s51
      %s53 = sshll.u32 [#allocation5], 4
      %s54 = int_to_ptr.vmem [resolvable:$true] %s53
      %59 = dma.hbm_to_vmem [thread:$0]  %s8, 512, %s54, [#allocation6], 128, 128, 8
    $region37: #{tpu_custom_call.1} parent=1 // pred_fallthru
      _
    // Predicated region
    $region38: #{tpu_custom_call.1} parent=1 // pred_check
      _
    $region39: #{tpu_custom_call.1} parent=1 // pred_check_branch
      %61 = sbr.rel (0) target = $region41
    $region40: #{tpu_custom_call.1} parent=1 // pred_region
      _
    $region41: #{tpu_custom_call.1} parent=1 // pred_fallthru
      _
    // Predicated region
    $region42: #{tpu_custom_call.1} parent=1 // pred_check
      _
    $region43: #{tpu_custom_call.1} parent=1 // pred_check_branch
      %63 = sbr.rel (0) target = $region45
    $region44: #{tpu_custom_call.1} parent=1 // pred_region
      %s65 = ssub.s32 512, 512
      %66 = vsyncadd [#allocation6], %s65
      %s67 = sshll.u32 [#allocation7], 4
      %s68 = int_to_ptr.vmem [resolvable:$true] %s67
      %73 = dma.hbm_to_vmem [thread:$0]  %s10, 512, %s68, [#allocation6], 128, 128, 8
    $region45: #{tpu_custom_call.1} parent=1 // pred_fallthru
      _
    // Predicated region
    $region46: #{tpu_custom_call.1} parent=1 // pred_check
      _
    $region47: #{tpu_custom_call.1} parent=1 // pred_check_branch
      %75 = sbr.rel (0) target = $region49
    $region48: #{tpu_custom_call.1} parent=1 // pred_region
      _
    $region49: #{tpu_custom_call.1} parent=1 // pred_fallthru
      _
    // Predicated region
    $region50: #{tpu_custom_call.1} parent=1 // pred_check
      _
    $region51: #{tpu_custom_call.1} parent=1 // pred_check_branch
      %77 = sbr.rel (0) target = $region53
    $region52: #{tpu_custom_call.1} parent=1 // pred_region
      _
    $region53: #{tpu_custom_call.1} parent=1 // pred_fallthru
      _
    // Predicated region
    $region54: #{tpu_custom_call.1} parent=1 // pred_check
      _
    $region55: #{tpu_custom_call.1} parent=1 // pred_check_branch
      %79 = sbr.rel (0) target = $region57
    $region56: #{tpu_custom_call.1} parent=1 // pred_region
      _
    $region57: #{tpu_custom_call.1} parent=1 // pred_fallthru
      _
    // Predicated region
    $region58: #{tpu_custom_call.1} parent=1 // pred_check
      _
    $region59: #{tpu_custom_call.1} parent=1 // pred_check_branch
      %81 = sbr.rel (0) target = $region61
    $region60: #{tpu_custom_call.1} parent=1 // pred_region
      _
    $region61: #{tpu_custom_call.1} parent=1 // pred_fallthru
      _
    // Predicated region
    $region62: #{tpu_custom_call.1} parent=1 // pred_check
      _
    $region63: #{tpu_custom_call.1} parent=1 // pred_check_branch
      %83 = sbr.rel (0) target = $region65
    $region64: #{tpu_custom_call.1} parent=1 // pred_region
      %84 = dma.done [#allocation4], 128
    $region65: #{tpu_custom_call.1} parent=1 // pred_fallthru
      _
    // Predicated region
    $region66: #{tpu_custom_call.1} parent=1 // pred_check
      _
    $region67: #{tpu_custom_call.1} parent=1 // pred_check_branch
      %86 = sbr.rel (0) target = $region69
    $region68: #{tpu_custom_call.1} parent=1 // pred_region
      %87 = dma.done [#allocation6], 512
    $region69: #{tpu_custom_call.1} parent=1 // pred_fallthru
      _
    // Predicated region
    $region70: #{tpu_custom_call.1} parent=1 // pred_check
      _
    $region71: #{tpu_custom_call.1} parent=1 // pred_check_branch
      %89 = sbr.rel (0) target = $region73
    $region72: #{tpu_custom_call.1} parent=1 // pred_region
      %90 = dma.done [#allocation6], 512
    $region73: #{tpu_custom_call.1} parent=1 // pred_fallthru
      _
    %v91 = vld [vmem:[%s0] sm:$0xff]
    %v92 = vld [vmem:[%s0 + $0x8] sm:$0xff]
    %v93 = vld [vmem:[#allocation3] sm:$0x3f]
    %v94 = vld [vmem:[%s3] sm:$0x1]
    %v96 = vlaneseq
    %v97 = vshrl.u32 %v96, 7
    %v98 = vsub.s32 0, %v97
    %v99 = vrot.slane %v94, %v98
    %vm101 = vcmask 48128
    %v103 = vsel %vm101, %v91, 0
    %v106 = vsel %vm101, %v92, 0
    %vm108 = vcmask 1045504
    %v110 = vsel %vm108, %v93, 0
    %112 = vmatprep.subr.mxu0 0.0
    %113 = vmatpush1.msra.mxu0 %v110
    %114 = vmatprep.subr.mxu0 0.0
    %115 = vmatpush1.msra.mxu0 0.0
    %116 = vmatprep.subr.mxu0 0.0
    %117 = vmatpush1.msra.mxu0 0.0
    %118 = vmatprep.subr.mxu0 0.0
    %119 = vmatpush1.msra.mxu0 0.0
    %120 = vmatprep.subr.mxu0 0.0
    %121 = vmatpush1.msra.mxu0 0.0
    %122 = vmatprep.subr.mxu0 0.0
    %123 = vmatpush1.msra.mxu0 0.0
    %124 = vmatprep.subr.mxu0 0.0
    %125 = vmatpush1.msra.mxu0 0.0
    %126 = vmatprep.subr.mxu0 0.0
    %127 = vmatpush1.msra.mxu0 0.0
    %128 = vmatprep.subr.mxu0 0.0
    %129 = vmatpush1.msra.mxu0 0.0
    %130 = vmatprep.subr.mxu0 0.0
    %131 = vmatpush1.msra.mxu0 0.0
    %132 = vmatprep.subr.mxu0 0.0
    %133 = vmatpush1.msra.mxu0 0.0
    %134 = vmatprep.subr.mxu0 0.0
    %135 = vmatpush1.msra.mxu0 0.0
    %136 = vmatprep.subr.mxu0 0.0
    %137 = vmatpush1.msra.mxu0 0.0
    %138 = vmatprep.subr.mxu0 0.0
    %139 = vmatpush1.msra.mxu0 0.0
    %140 = vmatprep.subr.mxu0 0.0
    %141 = vmatpush1.msra.mxu0 0.0
    %142 = vmatprep.subr.mxu0 0.0
    %143 = vmatpush1.msra.mxu0 0.0
    %144 = vmatprep.subr.mxu0 0.0
    %145 = vmatpush1.msra.mxu0 0.0
    %146 = vmatprep.subr.mxu0 0.0
    %147 = vmatpush1.msra.mxu0 0.0
    %148 = vmatprep.subr.mxu0 0.0
    %149 = vmatpush1.msra.mxu0 0.0
    %150 = vmatprep.subr.mxu0 0.0
    %151 = vmatpush1.msra.mxu0 0.0
    %152 = vmatprep.subr.mxu0 0.0
    %153 = vmatpush1.msra.mxu0 0.0
    %154 = vmatprep.subr.mxu0 0.0
    %155 = vmatpush1.msra.mxu0 0.0
    %156 = vmatprep.subr.mxu0 0.0
    %157 = vmatpush1.msra.mxu0 0.0
    %158 = vmatprep.subr.mxu0 0.0
    %159 = vmatpush1.msra.mxu0 0.0
    %160 = vmatprep.subr.mxu0 0.0
    %161 = vmatpush1.msra.mxu0 0.0
    %162 = vmatprep.subr.mxu0 0.0
    %163 = vmatpush1.msra.mxu0 0.0
    %164 = vmatprep.subr.mxu0 0.0
    %165 = vmatpush1.msra.mxu0 0.0
    %166 = vmatprep.subr.mxu0 0.0
    %167 = vmatpush1.msra.mxu0 0.0
    %168 = vmatprep.subr.mxu0 0.0
    %169 = vmatpush1.msra.mxu0 0.0
    %170 = vmatprep.subr.mxu0 0.0
    %171 = vmatpush1.msra.mxu0 0.0
    %172 = vmatprep.subr.mxu0 0.0
    %173 = vmatpush1.msra.mxu0 0.0
    %174 = vmatprep.subr.mxu0 0.0
    %175 = vmatpush1.msra.mxu0 0.0
    %176 = vmatprep.mubr.f32.mxu0 0.0
    %177 = vmatmul.mubr.f32.gmra.mrb[0].mxu0 %v103
    %v178 = vpop.f32.mrb[0].mxu0
    %v179 = vadd.f32 %v99, %v178
    %v180 = vpop.f32.mrb[0].mxu0
    %181 = vmatprep.mubr.f32.mxu0 0.0
    %182 = vmatmul.mubr.f32.gmra.mrb[0].mxu0 %v106
    %v183 = vpop.f32.mrb[0].mxu0
    %v184 = vadd.f32 %v99, %v183
    %v185 = vpop.f32.mrb[0].mxu0
    %186 = vdwg.mxu0
    %v187 = vld [vmem:[%s4] sm:$0xff]
    %v188 = vld [vmem:[%s4 + $0x8] sm:$0xff]
    %v189 = vld [vmem:[%s4 + $0x10] sm:$0xff]
    %v190 = vld [vmem:[%s4 + $0x18] sm:$0xff]
    %v191 = vld [vmem:[#allocation5] sm:$0xff]
    %v192 = vld [vmem:[#allocation5 + $0x8] sm:$0xff]
    %v193 = vld [vmem:[#allocation5 + $0x10] sm:$0xff]
    %v194 = vld [vmem:[#allocation5 + $0x18] sm:$0xff]
    %v195 = vld [vmem:[%s6] sm:$0xff]
    %v196 = vld [vmem:[%s6 + $0x8] sm:$0xff]
    %v197 = vld [vmem:[%s6 + $0x10] sm:$0xff]
    %v198 = vld [vmem:[%s6 + $0x18] sm:$0xff]
    %v199 = vld [vmem:[%s5] sm:$0x1]
    %v201 = vlaneseq
    %v202 = vshrl.u32 %v201, 7
    %v203 = vsub.s32 0, %v202
    %v204 = vrot.slane %v199, %v203
    %v205 = vld [vmem:[%s9] sm:$0x1]
    %v207 = vlaneseq
    %v208 = vshrl.u32 %v207, 7
    %v209 = vsub.s32 0, %v208
    %v210 = vrot.slane %v205, %v209
    %v211 = vld [vmem:[%s7] sm:$0x1]
    %v213 = vlaneseq
    %v214 = vshrl.u32 %v213, 7
    %v215 = vsub.s32 0, %v214
    %v216 = vrot.slane %v211, %v215
    %vm218 = vcmask 261120
    %v220 = vsel %vm218, 0.0, 0
    %222 = vmatprep.subr.mxu0 0.0
    %223 = vmatpush1.msra.mxu0 %v187
    %224 = vmatprep.subr.mxu0 0.0
    %225 = vmatpush1.msra.mxu0 %v188
    %226 = vmatprep.subr.mxu0 0.0
    %227 = vmatpush1.msra.mxu0 %v189
    %228 = vmatprep.subr.mxu0 0.0
    %229 = vmatpush1.msra.mxu0 %v190
    %230 = vmatprep.subr.mxu0 0.0
    %231 = vmatpush1.msra.mxu0 0.0
    %232 = vmatprep.subr.mxu0 0.0
    %233 = vmatpush1.msra.mxu0 0.0
    %234 = vmatprep.subr.mxu0 0.0
    %235 = vmatpush1.msra.mxu0 0.0
    %236 = vmatprep.subr.mxu0 0.0
    %237 = vmatpush1.msra.mxu0 0.0
    %238 = vmatprep.subr.mxu0 0.0
    %239 = vmatpush1.msra.mxu0 0.0
    %240 = vmatprep.subr.mxu0 0.0
    %241 = vmatpush1.msra.mxu0 0.0
    %242 = vmatprep.subr.mxu0 0.0
    %243 = vmatpush1.msra.mxu0 0.0
    %244 = vmatprep.subr.mxu0 0.0
    %245 = vmatpush1.msra.mxu0 0.0
    %246 = vmatprep.subr.mxu0 0.0
    %247 = vmatpush1.msra.mxu0 0.0
    %248 = vmatprep.subr.mxu0 0.0
    %249 = vmatpush1.msra.mxu0 0.0
    %250 = vmatprep.subr.mxu0 0.0
    %251 = vmatpush1.msra.mxu0 0.0
    %252 = vmatprep.subr.mxu0 0.0
    %253 = vmatpush1.msra.mxu0 0.0
    %254 = vmatprep.subr.mxu0 0.0
    %255 = vmatpush1.msra.mxu0 0.0
    %256 = vmatprep.subr.mxu0 0.0
    %257 = vmatpush1.msra.mxu0 0.0
    %258 = vmatprep.subr.mxu0 0.0
    %259 = vmatpush1.msra.mxu0 0.0
    %260 = vmatprep.subr.mxu0 0.0
    %261 = vmatpush1.msra.mxu0 0.0
    %262 = vmatprep.subr.mxu0 0.0
    %263 = vmatpush1.msra.mxu0 0.0
    %264 = vmatprep.subr.mxu0 0.0
    %265 = vmatpush1.msra.mxu0 0.0
    %266 = vmatprep.subr.mxu0 0.0
    %267 = vmatpush1.msra.mxu0 0.0
    %268 = vmatprep.subr.mxu0 0.0
    %269 = vmatpush1.msra.mxu0 0.0
    %270 = vmatprep.subr.mxu0 0.0
    %271 = vmatpush1.msra.mxu0 0.0
    %272 = vmatprep.subr.mxu0 0.0
    %273 = vmatpush1.msra.mxu0 0.0
    %274 = vmatprep.subr.mxu0 0.0
    %275 = vmatpush1.msra.mxu0 0.0
    %276 = vmatprep.subr.mxu0 0.0
    %277 = vmatpush1.msra.mxu0 0.0
    %278 = vmatprep.subr.mxu0 0.0
    %279 = vmatpush1.msra.mxu0 0.0
    %280 = vmatprep.subr.mxu0 0.0
    %281 = vmatpush1.msra.mxu0 0.0
    %282 = vmatprep.subr.mxu0 0.0
    %283 = vmatpush1.msra.mxu0 0.0
    %284 = vmatprep.subr.mxu0 0.0
    %285 = vmatpush1.msra.mxu0 0.0
    %286 = vmatprep.mubr.f32.mxu0 0.0
    %287 = vmatmul.mubr.f32.gmra.mrb[0].mxu0 %v220
    %v288 = vpop.f32.mrb[0].mxu0
    %v289 = vadd.f32 0.0, %v288
    %v290 = vpop.f32.mrb[0].mxu0
    %291 = vdwg.mxu0
    %v292 = vadd.f32 %v179, %v289
    %v293 = vxor.u32 %v292, 2147483648
    %v294 = vmul.f32 %v293, 1.442695
    %v295 = vpow.pop %v294
    %v296 = vadd.f32 %v295, 1.0
    %v297 = vrcp.pop %v296
    %v298 = vmul.f32 1.0, %v297
    %299 = vrot.lane.b32.xlu0 %v204, 64
    %v300 = vpop.permute.xlu0 %299
    %v302 = vadd.f32 %v289, %v300
    %304 = vrot.lane.b32.xlu0 %v302, 64
    %v305 = vpop.permute.xlu0 %304
    %v307 = vmul.f32 %v298, %v305
    %309 = vrot.lane.b32.xlu0 %v307, 64
    %v310 = vpop.permute.xlu0 %309
    %v312 = vadd.f32 %v179, %v310
    %v313 = vtanh.pop %v312
    %v314 = vsub.f32 1.0, %v298
    %316 = vrot.lane.b32.xlu0 %v313, 96
    %v317 = vpop.permute.xlu0 %316
    %v319 = vmul.f32 %v314, %v317
    %v320 = vmul.f32 %v298, 0.0
    %v321 = vadd.f32 %v319, %v320
    %323 = vrot.lane.b32.xlu0 %v321, 96
    %v324 = vpop.permute.xlu0 %323
    %v325 = vsel %vm218, %v324, 0
    %327 = vmatprep.subr.mxu0 0.0
    %328 = vmatpush1.msra.mxu0 %v195
    %329 = vmatprep.subr.mxu0 0.0
    %330 = vmatpush1.msra.mxu0 %v196
    %331 = vmatprep.subr.mxu0 0.0
    %332 = vmatpush1.msra.mxu0 %v197
    %333 = vmatprep.subr.mxu0 0.0
    %334 = vmatpush1.msra.mxu0 %v198
    %335 = vmatprep.subr.mxu0 0.0
    %336 = vmatpush1.msra.mxu0 0.0
    %337 = vmatprep.subr.mxu0 0.0
    %338 = vmatpush1.msra.mxu0 0.0
    %339 = vmatprep.subr.mxu0 0.0
    %340 = vmatpush1.msra.mxu0 0.0
    %341 = vmatprep.subr.mxu0 0.0
    %342 = vmatpush1.msra.mxu0 0.0
    %343 = vmatprep.subr.mxu0 0.0
    %344 = vmatpush1.msra.mxu0 0.0
    %345 = vmatprep.subr.mxu0 0.0
    %346 = vmatpush1.msra.mxu0 0.0
    %347 = vmatprep.subr.mxu0 0.0
    %348 = vmatpush1.msra.mxu0 0.0
    %349 = vmatprep.subr.mxu0 0.0
    %350 = vmatpush1.msra.mxu0 0.0
    %351 = vmatprep.subr.mxu0 0.0
    %352 = vmatpush1.msra.mxu0 0.0
    %353 = vmatprep.subr.mxu0 0.0
    %354 = vmatpush1.msra.mxu0 0.0
    %355 = vmatprep.subr.mxu0 0.0
    %356 = vmatpush1.msra.mxu0 0.0
    %357 = vmatprep.subr.mxu0 0.0
    %358 = vmatpush1.msra.mxu0 0.0
    %359 = vmatprep.subr.mxu0 0.0
    %360 = vmatpush1.msra.mxu0 0.0
    %361 = vmatprep.subr.mxu0 0.0
    %362 = vmatpush1.msra.mxu0 0.0
    %363 = vmatprep.subr.mxu0 0.0
    %364 = vmatpush1.msra.mxu0 0.0
    %365 = vmatprep.subr.mxu0 0.0
    %366 = vmatpush1.msra.mxu0 0.0
    %367 = vmatprep.subr.mxu0 0.0
    %368 = vmatpush1.msra.mxu0 0.0
    %369 = vmatprep.subr.mxu0 0.0
    %370 = vmatpush1.msra.mxu0 0.0
    %371 = vmatprep.subr.mxu0 0.0
    %372 = vmatpush1.msra.mxu0 0.0
    %373 = vmatprep.subr.mxu0 0.0
    %374 = vmatpush1.msra.mxu0 0.0
    %375 = vmatprep.subr.mxu0 0.0
    %376 = vmatpush1.msra.mxu0 0.0
    %377 = vmatprep.subr.mxu0 0.0
    %378 = vmatpush1.msra.mxu0 0.0
    %379 = vmatprep.subr.mxu0 0.0
    %380 = vmatpush1.msra.mxu0 0.0
    %381 = vmatprep.subr.mxu0 0.0
    %382 = vmatpush1.msra.mxu0 0.0
    %383 = vmatprep.subr.mxu0 0.0
    %384 = vmatpush1.msra.mxu0 0.0
    %385 = vmatprep.subr.mxu0 0.0
    %386 = vmatpush1.msra.mxu0 0.0
    %387 = vmatprep.subr.mxu0 0.0
    %388 = vmatpush1.msra.mxu0 0.0
    %389 = vmatprep.subr.mxu0 0.0
    %390 = vmatpush1.msra.mxu0 0.0
    %391 = vmatprep.mubr.f32.mxu0 0.0
    %392 = vmatmul.mubr.f32.gmra.mrb[0].mxu0 %v325
    %v393 = vpop.f32.mrb[0].mxu0
    %v394 = vadd.f32 %v216, %v393
    %v395 = vpop.f32.mrb[0].mxu0
    %396 = vdwg.mxu0
    %397 = vmatprep.subr.mxu0 0.0
    %398 = vmatpush1.msra.mxu0 %v187
    %399 = vmatprep.subr.mxu0 0.0
    %400 = vmatpush1.msra.mxu0 %v188
    %401 = vmatprep.subr.mxu0 0.0
    %402 = vmatpush1.msra.mxu0 %v189
    %403 = vmatprep.subr.mxu0 0.0
    %404 = vmatpush1.msra.mxu0 %v190
    %405 = vmatprep.subr.mxu0 0.0
    %406 = vmatpush1.msra.mxu0 0.0
    %407 = vmatprep.subr.mxu0 0.0
    %408 = vmatpush1.msra.mxu0 0.0
    %409 = vmatprep.subr.mxu0 0.0
    %410 = vmatpush1.msra.mxu0 0.0
    %411 = vmatprep.subr.mxu0 0.0
    %412 = vmatpush1.msra.mxu0 0.0
    %413 = vmatprep.subr.mxu0 0.0
    %414 = vmatpush1.msra.mxu0 0.0
    %415 = vmatprep.subr.mxu0 0.0
    %416 = vmatpush1.msra.mxu0 0.0
    %417 = vmatprep.subr.mxu0 0.0
    %418 = vmatpush1.msra.mxu0 0.0
    %419 = vmatprep.subr.mxu0 0.0
    %420 = vmatpush1.msra.mxu0 0.0
    %421 = vmatprep.subr.mxu0 0.0
    %422 = vmatpush1.msra.mxu0 0.0
    %423 = vmatprep.subr.mxu0 0.0
    %424 = vmatpush1.msra.mxu0 0.0
    %425 = vmatprep.subr.mxu0 0.0
    %426 = vmatpush1.msra.mxu0 0.0
    %427 = vmatprep.subr.mxu0 0.0
    %428 = vmatpush1.msra.mxu0 0.0
    %429 = vmatprep.subr.mxu0 0.0
    %430 = vmatpush1.msra.mxu0 0.0
    %431 = vmatprep.subr.mxu0 0.0
    %432 = vmatpush1.msra.mxu0 0.0
    %433 = vmatprep.subr.mxu0 0.0
    %434 = vmatpush1.msra.mxu0 0.0
    %435 = vmatprep.subr.mxu0 0.0
    %436 = vmatpush1.msra.mxu0 0.0
    %437 = vmatprep.subr.mxu0 0.0
    %438 = vmatpush1.msra.mxu0 0.0
    %439 = vmatprep.subr.mxu0 0.0
    %440 = vmatpush1.msra.mxu0 0.0
    %441 = vmatprep.subr.mxu0 0.0
    %442 = vmatpush1.msra.mxu0 0.0
    %443 = vmatprep.subr.mxu0 0.0
    %444 = vmatpush1.msra.mxu0 0.0
    %445 = vmatprep.subr.mxu0 0.0
    %446 = vmatpush1.msra.mxu0 0.0
    %447 = vmatprep.subr.mxu0 0.0
    %448 = vmatpush1.msra.mxu0 0.0
    %449 = vmatprep.subr.mxu0 0.0
    %450 = vmatpush1.msra.mxu0 0.0
    %451 = vmatprep.subr.mxu0 0.0
    %452 = vmatpush1.msra.mxu0 0.0
    %453 = vmatprep.subr.mxu0 0.0
    %454 = vmatpush1.msra.mxu0 0.0
    %455 = vmatprep.subr.mxu0 0.0
    %456 = vmatpush1.msra.mxu0 0.0
    %457 = vmatprep.subr.mxu0 0.0
    %458 = vmatpush1.msra.mxu0 0.0
    %459 = vmatprep.subr.mxu0 0.0
    %460 = vmatpush1.msra.mxu0 0.0
    %461 = vmatprep.mubr.f32.mxu0 0.0
    %462 = vmatmul.mubr.f32.gmra.mrb[0].mxu0 %v325
    %v463 = vpop.f32.mrb[0].mxu0
    %v464 = vadd.f32 0.0, %v463
    %v465 = vpop.f32.mrb[0].mxu0
    %466 = vdwg.mxu0
    %v468 = vrot.slane %v464, 6
    %v470 = vadd.f32 %v179, %v468
    %v471 = vxor.u32 %v470, 2147483648
    %v472 = vmul.f32 %v471, 1.442695
    %v473 = vpow.pop %v472
    %v474 = vadd.f32 %v473, 1.0
    %v475 = vrcp.pop %v474
    %v476 = vmul.f32 1.0, %v475
    %v477 = vadd.f32 %v464, %v300
    %v479 = vrot.slane %v477, 6
    %480 = vrot.lane.b32.xlu0 %v479, 64
    %v481 = vpop.permute.xlu0 %480
    %v483 = vmul.f32 %v476, %v481
    %485 = vrot.lane.b32.xlu0 %v483, 64
    %v486 = vpop.permute.xlu0 %485
    %v488 = vadd.f32 %v179, %v486
    %v489 = vtanh.pop %v488
    %v490 = vsub.f32 1.0, %v476
    %492 = vrot.lane.b32.xlu0 %v489, 96
    %v493 = vpop.permute.xlu0 %492
    %v495 = vmul.f32 %v490, %v493
    %v496 = vrot.slane %v321, 6
    %v498 = vmul.f32 %v476, %v496
    %v499 = vadd.f32 %v495, %v498
    %500 = vmatprep.subr.mxu0 0.0
    %501 = vmatpush1.msra.mxu0 %v191
    %502 = vmatprep.subr.mxu0 0.0
    %503 = vmatpush1.msra.mxu0 %v192
    %504 = vmatprep.subr.mxu0 0.0
    %505 = vmatpush1.msra.mxu0 %v193
    %506 = vmatprep.subr.mxu0 0.0
    %507 = vmatpush1.msra.mxu0 %v194
    %508 = vmatprep.subr.mxu0 0.0
    %509 = vmatpush1.msra.mxu0 0.0
    %510 = vmatprep.subr.mxu0 0.0
    %511 = vmatpush1.msra.mxu0 0.0
    %512 = vmatprep.subr.mxu0 0.0
    %513 = vmatpush1.msra.mxu0 0.0
    %514 = vmatprep.subr.mxu0 0.0
    %515 = vmatpush1.msra.mxu0 0.0
    %516 = vmatprep.subr.mxu0 0.0
    %517 = vmatpush1.msra.mxu0 0.0
    %518 = vmatprep.subr.mxu0 0.0
    %519 = vmatpush1.msra.mxu0 0.0
    %520 = vmatprep.subr.mxu0 0.0
    %521 = vmatpush1.msra.mxu0 0.0
    %522 = vmatprep.subr.mxu0 0.0
    %523 = vmatpush1.msra.mxu0 0.0
    %524 = vmatprep.subr.mxu0 0.0
    %525 = vmatpush1.msra.mxu0 0.0
    %526 = vmatprep.subr.mxu0 0.0
    %527 = vmatpush1.msra.mxu0 0.0
    %528 = vmatprep.subr.mxu0 0.0
    %529 = vmatpush1.msra.mxu0 0.0
    %530 = vmatprep.subr.mxu0 0.0
    %531 = vmatpush1.msra.mxu0 0.0
    %532 = vmatprep.subr.mxu0 0.0
    %533 = vmatpush1.msra.mxu0 0.0
    %534 = vmatprep.subr.mxu0 0.0
    %535 = vmatpush1.msra.mxu0 0.0
    %536 = vmatprep.subr.mxu0 0.0
    %537 = vmatpush1.msra.mxu0 0.0
    %538 = vmatprep.subr.mxu0 0.0
    %539 = vmatpush1.msra.mxu0 0.0
    %540 = vmatprep.subr.mxu0 0.0
    %541 = vmatpush1.msra.mxu0 0.0
    %542 = vmatprep.subr.mxu0 0.0
    %543 = vmatpush1.msra.mxu0 0.0
    %544 = vmatprep.subr.mxu0 0.0
    %545 = vmatpush1.msra.mxu0 0.0
    %546 = vmatprep.subr.mxu0 0.0
    %547 = vmatpush1.msra.mxu0 0.0
    %548 = vmatprep.subr.mxu0 0.0
    %549 = vmatpush1.msra.mxu0 0.0
    %550 = vmatprep.subr.mxu0 0.0
    %551 = vmatpush1.msra.mxu0 0.0
    %552 = vmatprep.subr.mxu0 0.0
    %553 = vmatpush1.msra.mxu0 0.0
    %554 = vmatprep.subr.mxu0 0.0
    %555 = vmatpush1.msra.mxu0 0.0
    %556 = vmatprep.subr.mxu0 0.0
    %557 = vmatpush1.msra.mxu0 0.0
    %558 = vmatprep.subr.mxu0 0.0
    %559 = vmatpush1.msra.mxu0 0.0
    %560 = vmatprep.subr.mxu0 0.0
    %561 = vmatpush1.msra.mxu0 0.0
    %562 = vmatprep.subr.mxu0 0.0
    %563 = vmatpush1.msra.mxu0 0.0
    %564 = vmatprep.mubr.f32.mxu0 0.0
    %565 = vmatmul.mubr.f32.gmra.mrb[0].mxu0 %v220
    %v566 = vpop.f32.mrb[0].mxu0
    %v567 = vadd.f32 0.0, %v566
    %v568 = vpop.f32.mrb[0].mxu0
    %569 = vdwg.mxu0
    %v570 = vadd.f32 %v394, %v567
    %v571 = vxor.u32 %v570, 2147483648
    %v572 = vmul.f32 %v571, 1.442695
    %v573 = vpow.pop %v572
    %v574 = vadd.f32 %v573, 1.0
    %v575 = vrcp.pop %v574
    %v576 = vmul.f32 1.0, %v575
    %577 = vrot.lane.b32.xlu0 %v210, 64
    %v578 = vpop.permute.xlu0 %577
    %v580 = vadd.f32 %v567, %v578
    %582 = vrot.lane.b32.xlu0 %v580, 64
    %v583 = vpop.permute.xlu0 %582
    %v585 = vmul.f32 %v576, %v583
    %587 = vrot.lane.b32.xlu0 %v585, 64
    %v588 = vpop.permute.xlu0 %587
    %v590 = vadd.f32 %v394, %v588
    %v591 = vtanh.pop %v590
    %v592 = vsub.f32 1.0, %v576
    %594 = vrot.lane.b32.xlu0 %v591, 96
    %v595 = vpop.permute.xlu0 %594
    %v597 = vmul.f32 %v592, %v595
    %v598 = vmul.f32 %v576, 0.0
    %v599 = vadd.f32 %v597, %v598
    %v601 = vrot.slane %v499, 2
    %602 = vrot.lane.b32.xlu0 %v601, 96
    %v603 = vpop.permute.xlu0 %602
    %v604 = vsel %vm218, %v603, 0
    %606 = vmatprep.subr.mxu0 0.0
    %607 = vmatpush1.msra.mxu0 %v195
    %608 = vmatprep.subr.mxu0 0.0
    %609 = vmatpush1.msra.mxu0 %v196
    %610 = vmatprep.subr.mxu0 0.0
    %611 = vmatpush1.msra.mxu0 %v197
    %612 = vmatprep.subr.mxu0 0.0
    %613 = vmatpush1.msra.mxu0 %v198
    %614 = vmatprep.subr.mxu0 0.0
    %615 = vmatpush1.msra.mxu0 0.0
    %616 = vmatprep.subr.mxu0 0.0
    %617 = vmatpush1.msra.mxu0 0.0
    %618 = vmatprep.subr.mxu0 0.0
    %619 = vmatpush1.msra.mxu0 0.0
    %620 = vmatprep.subr.mxu0 0.0
    %621 = vmatpush1.msra.mxu0 0.0
    %622 = vmatprep.subr.mxu0 0.0
    %623 = vmatpush1.msra.mxu0 0.0
    %624 = vmatprep.subr.mxu0 0.0
    %625 = vmatpush1.msra.mxu0 0.0
    %626 = vmatprep.subr.mxu0 0.0
    %627 = vmatpush1.msra.mxu0 0.0
    %628 = vmatprep.subr.mxu0 0.0
    %629 = vmatpush1.msra.mxu0 0.0
    %630 = vmatprep.subr.mxu0 0.0
    %631 = vmatpush1.msra.mxu0 0.0
    %632 = vmatprep.subr.mxu0 0.0
    %633 = vmatpush1.msra.mxu0 0.0
    %634 = vmatprep.subr.mxu0 0.0
    %635 = vmatpush1.msra.mxu0 0.0
    %636 = vmatprep.subr.mxu0 0.0
    %637 = vmatpush1.msra.mxu0 0.0
    %638 = vmatprep.subr.mxu0 0.0
    %639 = vmatpush1.msra.mxu0 0.0
    %640 = vmatprep.subr.mxu0 0.0
    %641 = vmatpush1.msra.mxu0 0.0
    %642 = vmatprep.subr.mxu0 0.0
    %643 = vmatpush1.msra.mxu0 0.0
    %644 = vmatprep.subr.mxu0 0.0
    %645 = vmatpush1.msra.mxu0 0.0
    %646 = vmatprep.subr.mxu0 0.0
    %647 = vmatpush1.msra.mxu0 0.0
    %648 = vmatprep.subr.mxu0 0.0
    %649 = vmatpush1.msra.mxu0 0.0
    %650 = vmatprep.subr.mxu0 0.0
    %651 = vmatpush1.msra.mxu0 0.0
    %652 = vmatprep.subr.mxu0 0.0
    %653 = vmatpush1.msra.mxu0 0.0
    %654 = vmatprep.subr.mxu0 0.0
    %655 = vmatpush1.msra.mxu0 0.0
    %656 = vmatprep.subr.mxu0 0.0
    %657 = vmatpush1.msra.mxu0 0.0
    %658 = vmatprep.subr.mxu0 0.0
    %659 = vmatpush1.msra.mxu0 0.0
    %660 = vmatprep.subr.mxu0 0.0
    %661 = vmatpush1.msra.mxu0 0.0
    %662 = vmatprep.subr.mxu0 0.0
    %663 = vmatpush1.msra.mxu0 0.0
    %664 = vmatprep.subr.mxu0 0.0
    %665 = vmatpush1.msra.mxu0 0.0
    %666 = vmatprep.subr.mxu0 0.0
    %667 = vmatpush1.msra.mxu0 0.0
    %668 = vmatprep.subr.mxu0 0.0
    %669 = vmatpush1.msra.mxu0 0.0
    %670 = vmatprep.mubr.f32.mxu0 0.0
    %671 = vmatmul.mubr.f32.gmra.mrb[0].mxu0 %v604
    %v672 = vpop.f32.mrb[0].mxu0
    %v673 = vadd.f32 %v216, %v672
    %v674 = vpop.f32.mrb[0].mxu0
    %675 = vdwg.mxu0
    %676 = vmatprep.subr.mxu0 0.0
    %677 = vmatpush1.msra.mxu0 %v187
    %678 = vmatprep.subr.mxu0 0.0
    %679 = vmatpush1.msra.mxu0 %v188
    %680 = vmatprep.subr.mxu0 0.0
    %681 = vmatpush1.msra.mxu0 %v189
    %682 = vmatprep.subr.mxu0 0.0
    %683 = vmatpush1.msra.mxu0 %v190
    %684 = vmatprep.subr.mxu0 0.0
    %685 = vmatpush1.msra.mxu0 0.0
    %686 = vmatprep.subr.mxu0 0.0
    %687 = vmatpush1.msra.mxu0 0.0
    %688 = vmatprep.subr.mxu0 0.0
    %689 = vmatpush1.msra.mxu0 0.0
    %690 = vmatprep.subr.mxu0 0.0
    %691 = vmatpush1.msra.mxu0 0.0
    %692 = vmatprep.subr.mxu0 0.0
    %693 = vmatpush1.msra.mxu0 0.0
    %694 = vmatprep.subr.mxu0 0.0
    %695 = vmatpush1.msra.mxu0 0.0
    %696 = vmatprep.subr.mxu0 0.0
    %697 = vmatpush1.msra.mxu0 0.0
    %698 = vmatprep.subr.mxu0 0.0
    %699 = vmatpush1.msra.mxu0 0.0
    %700 = vmatprep.subr.mxu0 0.0
    %701 = vmatpush1.msra.mxu0 0.0
    %702 = vmatprep.subr.mxu0 0.0
    %703 = vmatpush1.msra.mxu0 0.0
    %704 = vmatprep.subr.mxu0 0.0
    %705 = vmatpush1.msra.mxu0 0.0
    %706 = vmatprep.subr.mxu0 0.0
    %707 = vmatpush1.msra.mxu0 0.0
    %708 = vmatprep.subr.mxu0 0.0
    %709 = vmatpush1.msra.mxu0 0.0
    %710 = vmatprep.subr.mxu0 0.0
    %711 = vmatpush1.msra.mxu0 0.0
    %712 = vmatprep.subr.mxu0 0.0
    %713 = vmatpush1.msra.mxu0 0.0
    %714 = vmatprep.subr.mxu0 0.0
    %715 = vmatpush1.msra.mxu0 0.0
    %716 = vmatprep.subr.mxu0 0.0
    %717 = vmatpush1.msra.mxu0 0.0
    %718 = vmatprep.subr.mxu0 0.0
    %719 = vmatpush1.msra.mxu0 0.0
    %720 = vmatprep.subr.mxu0 0.0
    %721 = vmatpush1.msra.mxu0 0.0
    %722 = vmatprep.subr.mxu0 0.0
    %723 = vmatpush1.msra.mxu0 0.0
    %724 = vmatprep.subr.mxu0 0.0
    %725 = vmatpush1.msra.mxu0 0.0
    %726 = vmatprep.subr.mxu0 0.0
    %727 = vmatpush1.msra.mxu0 0.0
    %728 = vmatprep.subr.mxu0 0.0
    %729 = vmatpush1.msra.mxu0 0.0
    %730 = vmatprep.subr.mxu0 0.0
    %731 = vmatpush1.msra.mxu0 0.0
    %732 = vmatprep.subr.mxu0 0.0
    %733 = vmatpush1.msra.mxu0 0.0
    %734 = vmatprep.subr.mxu0 0.0
    %735 = vmatpush1.msra.mxu0 0.0
    %736 = vmatprep.subr.mxu0 0.0
    %737 = vmatpush1.msra.mxu0 0.0
    %738 = vmatprep.subr.mxu0 0.0
    %739 = vmatpush1.msra.mxu0 0.0
    %740 = vmatprep.mubr.f32.mxu0 0.0
    %741 = vmatmul.mubr.f32.gmra.mrb[0].mxu0 %v604
    %v742 = vpop.f32.mrb[0].mxu0
    %v743 = vadd.f32 0.0, %v742
    %v744 = vpop.f32.mrb[0].mxu0
    %745 = vdwg.mxu0
    %v747 = vrot.slane %v743, 4
    %v749 = vadd.f32 %v179, %v747
    %v750 = vxor.u32 %v749, 2147483648
    %v751 = vmul.f32 %v750, 1.442695
    %v752 = vpow.pop %v751
    %v753 = vadd.f32 %v752, 1.0
    %v754 = vrcp.pop %v753
    %v755 = vmul.f32 1.0, %v754
    %v756 = vadd.f32 %v743, %v300
    %v758 = vrot.slane %v756, 4
    %759 = vrot.lane.b32.xlu0 %v758, 64
    %v760 = vpop.permute.xlu0 %759
    %v762 = vmul.f32 %v755, %v760
    %764 = vrot.lane.b32.xlu0 %v762, 64
    %v765 = vpop.permute.xlu0 %764
    %v767 = vadd.f32 %v179, %v765
    %v768 = vtanh.pop %v767
    %v769 = vsub.f32 1.0, %v755
    %771 = vrot.lane.b32.xlu0 %v768, 96
    %v772 = vpop.permute.xlu0 %771
    %v774 = vmul.f32 %v769, %v772
    %v775 = vrot.slane %v499, 6
    %v777 = vmul.f32 %v755, %v775
    %v778 = vadd.f32 %v774, %v777
    %780 = vrot.lane.b32.xlu0 %v599, 96
    %v781 = vpop.permute.xlu0 %780
    %v782 = vsel %vm218, %v781, 0
    %784 = vmatprep.subr.mxu0 0.0
    %785 = vmatpush1.msra.mxu0 %v191
    %786 = vmatprep.subr.mxu0 0.0
    %787 = vmatpush1.msra.mxu0 %v192
    %788 = vmatprep.subr.mxu0 0.0
    %789 = vmatpush1.msra.mxu0 %v193
    %790 = vmatprep.subr.mxu0 0.0
    %791 = vmatpush1.msra.mxu0 %v194
    %792 = vmatprep.subr.mxu0 0.0
    %793 = vmatpush1.msra.mxu0 0.0
    %794 = vmatprep.subr.mxu0 0.0
    %795 = vmatpush1.msra.mxu0 0.0
    %796 = vmatprep.subr.mxu0 0.0
    %797 = vmatpush1.msra.mxu0 0.0
    %798 = vmatprep.subr.mxu0 0.0
    %799 = vmatpush1.msra.mxu0 0.0
    %800 = vmatprep.subr.mxu0 0.0
    %801 = vmatpush1.msra.mxu0 0.0
    %802 = vmatprep.subr.mxu0 0.0
    %803 = vmatpush1.msra.mxu0 0.0
    %804 = vmatprep.subr.mxu0 0.0
    %805 = vmatpush1.msra.mxu0 0.0
    %806 = vmatprep.subr.mxu0 0.0
    %807 = vmatpush1.msra.mxu0 0.0
    %808 = vmatprep.subr.mxu0 0.0
    %809 = vmatpush1.msra.mxu0 0.0
    %810 = vmatprep.subr.mxu0 0.0
    %811 = vmatpush1.msra.mxu0 0.0
    %812 = vmatprep.subr.mxu0 0.0
    %813 = vmatpush1.msra.mxu0 0.0
    %814 = vmatprep.subr.mxu0 0.0
    %815 = vmatpush1.msra.mxu0 0.0
    %816 = vmatprep.subr.mxu0 0.0
    %817 = vmatpush1.msra.mxu0 0.0
    %818 = vmatprep.subr.mxu0 0.0
    %819 = vmatpush1.msra.mxu0 0.0
    %820 = vmatprep.subr.mxu0 0.0
    %821 = vmatpush1.msra.mxu0 0.0
    %822 = vmatprep.subr.mxu0 0.0
    %823 = vmatpush1.msra.mxu0 0.0
    %824 = vmatprep.subr.mxu0 0.0
    %825 = vmatpush1.msra.mxu0 0.0
    %826 = vmatprep.subr.mxu0 0.0
    %827 = vmatpush1.msra.mxu0 0.0
    %828 = vmatprep.subr.mxu0 0.0
    %829 = vmatpush1.msra.mxu0 0.0
    %830 = vmatprep.subr.mxu0 0.0
    %831 = vmatpush1.msra.mxu0 0.0
    %832 = vmatprep.subr.mxu0 0.0
    %833 = vmatpush1.msra.mxu0 0.0
    %834 = vmatprep.subr.mxu0 0.0
    %835 = vmatpush1.msra.mxu0 0.0
    %836 = vmatprep.subr.mxu0 0.0
    %837 = vmatpush1.msra.mxu0 0.0
    %838 = vmatprep.subr.mxu0 0.0
    %839 = vmatpush1.msra.mxu0 0.0
    %840 = vmatprep.subr.mxu0 0.0
    %841 = vmatpush1.msra.mxu0 0.0
    %842 = vmatprep.subr.mxu0 0.0
    %843 = vmatpush1.msra.mxu0 0.0
    %844 = vmatprep.subr.mxu0 0.0
    %845 = vmatpush1.msra.mxu0 0.0
    %846 = vmatprep.subr.mxu0 0.0
    %847 = vmatpush1.msra.mxu0 0.0
    %848 = vmatprep.mubr.f32.mxu0 0.0
    %849 = vmatmul.mubr.f32.gmra.mrb[0].mxu0 %v782
    %v850 = vpop.f32.mrb[0].mxu0
    %v851 = vadd.f32 0.0, %v850
    %v852 = vpop.f32.mrb[0].mxu0
    %853 = vdwg.mxu0
    %v854 = vadd.f32 %v673, %v851
    %v855 = vxor.u32 %v854, 2147483648
    %v856 = vmul.f32 %v855, 1.442695
    %v857 = vpow.pop %v856
    %v858 = vadd.f32 %v857, 1.0
    %v859 = vrcp.pop %v858
    %v860 = vmul.f32 1.0, %v859
    %v861 = vadd.f32 %v851, %v578
    %863 = vrot.lane.b32.xlu0 %v861, 64
    %v864 = vpop.permute.xlu0 %863
    %v866 = vmul.f32 %v860, %v864
    %868 = vrot.lane.b32.xlu0 %v866, 64
    %v869 = vpop.permute.xlu0 %868
    %v871 = vadd.f32 %v673, %v869
    %v872 = vtanh.pop %v871
    %v873 = vsub.f32 1.0, %v860
    %875 = vrot.lane.b32.xlu0 %v872, 96
    %v876 = vpop.permute.xlu0 %875
    %v878 = vmul.f32 %v873, %v876
    %v879 = vmul.f32 %v860, %v599
    %v880 = vadd.f32 %v878, %v879
    %v882 = vrot.slane %v778, 4
    %883 = vrot.lane.b32.xlu0 %v882, 96
    %v884 = vpop.permute.xlu0 %883
    %v885 = vsel %vm218, %v884, 0
    %887 = vmatprep.subr.mxu0 0.0
    %888 = vmatpush1.msra.mxu0 %v195
    %889 = vmatprep.subr.mxu0 0.0
    %890 = vmatpush1.msra.mxu0 %v196
    %891 = vmatprep.subr.mxu0 0.0
    %892 = vmatpush1.msra.mxu0 %v197
    %893 = vmatprep.subr.mxu0 0.0
    %894 = vmatpush1.msra.mxu0 %v198
    %895 = vmatprep.subr.mxu0 0.0
    %896 = vmatpush1.msra.mxu0 0.0
    %897 = vmatprep.subr.mxu0 0.0
    %898 = vmatpush1.msra.mxu0 0.0
    %899 = vmatprep.subr.mxu0 0.0
    %900 = vmatpush1.msra.mxu0 0.0
    %901 = vmatprep.subr.mxu0 0.0
    %902 = vmatpush1.msra.mxu0 0.0
    %903 = vmatprep.subr.mxu0 0.0
    %904 = vmatpush1.msra.mxu0 0.0
    %905 = vmatprep.subr.mxu0 0.0
    %906 = vmatpush1.msra.mxu0 0.0
    %907 = vmatprep.subr.mxu0 0.0
    %908 = vmatpush1.msra.mxu0 0.0
    %909 = vmatprep.subr.mxu0 0.0
    %910 = vmatpush1.msra.mxu0 0.0
    %911 = vmatprep.subr.mxu0 0.0
    %912 = vmatpush1.msra.mxu0 0.0
    %913 = vmatprep.subr.mxu0 0.0
    %914 = vmatpush1.msra.mxu0 0.0
    %915 = vmatprep.subr.mxu0 0.0
    %916 = vmatpush1.msra.mxu0 0.0
    %917 = vmatprep.subr.mxu0 0.0
    %918 = vmatpush1.msra.mxu0 0.0
    %919 = vmatprep.subr.mxu0 0.0
    %920 = vmatpush1.msra.mxu0 0.0
    %921 = vmatprep.subr.mxu0 0.0
    %922 = vmatpush1.msra.mxu0 0.0
    %923 = vmatprep.subr.mxu0 0.0
    %924 = vmatpush1.msra.mxu0 0.0
    %925 = vmatprep.subr.mxu0 0.0
    %926 = vmatpush1.msra.mxu0 0.0
    %927 = vmatprep.subr.mxu0 0.0
    %928 = vmatpush1.msra.mxu0 0.0
    %929 = vmatprep.subr.mxu0 0.0
    %930 = vmatpush1.msra.mxu0 0.0
    %931 = vmatprep.subr.mxu0 0.0
    %932 = vmatpush1.msra.mxu0 0.0
    %933 = vmatprep.subr.mxu0 0.0
    %934 = vmatpush1.msra.mxu0 0.0
    %935 = vmatprep.subr.mxu0 0.0
    %936 = vmatpush1.msra.mxu0 0.0
    %937 = vmatprep.subr.mxu0 0.0
    %938 = vmatpush1.msra.mxu0 0.0
    %939 = vmatprep.subr.mxu0 0.0
    %940 = vmatpush1.msra.mxu0 0.0
    %941 = vmatprep.subr.mxu0 0.0
    %942 = vmatpush1.msra.mxu0 0.0
    %943 = vmatprep.subr.mxu0 0.0
    %944 = vmatpush1.msra.mxu0 0.0
    %945 = vmatprep.subr.mxu0 0.0
    %946 = vmatpush1.msra.mxu0 0.0
    %947 = vmatprep.subr.mxu0 0.0
    %948 = vmatpush1.msra.mxu0 0.0
    %949 = vmatprep.subr.mxu0 0.0
    %950 = vmatpush1.msra.mxu0 0.0
    %951 = vmatprep.mubr.f32.mxu0 0.0
    %952 = vmatmul.mubr.f32.gmra.mrb[0].mxu0 %v885
    %v953 = vpop.f32.mrb[0].mxu0
    %v954 = vadd.f32 %v216, %v953
    %v955 = vpop.f32.mrb[0].mxu0
    %956 = vdwg.mxu0
    %957 = vmatprep.subr.mxu0 0.0
    %958 = vmatpush1.msra.mxu0 %v187
    %959 = vmatprep.subr.mxu0 0.0
    %960 = vmatpush1.msra.mxu0 %v188
    %961 = vmatprep.subr.mxu0 0.0
    %962 = vmatpush1.msra.mxu0 %v189
    %963 = vmatprep.subr.mxu0 0.0
    %964 = vmatpush1.msra.mxu0 %v190
    %965 = vmatprep.subr.mxu0 0.0
    %966 = vmatpush1.msra.mxu0 0.0
    %967 = vmatprep.subr.mxu0 0.0
    %968 = vmatpush1.msra.mxu0 0.0
    %969 = vmatprep.subr.mxu0 0.0
    %970 = vmatpush1.msra.mxu0 0.0
    %971 = vmatprep.subr.mxu0 0.0
    %972 = vmatpush1.msra.mxu0 0.0
    %973 = vmatprep.subr.mxu0 0.0
    %974 = vmatpush1.msra.mxu0 0.0
    %975 = vmatprep.subr.mxu0 0.0
    %976 = vmatpush1.msra.mxu0 0.0
    %977 = vmatprep.subr.mxu0 0.0
    %978 = vmatpush1.msra.mxu0 0.0
    %979 = vmatprep.subr.mxu0 0.0
    %980 = vmatpush1.msra.mxu0 0.0
    %981 = vmatprep.subr.mxu0 0.0
    %982 = vmatpush1.msra.mxu0 0.0
    %983 = vmatprep.subr.mxu0 0.0
    %984 = vmatpush1.msra.mxu0 0.0
    %985 = vmatprep.subr.mxu0 0.0
    %986 = vmatpush1.msra.mxu0 0.0
    %987 = vmatprep.subr.mxu0 0.0
    %988 = vmatpush1.msra.mxu0 0.0
    %989 = vmatprep.subr.mxu0 0.0
    %990 = vmatpush1.msra.mxu0 0.0
    %991 = vmatprep.subr.mxu0 0.0
    %992 = vmatpush1.msra.mxu0 0.0
    %993 = vmatprep.subr.mxu0 0.0
    %994 = vmatpush1.msra.mxu0 0.0
    %995 = vmatprep.subr.mxu0 0.0
    %996 = vmatpush1.msra.mxu0 0.0
    %997 = vmatprep.subr.mxu0 0.0
    %998 = vmatpush1.msra.mxu0 0.0
    %999 = vmatprep.subr.mxu0 0.0
    %1000 = vmatpush1.msra.mxu0 0.0
    %1001 = vmatprep.subr.mxu0 0.0
    %1002 = vmatpush1.msra.mxu0 0.0
    %1003 = vmatprep.subr.mxu0 0.0
    %1004 = vmatpush1.msra.mxu0 0.0
    %1005 = vmatprep.subr.mxu0 0.0
    %1006 = vmatpush1.msra.mxu0 0.0
    %1007 = vmatprep.subr.mxu0 0.0
    %1008 = vmatpush1.msra.mxu0 0.0
    %1009 = vmatprep.subr.mxu0 0.0
    %1010 = vmatpush1.msra.mxu0 0.0
    %1011 = vmatprep.subr.mxu0 0.0
    %1012 = vmatpush1.msra.mxu0 0.0
    %1013 = vmatprep.subr.mxu0 0.0
    %1014 = vmatpush1.msra.mxu0 0.0
    %1015 = vmatprep.subr.mxu0 0.0
    %1016 = vmatpush1.msra.mxu0 0.0
    %1017 = vmatprep.subr.mxu0 0.0
    %1018 = vmatpush1.msra.mxu0 0.0
    %1019 = vmatprep.subr.mxu0 0.0
    %1020 = vmatpush1.msra.mxu0 0.0
    %1021 = vmatprep.mubr.f32.mxu0 0.0
    %1022 = vmatmul.mubr.f32.gmra.mrb[0].mxu0 %v885
    %v1023 = vpop.f32.mrb[0].mxu0
    %v1024 = vadd.f32 0.0, %v1023
    %v1025 = vpop.f32.mrb[0].mxu0
    %1026 = vdwg.mxu0
    %v1028 = vrot.slane %v1024, 2
    %v1030 = vadd.f32 %v179, %v1028
    %v1031 = vxor.u32 %v1030, 2147483648
    %v1032 = vmul.f32 %v1031, 1.442695
    %v1033 = vpow.pop %v1032
    %v1034 = vadd.f32 %v1033, 1.0
    %v1035 = vrcp.pop %v1034
    %v1036 = vmul.f32 1.0, %v1035
    %v1037 = vadd.f32 %v1024, %v300
    %v1039 = vrot.slane %v1037, 2
    %1040 = vrot.lane.b32.xlu0 %v1039, 64
    %v1041 = vpop.permute.xlu0 %1040
    %v1043 = vmul.f32 %v1036, %v1041
    %1045 = vrot.lane.b32.xlu0 %v1043, 64
    %v1046 = vpop.permute.xlu0 %1045
    %v1048 = vadd.f32 %v179, %v1046
    %v1049 = vtanh.pop %v1048
    %v1050 = vsub.f32 1.0, %v1036
    %1052 = vrot.lane.b32.xlu0 %v1049, 96
    %v1053 = vpop.permute.xlu0 %1052
    %v1055 = vmul.f32 %v1050, %v1053
    %v1056 = vrot.slane %v778, 6
    %v1058 = vmul.f32 %v1036, %v1056
    %v1059 = vadd.f32 %v1055, %v1058
    %1061 = vrot.lane.b32.xlu0 %v880, 96
    %v1062 = vpop.permute.xlu0 %1061
    %v1063 = vsel %vm218, %v1062, 0
    %1065 = vmatprep.subr.mxu0 0.0
    %1066 = vmatpush1.msra.mxu0 %v191
    %1067 = vmatprep.subr.mxu0 0.0
    %1068 = vmatpush1.msra.mxu0 %v192
    %1069 = vmatprep.subr.mxu0 0.0
    %1070 = vmatpush1.msra.mxu0 %v193
    %1071 = vmatprep.subr.mxu0 0.0
    %1072 = vmatpush1.msra.mxu0 %v194
    %1073 = vmatprep.subr.mxu0 0.0
    %1074 = vmatpush1.msra.mxu0 0.0
    %1075 = vmatprep.subr.mxu0 0.0
    %1076 = vmatpush1.msra.mxu0 0.0
    %1077 = vmatprep.subr.mxu0 0.0
    %1078 = vmatpush1.msra.mxu0 0.0
    %1079 = vmatprep.subr.mxu0 0.0
    %1080 = vmatpush1.msra.mxu0 0.0
    %1081 = vmatprep.subr.mxu0 0.0
    %1082 = vmatpush1.msra.mxu0 0.0
    %1083 = vmatprep.subr.mxu0 0.0
    %1084 = vmatpush1.msra.mxu0 0.0
    %1085 = vmatprep.subr.mxu0 0.0
    %1086 = vmatpush1.msra.mxu0 0.0
    %1087 = vmatprep.subr.mxu0 0.0
    %1088 = vmatpush1.msra.mxu0 0.0
    %1089 = vmatprep.subr.mxu0 0.0
    %1090 = vmatpush1.msra.mxu0 0.0
    %1091 = vmatprep.subr.mxu0 0.0
    %1092 = vmatpush1.msra.mxu0 0.0
    %1093 = vmatprep.subr.mxu0 0.0
    %1094 = vmatpush1.msra.mxu0 0.0
    %1095 = vmatprep.subr.mxu0 0.0
    %1096 = vmatpush1.msra.mxu0 0.0
    %1097 = vmatprep.subr.mxu0 0.0
    %1098 = vmatpush1.msra.mxu0 0.0
    %1099 = vmatprep.subr.mxu0 0.0
    %1100 = vmatpush1.msra.mxu0 0.0
    %1101 = vmatprep.subr.mxu0 0.0
    %1102 = vmatpush1.msra.mxu0 0.0
    %1103 = vmatprep.subr.mxu0 0.0
    %1104 = vmatpush1.msra.mxu0 0.0
    %1105 = vmatprep.subr.mxu0 0.0
    %1106 = vmatpush1.msra.mxu0 0.0
    %1107 = vmatprep.subr.mxu0 0.0
    %1108 = vmatpush1.msra.mxu0 0.0
    %1109 = vmatprep.subr.mxu0 0.0
    %1110 = vmatpush1.msra.mxu0 0.0
    %1111 = vmatprep.subr.mxu0 0.0
    %1112 = vmatpush1.msra.mxu0 0.0
    %1113 = vmatprep.subr.mxu0 0.0
    %1114 = vmatpush1.msra.mxu0 0.0
    %1115 = vmatprep.subr.mxu0 0.0
    %1116 = vmatpush1.msra.mxu0 0.0
    %1117 = vmatprep.subr.mxu0 0.0
    %1118 = vmatpush1.msra.mxu0 0.0
    %1119 = vmatprep.subr.mxu0 0.0
    %1120 = vmatpush1.msra.mxu0 0.0
    %1121 = vmatprep.subr.mxu0 0.0
    %1122 = vmatpush1.msra.mxu0 0.0
    %1123 = vmatprep.subr.mxu0 0.0
    %1124 = vmatpush1.msra.mxu0 0.0
    %1125 = vmatprep.subr.mxu0 0.0
    %1126 = vmatpush1.msra.mxu0 0.0
    %1127 = vmatprep.subr.mxu0 0.0
    %1128 = vmatpush1.msra.mxu0 0.0
    %1129 = vmatprep.mubr.f32.mxu0 0.0
    %1130 = vmatmul.mubr.f32.gmra.mrb[0].mxu0 %v1063
    %v1131 = vpop.f32.mrb[0].mxu0
    %v1132 = vadd.f32 0.0, %v1131
    %v1133 = vpop.f32.mrb[0].mxu0
    %1134 = vdwg.mxu0
    %v1135 = vadd.f32 %v954, %v1132
    %v1136 = vxor.u32 %v1135, 2147483648
    %v1137 = vmul.f32 %v1136, 1.442695
    %v1138 = vpow.pop %v1137
    %v1139 = vadd.f32 %v1138, 1.0
    %v1140 = vrcp.pop %v1139
    %v1141 = vmul.f32 1.0, %v1140
    %v1142 = vadd.f32 %v1132, %v578
    %1144 = vrot.lane.b32.xlu0 %v1142, 64
    %v1145 = vpop.permute.xlu0 %1144
    %v1147 = vmul.f32 %v1141, %v1145
    %1149 = vrot.lane.b32.xlu0 %v1147, 64
    %v1150 = vpop.permute.xlu0 %1149
    %v1152 = vadd.f32 %v954, %v1150
    %v1153 = vtanh.pop %v1152
    %v1154 = vsub.f32 1.0, %v1141
    %1156 = vrot.lane.b32.xlu0 %v1153, 96
    %v1157 = vpop.permute.xlu0 %1156
    %v1159 = vmul.f32 %v1154, %v1157
    %v1160 = vmul.f32 %v1141, %v880
    %v1161 = vadd.f32 %v1159, %v1160
    %v1163 = vrot.slane %v1059, 6
    %1164 = vrot.lane.b32.xlu0 %v1163, 96
    %v1165 = vpop.permute.xlu0 %1164
    %v1166 = vsel %vm218, %v1165, 0
    %1168 = vmatprep.subr.mxu0 0.0
    %1169 = vmatpush1.msra.mxu0 %v195
    %1170 = vmatprep.subr.mxu0 0.0
    %1171 = vmatpush1.msra.mxu0 %v196
    %1172 = vmatprep.subr.mxu0 0.0
    %1173 = vmatpush1.msra.mxu0 %v197
    %1174 = vmatprep.subr.mxu0 0.0
    %1175 = vmatpush1.msra.mxu0 %v198
    %1176 = vmatprep.subr.mxu0 0.0
    %1177 = vmatpush1.msra.mxu0 0.0
    %1178 = vmatprep.subr.mxu0 0.0
    %1179 = vmatpush1.msra.mxu0 0.0
    %1180 = vmatprep.subr.mxu0 0.0
    %1181 = vmatpush1.msra.mxu0 0.0
    %1182 = vmatprep.subr.mxu0 0.0
    %1183 = vmatpush1.msra.mxu0 0.0
    %1184 = vmatprep.subr.mxu0 0.0
    %1185 = vmatpush1.msra.mxu0 0.0
    %1186 = vmatprep.subr.mxu0 0.0
    %1187 = vmatpush1.msra.mxu0 0.0
    %1188 = vmatprep.subr.mxu0 0.0
    %1189 = vmatpush1.msra.mxu0 0.0
    %1190 = vmatprep.subr.mxu0 0.0
    %1191 = vmatpush1.msra.mxu0 0.0
    %1192 = vmatprep.subr.mxu0 0.0
    %1193 = vmatpush1.msra.mxu0 0.0
    %1194 = vmatprep.subr.mxu0 0.0
    %1195 = vmatpush1.msra.mxu0 0.0
    %1196 = vmatprep.subr.mxu0 0.0
    %1197 = vmatpush1.msra.mxu0 0.0
    %1198 = vmatprep.subr.mxu0 0.0
    %1199 = vmatpush1.msra.mxu0 0.0
    %1200 = vmatprep.subr.mxu0 0.0
    %1201 = vmatpush1.msra.mxu0 0.0
    %1202 = vmatprep.subr.mxu0 0.0
    %1203 = vmatpush1.msra.mxu0 0.0
    %1204 = vmatprep.subr.mxu0 0.0
    %1205 = vmatpush1.msra.mxu0 0.0
    %1206 = vmatprep.subr.mxu0 0.0
    %1207 = vmatpush1.msra.mxu0 0.0
    %1208 = vmatprep.subr.mxu0 0.0
    %1209 = vmatpush1.msra.mxu0 0.0
    %1210 = vmatprep.subr.mxu0 0.0
    %1211 = vmatpush1.msra.mxu0 0.0
    %1212 = vmatprep.subr.mxu0 0.0
    %1213 = vmatpush1.msra.mxu0 0.0
    %1214 = vmatprep.subr.mxu0 0.0
    %1215 = vmatpush1.msra.mxu0 0.0
    %1216 = vmatprep.subr.mxu0 0.0
    %1217 = vmatpush1.msra.mxu0 0.0
    %1218 = vmatprep.subr.mxu0 0.0
    %1219 = vmatpush1.msra.mxu0 0.0
    %1220 = vmatprep.subr.mxu0 0.0
    %1221 = vmatpush1.msra.mxu0 0.0
    %1222 = vmatprep.subr.mxu0 0.0
    %1223 = vmatpush1.msra.mxu0 0.0
    %1224 = vmatprep.subr.mxu0 0.0
    %1225 = vmatpush1.msra.mxu0 0.0
    %1226 = vmatprep.subr.mxu0 0.0
    %1227 = vmatpush1.msra.mxu0 0.0
    %1228 = vmatprep.subr.mxu0 0.0
    %1229 = vmatpush1.msra.mxu0 0.0
    %1230 = vmatprep.subr.mxu0 0.0
    %1231 = vmatpush1.msra.mxu0 0.0
    %1232 = vmatprep.mubr.f32.mxu0 0.0
    %1233 = vmatmul.mubr.f32.gmra.mrb[0].mxu0 %v1166
    %v1234 = vpop.f32.mrb[0].mxu0
    %v1235 = vadd.f32 %v216, %v1234
    %v1236 = vpop.f32.mrb[0].mxu0
    %1237 = vdwg.mxu0
    %1238 = vmatprep.subr.mxu0 0.0
    %1239 = vmatpush1.msra.mxu0 %v187
    %1240 = vmatprep.subr.mxu0 0.0
    %1241 = vmatpush1.msra.mxu0 %v188
    %1242 = vmatprep.subr.mxu0 0.0
    %1243 = vmatpush1.msra.mxu0 %v189
    %1244 = vmatprep.subr.mxu0 0.0
    %1245 = vmatpush1.msra.mxu0 %v190
    %1246 = vmatprep.subr.mxu0 0.0
    %1247 = vmatpush1.msra.mxu0 0.0
    %1248 = vmatprep.subr.mxu0 0.0
    %1249 = vmatpush1.msra.mxu0 0.0
    %1250 = vmatprep.subr.mxu0 0.0
    %1251 = vmatpush1.msra.mxu0 0.0
    %1252 = vmatprep.subr.mxu0 0.0
    %1253 = vmatpush1.msra.mxu0 0.0
    %1254 = vmatprep.subr.mxu0 0.0
    %1255 = vmatpush1.msra.mxu0 0.0
    %1256 = vmatprep.subr.mxu0 0.0
    %1257 = vmatpush1.msra.mxu0 0.0
    %1258 = vmatprep.subr.mxu0 0.0
    %1259 = vmatpush1.msra.mxu0 0.0
    %1260 = vmatprep.subr.mxu0 0.0
    %1261 = vmatpush1.msra.mxu0 0.0
    %1262 = vmatprep.subr.mxu0 0.0
    %1263 = vmatpush1.msra.mxu0 0.0
    %1264 = vmatprep.subr.mxu0 0.0
    %1265 = vmatpush1.msra.mxu0 0.0
    %1266 = vmatprep.subr.mxu0 0.0
    %1267 = vmatpush1.msra.mxu0 0.0
    %1268 = vmatprep.subr.mxu0 0.0
    %1269 = vmatpush1.msra.mxu0 0.0
    %1270 = vmatprep.subr.mxu0 0.0
    %1271 = vmatpush1.msra.mxu0 0.0
    %1272 = vmatprep.subr.mxu0 0.0
    %1273 = vmatpush1.msra.mxu0 0.0
    %1274 = vmatprep.subr.mxu0 0.0
    %1275 = vmatpush1.msra.mxu0 0.0
    %1276 = vmatprep.subr.mxu0 0.0
    %1277 = vmatpush1.msra.mxu0 0.0
    %1278 = vmatprep.subr.mxu0 0.0
    %1279 = vmatpush1.msra.mxu0 0.0
    %1280 = vmatprep.subr.mxu0 0.0
    %1281 = vmatpush1.msra.mxu0 0.0
    %1282 = vmatprep.subr.mxu0 0.0
    %1283 = vmatpush1.msra.mxu0 0.0
    %1284 = vmatprep.subr.mxu0 0.0
    %1285 = vmatpush1.msra.mxu0 0.0
    %1286 = vmatprep.subr.mxu0 0.0
    %1287 = vmatpush1.msra.mxu0 0.0
    %1288 = vmatprep.subr.mxu0 0.0
    %1289 = vmatpush1.msra.mxu0 0.0
    %1290 = vmatprep.subr.mxu0 0.0
    %1291 = vmatpush1.msra.mxu0 0.0
    %1292 = vmatprep.subr.mxu0 0.0
    %1293 = vmatpush1.msra.mxu0 0.0
    %1294 = vmatprep.subr.mxu0 0.0
    %1295 = vmatpush1.msra.mxu0 0.0
    %1296 = vmatprep.subr.mxu0 0.0
    %1297 = vmatpush1.msra.mxu0 0.0
    %1298 = vmatprep.subr.mxu0 0.0
    %1299 = vmatpush1.msra.mxu0 0.0
    %1300 = vmatprep.subr.mxu0 0.0
    %1301 = vmatpush1.msra.mxu0 0.0
    %1302 = vmatprep.mubr.f32.mxu0 0.0
    %1303 = vmatmul.mubr.f32.gmra.mrb[0].mxu0 %v1166
    %v1304 = vpop.f32.mrb[0].mxu0
    %v1305 = vadd.f32 0.0, %v1304
    %v1306 = vpop.f32.mrb[0].mxu0
    %1307 = vdwg.mxu0
    %v1308 = vadd.f32 %v184, %v1305
    %v1309 = vxor.u32 %v1308, 2147483648
    %v1310 = vmul.f32 %v1309, 1.442695
    %v1311 = vpow.pop %v1310
    %v1312 = vadd.f32 %v1311, 1.0
    %v1313 = vrcp.pop %v1312
    %v1314 = vmul.f32 1.0, %v1313
    %v1315 = vadd.f32 %v1305, %v300
    %1317 = vrot.lane.b32.xlu0 %v1315, 64
    %v1318 = vpop.permute.xlu0 %1317
    %v1320 = vmul.f32 %v1314, %v1318
    %1322 = vrot.lane.b32.xlu0 %v1320, 64
    %v1323 = vpop.permute.xlu0 %1322
    %v1325 = vadd.f32 %v184, %v1323
    %v1326 = vtanh.pop %v1325
    %v1327 = vsub.f32 1.0, %v1314
    %1329 = vrot.lane.b32.xlu0 %v1326, 96
    %v1330 = vpop.permute.xlu0 %1329
    %v1332 = vmul.f32 %v1327, %v1330
    %v1334 = vmul.f32 %v1314, %v1163
    %v1335 = vadd.f32 %v1332, %v1334
    %1337 = vrot.lane.b32.xlu0 %v1161, 96
    %v1338 = vpop.permute.xlu0 %1337
    %v1339 = vsel %vm218, %v1338, 0
    %1341 = vmatprep.subr.mxu0 0.0
    %1342 = vmatpush1.msra.mxu0 %v191
    %1343 = vmatprep.subr.mxu0 0.0
    %1344 = vmatpush1.msra.mxu0 %v192
    %1345 = vmatprep.subr.mxu0 0.0
    %1346 = vmatpush1.msra.mxu0 %v193
    %1347 = vmatprep.subr.mxu0 0.0
    %1348 = vmatpush1.msra.mxu0 %v194
    %1349 = vmatprep.subr.mxu0 0.0
    %1350 = vmatpush1.msra.mxu0 0.0
    %1351 = vmatprep.subr.mxu0 0.0
    %1352 = vmatpush1.msra.mxu0 0.0
    %1353 = vmatprep.subr.mxu0 0.0
    %1354 = vmatpush1.msra.mxu0 0.0
    %1355 = vmatprep.subr.mxu0 0.0
    %1356 = vmatpush1.msra.mxu0 0.0
    %1357 = vmatprep.subr.mxu0 0.0
    %1358 = vmatpush1.msra.mxu0 0.0
    %1359 = vmatprep.subr.mxu0 0.0
    %1360 = vmatpush1.msra.mxu0 0.0
    %1361 = vmatprep.subr.mxu0 0.0
    %1362 = vmatpush1.msra.mxu0 0.0
    %1363 = vmatprep.subr.mxu0 0.0
    %1364 = vmatpush1.msra.mxu0 0.0
    %1365 = vmatprep.subr.mxu0 0.0
    %1366 = vmatpush1.msra.mxu0 0.0
    %1367 = vmatprep.subr.mxu0 0.0
    %1368 = vmatpush1.msra.mxu0 0.0
    %1369 = vmatprep.subr.mxu0 0.0
    %1370 = vmatpush1.msra.mxu0 0.0
    %1371 = vmatprep.subr.mxu0 0.0
    %1372 = vmatpush1.msra.mxu0 0.0
    %1373 = vmatprep.subr.mxu0 0.0
    %1374 = vmatpush1.msra.mxu0 0.0
    %1375 = vmatprep.subr.mxu0 0.0
    %1376 = vmatpush1.msra.mxu0 0.0
    %1377 = vmatprep.subr.mxu0 0.0
    %1378 = vmatpush1.msra.mxu0 0.0
    %1379 = vmatprep.subr.mxu0 0.0
    %1380 = vmatpush1.msra.mxu0 0.0
    %1381 = vmatprep.subr.mxu0 0.0
    %1382 = vmatpush1.msra.mxu0 0.0
    %1383 = vmatprep.subr.mxu0 0.0
    %1384 = vmatpush1.msra.mxu0 0.0
    %1385 = vmatprep.subr.mxu0 0.0
    %1386 = vmatpush1.msra.mxu0 0.0
    %1387 = vmatprep.subr.mxu0 0.0
    %1388 = vmatpush1.msra.mxu0 0.0
    %1389 = vmatprep.subr.mxu0 0.0
    %1390 = vmatpush1.msra.mxu0 0.0
    %1391 = vmatprep.subr.mxu0 0.0
    %1392 = vmatpush1.msra.mxu0 0.0
    %1393 = vmatprep.subr.mxu0 0.0
    %1394 = vmatpush1.msra.mxu0 0.0
    %1395 = vmatprep.subr.mxu0 0.0
    %1396 = vmatpush1.msra.mxu0 0.0
    %1397 = vmatprep.subr.mxu0 0.0
    %1398 = vmatpush1.msra.mxu0 0.0
    %1399 = vmatprep.subr.mxu0 0.0
    %1400 = vmatpush1.msra.mxu0 0.0
    %1401 = vmatprep.subr.mxu0 0.0
    %1402 = vmatpush1.msra.mxu0 0.0
    %1403 = vmatprep.subr.mxu0 0.0
    %1404 = vmatpush1.msra.mxu0 0.0
    %1405 = vmatprep.mubr.f32.mxu0 0.0
    %1406 = vmatmul.mubr.f32.gmra.mrb[0].mxu0 %v1339
    %v1407 = vpop.f32.mrb[0].mxu0
    %v1408 = vadd.f32 0.0, %v1407
    %v1409 = vpop.f32.mrb[0].mxu0
    %1410 = vdwg.mxu0
    %v1411 = vadd.f32 %v1235, %v1408
    %v1412 = vxor.u32 %v1411, 2147483648
    %v1413 = vmul.f32 %v1412, 1.442695
    %v1414 = vpow.pop %v1413
    %v1415 = vadd.f32 %v1414, 1.0
    %v1416 = vrcp.pop %v1415
    %v1417 = vmul.f32 1.0, %v1416
    %v1418 = vadd.f32 %v1408, %v578
    %1420 = vrot.lane.b32.xlu0 %v1418, 64
    %v1421 = vpop.permute.xlu0 %1420
    %v1423 = vmul.f32 %v1417, %v1421
    %1425 = vrot.lane.b32.xlu0 %v1423, 64
    %v1426 = vpop.permute.xlu0 %1425
    %v1428 = vadd.f32 %v1235, %v1426
    %v1429 = vtanh.pop %v1428
    %v1430 = vsub.f32 1.0, %v1417
    %1432 = vrot.lane.b32.xlu0 %v1429, 96
    %v1433 = vpop.permute.xlu0 %1432
    %v1435 = vmul.f32 %v1430, %v1433
    %v1436 = vmul.f32 %v1417, %v1161
    %v1437 = vadd.f32 %v1435, %v1436
    %1439 = vrot.lane.b32.xlu0 %v1335, 96
    %v1440 = vpop.permute.xlu0 %1439
    %v1441 = vsel %vm218, %v1440, 0
    %1443 = vmatprep.subr.mxu0 0.0
    %1444 = vmatpush1.msra.mxu0 %v195
    %1445 = vmatprep.subr.mxu0 0.0
    %1446 = vmatpush1.msra.mxu0 %v196
    %1447 = vmatprep.subr.mxu0 0.0
    %1448 = vmatpush1.msra.mxu0 %v197
    %1449 = vmatprep.subr.mxu0 0.0
    %1450 = vmatpush1.msra.mxu0 %v198
    %1451 = vmatprep.subr.mxu0 0.0
    %1452 = vmatpush1.msra.mxu0 0.0
    %1453 = vmatprep.subr.mxu0 0.0
    %1454 = vmatpush1.msra.mxu0 0.0
    %1455 = vmatprep.subr.mxu0 0.0
    %1456 = vmatpush1.msra.mxu0 0.0
    %1457 = vmatprep.subr.mxu0 0.0
    %1458 = vmatpush1.msra.mxu0 0.0
    %1459 = vmatprep.subr.mxu0 0.0
    %1460 = vmatpush1.msra.mxu0 0.0
    %1461 = vmatprep.subr.mxu0 0.0
    %1462 = vmatpush1.msra.mxu0 0.0
    %1463 = vmatprep.subr.mxu0 0.0
    %1464 = vmatpush1.msra.mxu0 0.0
    %1465 = vmatprep.subr.mxu0 0.0
    %1466 = vmatpush1.msra.mxu0 0.0
    %1467 = vmatprep.subr.mxu0 0.0
    %1468 = vmatpush1.msra.mxu0 0.0
    %1469 = vmatprep.subr.mxu0 0.0
    %1470 = vmatpush1.msra.mxu0 0.0
    %1471 = vmatprep.subr.mxu0 0.0
    %1472 = vmatpush1.msra.mxu0 0.0
    %1473 = vmatprep.subr.mxu0 0.0
    %1474 = vmatpush1.msra.mxu0 0.0
    %1475 = vmatprep.subr.mxu0 0.0
    %1476 = vmatpush1.msra.mxu0 0.0
    %1477 = vmatprep.subr.mxu0 0.0
    %1478 = vmatpush1.msra.mxu0 0.0
    %1479 = vmatprep.subr.mxu0 0.0
    %1480 = vmatpush1.msra.mxu0 0.0
    %1481 = vmatprep.subr.mxu0 0.0
    %1482 = vmatpush1.msra.mxu0 0.0
    %1483 = vmatprep.subr.mxu0 0.0
    %1484 = vmatpush1.msra.mxu0 0.0
    %1485 = vmatprep.subr.mxu0 0.0
    %1486 = vmatpush1.msra.mxu0 0.0
    %1487 = vmatprep.subr.mxu0 0.0
    %1488 = vmatpush1.msra.mxu0 0.0
    %1489 = vmatprep.subr.mxu0 0.0
    %1490 = vmatpush1.msra.mxu0 0.0
    %1491 = vmatprep.subr.mxu0 0.0
    %1492 = vmatpush1.msra.mxu0 0.0
    %1493 = vmatprep.subr.mxu0 0.0
    %1494 = vmatpush1.msra.mxu0 0.0
    %1495 = vmatprep.subr.mxu0 0.0
    %1496 = vmatpush1.msra.mxu0 0.0
    %1497 = vmatprep.subr.mxu0 0.0
    %1498 = vmatpush1.msra.mxu0 0.0
    %1499 = vmatprep.subr.mxu0 0.0
    %1500 = vmatpush1.msra.mxu0 0.0
    %1501 = vmatprep.subr.mxu0 0.0
    %1502 = vmatpush1.msra.mxu0 0.0
    %1503 = vmatprep.subr.mxu0 0.0
    %1504 = vmatpush1.msra.mxu0 0.0
    %1505 = vmatprep.subr.mxu0 0.0
    %1506 = vmatpush1.msra.mxu0 0.0
    %1507 = vmatprep.mubr.f32.mxu0 0.0
    %1508 = vmatmul.mubr.f32.gmra.mrb[0].mxu0 %v1441
    %v1509 = vpop.f32.mrb[0].mxu0
    %v1510 = vadd.f32 %v216, %v1509
    %v1511 = vpop.f32.mrb[0].mxu0
    %1512 = vdwg.mxu0
    %1513 = vmatprep.subr.mxu0 0.0
    %1514 = vmatpush1.msra.mxu0 %v187
    %1515 = vmatprep.subr.mxu0 0.0
    %1516 = vmatpush1.msra.mxu0 %v188
    %1517 = vmatprep.subr.mxu0 0.0
    %1518 = vmatpush1.msra.mxu0 %v189
    %1519 = vmatprep.subr.mxu0 0.0
    %1520 = vmatpush1.msra.mxu0 %v190
    %1521 = vmatprep.subr.mxu0 0.0
    %1522 = vmatpush1.msra.mxu0 0.0
    %1523 = vmatprep.subr.mxu0 0.0
    %1524 = vmatpush1.msra.mxu0 0.0
    %1525 = vmatprep.subr.mxu0 0.0
    %1526 = vmatpush1.msra.mxu0 0.0
    %1527 = vmatprep.subr.mxu0 0.0
    %1528 = vmatpush1.msra.mxu0 0.0
    %1529 = vmatprep.subr.mxu0 0.0
    %1530 = vmatpush1.msra.mxu0 0.0
    %1531 = vmatprep.subr.mxu0 0.0
    %1532 = vmatpush1.msra.mxu0 0.0
    %1533 = vmatprep.subr.mxu0 0.0
    %1534 = vmatpush1.msra.mxu0 0.0
    %1535 = vmatprep.subr.mxu0 0.0
    %1536 = vmatpush1.msra.mxu0 0.0
    %1537 = vmatprep.subr.mxu0 0.0
    %1538 = vmatpush1.msra.mxu0 0.0
    %1539 = vmatprep.subr.mxu0 0.0
    %1540 = vmatpush1.msra.mxu0 0.0
    %1541 = vmatprep.subr.mxu0 0.0
    %1542 = vmatpush1.msra.mxu0 0.0
    %1543 = vmatprep.subr.mxu0 0.0
    %1544 = vmatpush1.msra.mxu0 0.0
    %1545 = vmatprep.subr.mxu0 0.0
    %1546 = vmatpush1.msra.mxu0 0.0
    %1547 = vmatprep.subr.mxu0 0.0
    %1548 = vmatpush1.msra.mxu0 0.0
    %1549 = vmatprep.subr.mxu0 0.0
    %1550 = vmatpush1.msra.mxu0 0.0
    %1551 = vmatprep.subr.mxu0 0.0
    %1552 = vmatpush1.msra.mxu0 0.0
    %1553 = vmatprep.subr.mxu0 0.0
    %1554 = vmatpush1.msra.mxu0 0.0
    %1555 = vmatprep.subr.mxu0 0.0
    %1556 = vmatpush1.msra.mxu0 0.0
    %1557 = vmatprep.subr.mxu0 0.0
    %1558 = vmatpush1.msra.mxu0 0.0
    %1559 = vmatprep.subr.mxu0 0.0
    %1560 = vmatpush1.msra.mxu0 0.0
    %1561 = vmatprep.subr.mxu0 0.0
    %1562 = vmatpush1.msra.mxu0 0.0
    %1563 = vmatprep.subr.mxu0 0.0
    %1564 = vmatpush1.msra.mxu0 0.0
    %1565 = vmatprep.subr.mxu0 0.0
    %1566 = vmatpush1.msra.mxu0 0.0
    %1567 = vmatprep.subr.mxu0 0.0
    %1568 = vmatpush1.msra.mxu0 0.0
    %1569 = vmatprep.subr.mxu0 0.0
    %1570 = vmatpush1.msra.mxu0 0.0
    %1571 = vmatprep.subr.mxu0 0.0
    %1572 = vmatpush1.msra.mxu0 0.0
    %1573 = vmatprep.subr.mxu0 0.0
    %1574 = vmatpush1.msra.mxu0 0.0
    %1575 = vmatprep.subr.mxu0 0.0
    %1576 = vmatpush1.msra.mxu0 0.0
    %1577 = vmatprep.mubr.f32.mxu0 0.0
    %1578 = vmatmul.mubr.f32.gmra.mrb[0].mxu0 %v1441
    %v1579 = vpop.f32.mrb[0].mxu0
    %v1580 = vadd.f32 0.0, %v1579
    %v1581 = vpop.f32.mrb[0].mxu0
    %1582 = vdwg.mxu0
    %v1584 = vrot.slane %v1580, 6
    %v1586 = vadd.f32 %v184, %v1584
    %v1587 = vxor.u32 %v1586, 2147483648
    %v1588 = vmul.f32 %v1587, 1.442695
    %v1589 = vpow.pop %v1588
    %v1590 = vadd.f32 %v1589, 1.0
    %v1591 = vrcp.pop %v1590
    %v1592 = vmul.f32 1.0, %v1591
    %v1593 = vadd.f32 %v1580, %v300
    %v1595 = vrot.slane %v1593, 6
    %1596 = vrot.lane.b32.xlu0 %v1595, 64
    %v1597 = vpop.permute.xlu0 %1596
    %v1599 = vmul.f32 %v1592, %v1597
    %1601 = vrot.lane.b32.xlu0 %v1599, 64
    %v1602 = vpop.permute.xlu0 %1601
    %v1604 = vadd.f32 %v184, %v1602
    %v1605 = vtanh.pop %v1604
    %v1606 = vsub.f32 1.0, %v1592
    %1608 = vrot.lane.b32.xlu0 %v1605, 96
    %v1609 = vpop.permute.xlu0 %1608
    %v1611 = vmul.f32 %v1606, %v1609
    %v1612 = vrot.slane %v1335, 6
    %v1614 = vmul.f32 %v1592, %v1612
    %v1615 = vadd.f32 %v1611, %v1614
    %1617 = vrot.lane.b32.xlu0 %v1437, 96
    %v1618 = vpop.permute.xlu0 %1617
    %v1619 = vsel %vm218, %v1618, 0
    %1621 = vmatprep.subr.mxu0 0.0
    %1622 = vmatpush1.msra.mxu0 %v191
    %1623 = vmatprep.subr.mxu0 0.0
    %1624 = vmatpush1.msra.mxu0 %v192
    %1625 = vmatprep.subr.mxu0 0.0
    %1626 = vmatpush1.msra.mxu0 %v193
    %1627 = vmatprep.subr.mxu0 0.0
    %1628 = vmatpush1.msra.mxu0 %v194
    %1629 = vmatprep.subr.mxu0 0.0
    %1630 = vmatpush1.msra.mxu0 0.0
    %1631 = vmatprep.subr.mxu0 0.0
    %1632 = vmatpush1.msra.mxu0 0.0
    %1633 = vmatprep.subr.mxu0 0.0
    %1634 = vmatpush1.msra.mxu0 0.0
    %1635 = vmatprep.subr.mxu0 0.0
    %1636 = vmatpush1.msra.mxu0 0.0
    %1637 = vmatprep.subr.mxu0 0.0
    %1638 = vmatpush1.msra.mxu0 0.0
    %1639 = vmatprep.subr.mxu0 0.0
    %1640 = vmatpush1.msra.mxu0 0.0
    %1641 = vmatprep.subr.mxu0 0.0
    %1642 = vmatpush1.msra.mxu0 0.0
    %1643 = vmatprep.subr.mxu0 0.0
    %1644 = vmatpush1.msra.mxu0 0.0
    %1645 = vmatprep.subr.mxu0 0.0
    %1646 = vmatpush1.msra.mxu0 0.0
    %1647 = vmatprep.subr.mxu0 0.0
    %1648 = vmatpush1.msra.mxu0 0.0
    %1649 = vmatprep.subr.mxu0 0.0
    %1650 = vmatpush1.msra.mxu0 0.0
    %1651 = vmatprep.subr.mxu0 0.0
    %1652 = vmatpush1.msra.mxu0 0.0
    %1653 = vmatprep.subr.mxu0 0.0
    %1654 = vmatpush1.msra.mxu0 0.0
    %1655 = vmatprep.subr.mxu0 0.0
    %1656 = vmatpush1.msra.mxu0 0.0
    %1657 = vmatprep.subr.mxu0 0.0
    %1658 = vmatpush1.msra.mxu0 0.0
    %1659 = vmatprep.subr.mxu0 0.0
    %1660 = vmatpush1.msra.mxu0 0.0
    %1661 = vmatprep.subr.mxu0 0.0
    %1662 = vmatpush1.msra.mxu0 0.0
    %1663 = vmatprep.subr.mxu0 0.0
    %1664 = vmatpush1.msra.mxu0 0.0
    %1665 = vmatprep.subr.mxu0 0.0
    %1666 = vmatpush1.msra.mxu0 0.0
    %1667 = vmatprep.subr.mxu0 0.0
    %1668 = vmatpush1.msra.mxu0 0.0
    %1669 = vmatprep.subr.mxu0 0.0
    %1670 = vmatpush1.msra.mxu0 0.0
    %1671 = vmatprep.subr.mxu0 0.0
    %1672 = vmatpush1.msra.mxu0 0.0
    %1673 = vmatprep.subr.mxu0 0.0
    %1674 = vmatpush1.msra.mxu0 0.0
    %1675 = vmatprep.subr.mxu0 0.0
    %1676 = vmatpush1.msra.mxu0 0.0
    %1677 = vmatprep.subr.mxu0 0.0
    %1678 = vmatpush1.msra.mxu0 0.0
    %1679 = vmatprep.subr.mxu0 0.0
    %1680 = vmatpush1.msra.mxu0 0.0
    %1681 = vmatprep.subr.mxu0 0.0
    %1682 = vmatpush1.msra.mxu0 0.0
    %1683 = vmatprep.subr.mxu0 0.0
    %1684 = vmatpush1.msra.mxu0 0.0
    %1685 = vmatprep.mubr.f32.mxu0 0.0
    %1686 = vmatmul.mubr.f32.gmra.mrb[0].mxu0 %v1619
    %v1687 = vpop.f32.mrb[0].mxu0
    %v1688 = vadd.f32 0.0, %v1687
    %v1689 = vpop.f32.mrb[0].mxu0
    %1690 = vdwg.mxu0
    %v1691 = vadd.f32 %v1510, %v1688
    %v1692 = vxor.u32 %v1691, 2147483648
    %v1693 = vmul.f32 %v1692, 1.442695
    %v1694 = vpow.pop %v1693
    %v1695 = vadd.f32 %v1694, 1.0
    %v1696 = vrcp.pop %v1695
    %v1697 = vmul.f32 1.0, %v1696
    %v1698 = vadd.f32 %v1688, %v578
    %1700 = vrot.lane.b32.xlu0 %v1698, 64
    %v1701 = vpop.permute.xlu0 %1700
    %v1703 = vmul.f32 %v1697, %v1701
    %1705 = vrot.lane.b32.xlu0 %v1703, 64
    %v1706 = vpop.permute.xlu0 %1705
    %v1708 = vadd.f32 %v1510, %v1706
    %v1709 = vtanh.pop %v1708
    %v1710 = vsub.f32 1.0, %v1697
    %1712 = vrot.lane.b32.xlu0 %v1709, 96
    %v1713 = vpop.permute.xlu0 %1712
    %v1715 = vmul.f32 %v1710, %v1713
    %v1716 = vmul.f32 %v1697, %v1437
    %v1717 = vadd.f32 %v1715, %v1716
    %v1719 = vrot.slane %v1615, 2
    %1720 = vrot.lane.b32.xlu0 %v1719, 96
    %v1721 = vpop.permute.xlu0 %1720
    %v1722 = vsel %vm218, %v1721, 0
    %1724 = vmatprep.subr.mxu0 0.0
    %1725 = vmatpush1.msra.mxu0 %v195
    %1726 = vmatprep.subr.mxu0 0.0
    %1727 = vmatpush1.msra.mxu0 %v196
    %1728 = vmatprep.subr.mxu0 0.0
    %1729 = vmatpush1.msra.mxu0 %v197
    %1730 = vmatprep.subr.mxu0 0.0
    %1731 = vmatpush1.msra.mxu0 %v198
    %1732 = vmatprep.subr.mxu0 0.0
    %1733 = vmatpush1.msra.mxu0 0.0
    %1734 = vmatprep.subr.mxu0 0.0
    %1735 = vmatpush1.msra.mxu0 0.0
    %1736 = vmatprep.subr.mxu0 0.0
    %1737 = vmatpush1.msra.mxu0 0.0
    %1738 = vmatprep.subr.mxu0 0.0
    %1739 = vmatpush1.msra.mxu0 0.0
    %1740 = vmatprep.subr.mxu0 0.0
    %1741 = vmatpush1.msra.mxu0 0.0
    %1742 = vmatprep.subr.mxu0 0.0
    %1743 = vmatpush1.msra.mxu0 0.0
    %1744 = vmatprep.subr.mxu0 0.0
    %1745 = vmatpush1.msra.mxu0 0.0
    %1746 = vmatprep.subr.mxu0 0.0
    %1747 = vmatpush1.msra.mxu0 0.0
    %1748 = vmatprep.subr.mxu0 0.0
    %1749 = vmatpush1.msra.mxu0 0.0
    %1750 = vmatprep.subr.mxu0 0.0
    %1751 = vmatpush1.msra.mxu0 0.0
    %1752 = vmatprep.subr.mxu0 0.0
    %1753 = vmatpush1.msra.mxu0 0.0
    %1754 = vmatprep.subr.mxu0 0.0
    %1755 = vmatpush1.msra.mxu0 0.0
    %1756 = vmatprep.subr.mxu0 0.0
    %1757 = vmatpush1.msra.mxu0 0.0
    %1758 = vmatprep.subr.mxu0 0.0
    %1759 = vmatpush1.msra.mxu0 0.0
    %1760 = vmatprep.subr.mxu0 0.0
    %1761 = vmatpush1.msra.mxu0 0.0
    %1762 = vmatprep.subr.mxu0 0.0
    %1763 = vmatpush1.msra.mxu0 0.0
    %1764 = vmatprep.subr.mxu0 0.0
    %1765 = vmatpush1.msra.mxu0 0.0
    %1766 = vmatprep.subr.mxu0 0.0
    %1767 = vmatpush1.msra.mxu0 0.0
    %1768 = vmatprep.subr.mxu0 0.0
    %1769 = vmatpush1.msra.mxu0 0.0
    %1770 = vmatprep.subr.mxu0 0.0
    %1771 = vmatpush1.msra.mxu0 0.0
    %1772 = vmatprep.subr.mxu0 0.0
    %1773 = vmatpush1.msra.mxu0 0.0
    %1774 = vmatprep.subr.mxu0 0.0
    %1775 = vmatpush1.msra.mxu0 0.0
    %1776 = vmatprep.subr.mxu0 0.0
    %1777 = vmatpush1.msra.mxu0 0.0
    %1778 = vmatprep.subr.mxu0 0.0
    %1779 = vmatpush1.msra.mxu0 0.0
    %1780 = vmatprep.subr.mxu0 0.0
    %1781 = vmatpush1.msra.mxu0 0.0
    %1782 = vmatprep.subr.mxu0 0.0
    %1783 = vmatpush1.msra.mxu0 0.0
    %1784 = vmatprep.subr.mxu0 0.0
    %1785 = vmatpush1.msra.mxu0 0.0
    %1786 = vmatprep.subr.mxu0 0.0
    %1787 = vmatpush1.msra.mxu0 0.0
    %1788 = vmatprep.mubr.f32.mxu0 0.0
    %1789 = vmatmul.mubr.f32.gmra.mrb[0].mxu0 %v1722
    %v1790 = vpop.f32.mrb[0].mxu0
    %v1791 = vadd.f32 %v216, %v1790
    %v1792 = vpop.f32.mrb[0].mxu0
    %1793 = vdwg.mxu0
    %1794 = vmatprep.subr.mxu0 0.0
    %1795 = vmatpush1.msra.mxu0 %v187
    %1796 = vmatprep.subr.mxu0 0.0
    %1797 = vmatpush1.msra.mxu0 %v188
    %1798 = vmatprep.subr.mxu0 0.0
    %1799 = vmatpush1.msra.mxu0 %v189
    %1800 = vmatprep.subr.mxu0 0.0
    %1801 = vmatpush1.msra.mxu0 %v190
    %1802 = vmatprep.subr.mxu0 0.0
    %1803 = vmatpush1.msra.mxu0 0.0
    %1804 = vmatprep.subr.mxu0 0.0
    %1805 = vmatpush1.msra.mxu0 0.0
    %1806 = vmatprep.subr.mxu0 0.0
    %1807 = vmatpush1.msra.mxu0 0.0
    %1808 = vmatprep.subr.mxu0 0.0
    %1809 = vmatpush1.msra.mxu0 0.0
    %1810 = vmatprep.subr.mxu0 0.0
    %1811 = vmatpush1.msra.mxu0 0.0
    %1812 = vmatprep.subr.mxu0 0.0
    %1813 = vmatpush1.msra.mxu0 0.0
    %1814 = vmatprep.subr.mxu0 0.0
    %1815 = vmatpush1.msra.mxu0 0.0
    %1816 = vmatprep.subr.mxu0 0.0
    %1817 = vmatpush1.msra.mxu0 0.0
    %1818 = vmatprep.subr.mxu0 0.0
    %1819 = vmatpush1.msra.mxu0 0.0
    %1820 = vmatprep.subr.mxu0 0.0
    %1821 = vmatpush1.msra.mxu0 0.0
    %1822 = vmatprep.subr.mxu0 0.0
    %1823 = vmatpush1.msra.mxu0 0.0
    %1824 = vmatprep.subr.mxu0 0.0
    %1825 = vmatpush1.msra.mxu0 0.0
    %1826 = vmatprep.subr.mxu0 0.0
    %1827 = vmatpush1.msra.mxu0 0.0
    %1828 = vmatprep.subr.mxu0 0.0
    %1829 = vmatpush1.msra.mxu0 0.0
    %1830 = vmatprep.subr.mxu0 0.0
    %1831 = vmatpush1.msra.mxu0 0.0
    %1832 = vmatprep.subr.mxu0 0.0
    %1833 = vmatpush1.msra.mxu0 0.0
    %1834 = vmatprep.subr.mxu0 0.0
    %1835 = vmatpush1.msra.mxu0 0.0
    %1836 = vmatprep.subr.mxu0 0.0
    %1837 = vmatpush1.msra.mxu0 0.0
    %1838 = vmatprep.subr.mxu0 0.0
    %1839 = vmatpush1.msra.mxu0 0.0
    %1840 = vmatprep.subr.mxu0 0.0
    %1841 = vmatpush1.msra.mxu0 0.0
    %1842 = vmatprep.subr.mxu0 0.0
    %1843 = vmatpush1.msra.mxu0 0.0
    %1844 = vmatprep.subr.mxu0 0.0
    %1845 = vmatpush1.msra.mxu0 0.0
    %1846 = vmatprep.subr.mxu0 0.0
    %1847 = vmatpush1.msra.mxu0 0.0
    %1848 = vmatprep.subr.mxu0 0.0
    %1849 = vmatpush1.msra.mxu0 0.0
    %1850 = vmatprep.subr.mxu0 0.0
    %1851 = vmatpush1.msra.mxu0 0.0
    %1852 = vmatprep.subr.mxu0 0.0
    %1853 = vmatpush1.msra.mxu0 0.0
    %1854 = vmatprep.subr.mxu0 0.0
    %1855 = vmatpush1.msra.mxu0 0.0
    %1856 = vmatprep.subr.mxu0 0.0
    %1857 = vmatpush1.msra.mxu0 0.0
    %1858 = vmatprep.mubr.f32.mxu0 0.0
    %1859 = vmatmul.mubr.f32.gmra.mrb[0].mxu0 %v1722
    %v1860 = vpop.f32.mrb[0].mxu0
    %v1861 = vadd.f32 0.0, %v1860
    %v1862 = vpop.f32.mrb[0].mxu0
    %1863 = vdwg.mxu0
    %v1865 = vrot.slane %v1861, 4
    %v1867 = vadd.f32 %v184, %v1865
    %v1868 = vxor.u32 %v1867, 2147483648
    %v1869 = vmul.f32 %v1868, 1.442695
    %v1870 = vpow.pop %v1869
    %v1871 = vadd.f32 %v1870, 1.0
    %v1872 = vrcp.pop %v1871
    %v1873 = vmul.f32 1.0, %v1872
    %v1874 = vadd.f32 %v1861, %v300
    %v1876 = vrot.slane %v1874, 4
    %1877 = vrot.lane.b32.xlu0 %v1876, 64
    %v1878 = vpop.permute.xlu0 %1877
    %v1880 = vmul.f32 %v1873, %v1878
    %1882 = vrot.lane.b32.xlu0 %v1880, 64
    %v1883 = vpop.permute.xlu0 %1882
    %v1885 = vadd.f32 %v184, %v1883
    %v1886 = vtanh.pop %v1885
    %v1887 = vsub.f32 1.0, %v1873
    %1889 = vrot.lane.b32.xlu0 %v1886, 96
    %v1890 = vpop.permute.xlu0 %1889
    %v1892 = vmul.f32 %v1887, %v1890
    %v1893 = vrot.slane %v1615, 6
    %v1895 = vmul.f32 %v1873, %v1893
    %v1896 = vadd.f32 %v1892, %v1895
    %1898 = vrot.lane.b32.xlu0 %v1717, 96
    %v1899 = vpop.permute.xlu0 %1898
    %v1900 = vsel %vm218, %v1899, 0
    %1902 = vmatprep.subr.mxu0 0.0
    %1903 = vmatpush1.msra.mxu0 %v191
    %1904 = vmatprep.subr.mxu0 0.0
    %1905 = vmatpush1.msra.mxu0 %v192
    %1906 = vmatprep.subr.mxu0 0.0
    %1907 = vmatpush1.msra.mxu0 %v193
    %1908 = vmatprep.subr.mxu0 0.0
    %1909 = vmatpush1.msra.mxu0 %v194
    %1910 = vmatprep.subr.mxu0 0.0
    %1911 = vmatpush1.msra.mxu0 0.0
    %1912 = vmatprep.subr.mxu0 0.0
    %1913 = vmatpush1.msra.mxu0 0.0
    %1914 = vmatprep.subr.mxu0 0.0
    %1915 = vmatpush1.msra.mxu0 0.0
    %1916 = vmatprep.subr.mxu0 0.0
    %1917 = vmatpush1.msra.mxu0 0.0
    %1918 = vmatprep.subr.mxu0 0.0
    %1919 = vmatpush1.msra.mxu0 0.0
    %1920 = vmatprep.subr.mxu0 0.0
    %1921 = vmatpush1.msra.mxu0 0.0
    %1922 = vmatprep.subr.mxu0 0.0
    %1923 = vmatpush1.msra.mxu0 0.0
    %1924 = vmatprep.subr.mxu0 0.0
    %1925 = vmatpush1.msra.mxu0 0.0
    %1926 = vmatprep.subr.mxu0 0.0
    %1927 = vmatpush1.msra.mxu0 0.0
    %1928 = vmatprep.subr.mxu0 0.0
    %1929 = vmatpush1.msra.mxu0 0.0
    %1930 = vmatprep.subr.mxu0 0.0
    %1931 = vmatpush1.msra.mxu0 0.0
    %1932 = vmatprep.subr.mxu0 0.0
    %1933 = vmatpush1.msra.mxu0 0.0
    %1934 = vmatprep.subr.mxu0 0.0
    %1935 = vmatpush1.msra.mxu0 0.0
    %1936 = vmatprep.subr.mxu0 0.0
    %1937 = vmatpush1.msra.mxu0 0.0
    %1938 = vmatprep.subr.mxu0 0.0
    %1939 = vmatpush1.msra.mxu0 0.0
    %1940 = vmatprep.subr.mxu0 0.0
    %1941 = vmatpush1.msra.mxu0 0.0
    %1942 = vmatprep.subr.mxu0 0.0
    %1943 = vmatpush1.msra.mxu0 0.0
    %1944 = vmatprep.subr.mxu0 0.0
    %1945 = vmatpush1.msra.mxu0 0.0
    %1946 = vmatprep.subr.mxu0 0.0
    %1947 = vmatpush1.msra.mxu0 0.0
    %1948 = vmatprep.subr.mxu0 0.0
    %1949 = vmatpush1.msra.mxu0 0.0
    %1950 = vmatprep.subr.mxu0 0.0
    %1951 = vmatpush1.msra.mxu0 0.0
    %1952 = vmatprep.subr.mxu0 0.0
    %1953 = vmatpush1.msra.mxu0 0.0
    %1954 = vmatprep.subr.mxu0 0.0
    %1955 = vmatpush1.msra.mxu0 0.0
    %1956 = vmatprep.subr.mxu0 0.0
    %1957 = vmatpush1.msra.mxu0 0.0
    %1958 = vmatprep.subr.mxu0 0.0
    %1959 = vmatpush1.msra.mxu0 0.0
    %1960 = vmatprep.subr.mxu0 0.0
    %1961 = vmatpush1.msra.mxu0 0.0
    %1962 = vmatprep.subr.mxu0 0.0
    %1963 = vmatpush1.msra.mxu0 0.0
    %1964 = vmatprep.subr.mxu0 0.0
    %1965 = vmatpush1.msra.mxu0 0.0
    %1966 = vmatprep.mubr.f32.mxu0 0.0
    %1967 = vmatmul.mubr.f32.gmra.mrb[0].mxu0 %v1900
    %v1968 = vpop.f32.mrb[0].mxu0
    %v1969 = vadd.f32 0.0, %v1968
    %v1970 = vpop.f32.mrb[0].mxu0
    %1971 = vdwg.mxu0
    %v1972 = vadd.f32 %v1791, %v1969
    %v1973 = vxor.u32 %v1972, 2147483648
    %v1974 = vmul.f32 %v1973, 1.442695
    %v1975 = vpow.pop %v1974
    %v1976 = vadd.f32 %v1975, 1.0
    %v1977 = vrcp.pop %v1976
    %v1978 = vmul.f32 1.0, %v1977
    %v1979 = vadd.f32 %v1969, %v578
    %1981 = vrot.lane.b32.xlu0 %v1979, 64
    %v1982 = vpop.permute.xlu0 %1981
    %v1984 = vmul.f32 %v1978, %v1982
    %1986 = vrot.lane.b32.xlu0 %v1984, 64
    %v1987 = vpop.permute.xlu0 %1986
    %v1989 = vadd.f32 %v1791, %v1987
    %v1990 = vtanh.pop %v1989
    %v1991 = vsub.f32 1.0, %v1978
    %1993 = vrot.lane.b32.xlu0 %v1990, 96
    %v1994 = vpop.permute.xlu0 %1993
    %v1996 = vmul.f32 %v1991, %v1994
    %v1997 = vmul.f32 %v1978, %v1717
    %v1998 = vadd.f32 %v1996, %v1997
    %v2000 = vrot.slane %v1896, 4
    %2001 = vrot.lane.b32.xlu0 %v2000, 96
    %v2002 = vpop.permute.xlu0 %2001
    %v2003 = vsel %vm218, %v2002, 0
    %2005 = vmatprep.subr.mxu0 0.0
    %2006 = vmatpush1.msra.mxu0 %v195
    %2007 = vmatprep.subr.mxu0 0.0
    %2008 = vmatpush1.msra.mxu0 %v196
    %2009 = vmatprep.subr.mxu0 0.0
    %2010 = vmatpush1.msra.mxu0 %v197
    %2011 = vmatprep.subr.mxu0 0.0
    %2012 = vmatpush1.msra.mxu0 %v198
    %2013 = vmatprep.subr.mxu0 0.0
    %2014 = vmatpush1.msra.mxu0 0.0
    %2015 = vmatprep.subr.mxu0 0.0
    %2016 = vmatpush1.msra.mxu0 0.0
    %2017 = vmatprep.subr.mxu0 0.0
    %2018 = vmatpush1.msra.mxu0 0.0
    %2019 = vmatprep.subr.mxu0 0.0
    %2020 = vmatpush1.msra.mxu0 0.0
    %2021 = vmatprep.subr.mxu0 0.0
    %2022 = vmatpush1.msra.mxu0 0.0
    %2023 = vmatprep.subr.mxu0 0.0
    %2024 = vmatpush1.msra.mxu0 0.0
    %2025 = vmatprep.subr.mxu0 0.0
    %2026 = vmatpush1.msra.mxu0 0.0
    %2027 = vmatprep.subr.mxu0 0.0
    %2028 = vmatpush1.msra.mxu0 0.0
    %2029 = vmatprep.subr.mxu0 0.0
    %2030 = vmatpush1.msra.mxu0 0.0
    %2031 = vmatprep.subr.mxu0 0.0
    %2032 = vmatpush1.msra.mxu0 0.0
    %2033 = vmatprep.subr.mxu0 0.0
    %2034 = vmatpush1.msra.mxu0 0.0
    %2035 = vmatprep.subr.mxu0 0.0
    %2036 = vmatpush1.msra.mxu0 0.0
    %2037 = vmatprep.subr.mxu0 0.0
    %2038 = vmatpush1.msra.mxu0 0.0
    %2039 = vmatprep.subr.mxu0 0.0
    %2040 = vmatpush1.msra.mxu0 0.0
    %2041 = vmatprep.subr.mxu0 0.0
    %2042 = vmatpush1.msra.mxu0 0.0
    %2043 = vmatprep.subr.mxu0 0.0
    %2044 = vmatpush1.msra.mxu0 0.0
    %2045 = vmatprep.subr.mxu0 0.0
    %2046 = vmatpush1.msra.mxu0 0.0
    %2047 = vmatprep.subr.mxu0 0.0
    %2048 = vmatpush1.msra.mxu0 0.0
    %2049 = vmatprep.subr.mxu0 0.0
    %2050 = vmatpush1.msra.mxu0 0.0
    %2051 = vmatprep.subr.mxu0 0.0
    %2052 = vmatpush1.msra.mxu0 0.0
    %2053 = vmatprep.subr.mxu0 0.0
    %2054 = vmatpush1.msra.mxu0 0.0
    %2055 = vmatprep.subr.mxu0 0.0
    %2056 = vmatpush1.msra.mxu0 0.0
    %2057 = vmatprep.subr.mxu0 0.0
    %2058 = vmatpush1.msra.mxu0 0.0
    %2059 = vmatprep.subr.mxu0 0.0
    %2060 = vmatpush1.msra.mxu0 0.0
    %2061 = vmatprep.subr.mxu0 0.0
    %2062 = vmatpush1.msra.mxu0 0.0
    %2063 = vmatprep.subr.mxu0 0.0
    %2064 = vmatpush1.msra.mxu0 0.0
    %2065 = vmatprep.subr.mxu0 0.0
    %2066 = vmatpush1.msra.mxu0 0.0
    %2067 = vmatprep.subr.mxu0 0.0
    %2068 = vmatpush1.msra.mxu0 0.0
    %2069 = vmatprep.mubr.f32.mxu0 0.0
    %2070 = vmatmul.mubr.f32.gmra.mrb[0].mxu0 %v2003
    %v2071 = vpop.f32.mrb[0].mxu0
    %v2072 = vadd.f32 %v216, %v2071
    %v2073 = vpop.f32.mrb[0].mxu0
    %2074 = vdwg.mxu0
    %2075 = vmatprep.subr.mxu0 0.0
    %2076 = vmatpush1.msra.mxu0 %v187
    %2077 = vmatprep.subr.mxu0 0.0
    %2078 = vmatpush1.msra.mxu0 %v188
    %2079 = vmatprep.subr.mxu0 0.0
    %2080 = vmatpush1.msra.mxu0 %v189
    %2081 = vmatprep.subr.mxu0 0.0
    %2082 = vmatpush1.msra.mxu0 %v190
    %2083 = vmatprep.subr.mxu0 0.0
    %2084 = vmatpush1.msra.mxu0 0.0
    %2085 = vmatprep.subr.mxu0 0.0
    %2086 = vmatpush1.msra.mxu0 0.0
    %2087 = vmatprep.subr.mxu0 0.0
    %2088 = vmatpush1.msra.mxu0 0.0
    %2089 = vmatprep.subr.mxu0 0.0
    %2090 = vmatpush1.msra.mxu0 0.0
    %2091 = vmatprep.subr.mxu0 0.0
    %2092 = vmatpush1.msra.mxu0 0.0
    %2093 = vmatprep.subr.mxu0 0.0
    %2094 = vmatpush1.msra.mxu0 0.0
    %2095 = vmatprep.subr.mxu0 0.0
    %2096 = vmatpush1.msra.mxu0 0.0
    %2097 = vmatprep.subr.mxu0 0.0
    %2098 = vmatpush1.msra.mxu0 0.0
    %2099 = vmatprep.subr.mxu0 0.0
    %2100 = vmatpush1.msra.mxu0 0.0
    %2101 = vmatprep.subr.mxu0 0.0
    %2102 = vmatpush1.msra.mxu0 0.0
    %2103 = vmatprep.subr.mxu0 0.0
    %2104 = vmatpush1.msra.mxu0 0.0
    %2105 = vmatprep.subr.mxu0 0.0
    %2106 = vmatpush1.msra.mxu0 0.0
    %2107 = vmatprep.subr.mxu0 0.0
    %2108 = vmatpush1.msra.mxu0 0.0
    %2109 = vmatprep.subr.mxu0 0.0
    %2110 = vmatpush1.msra.mxu0 0.0
    %2111 = vmatprep.subr.mxu0 0.0
    %2112 = vmatpush1.msra.mxu0 0.0
    %2113 = vmatprep.subr.mxu0 0.0
    %2114 = vmatpush1.msra.mxu0 0.0
    %2115 = vmatprep.subr.mxu0 0.0
    %2116 = vmatpush1.msra.mxu0 0.0
    %2117 = vmatprep.subr.mxu0 0.0
    %2118 = vmatpush1.msra.mxu0 0.0
    %2119 = vmatprep.subr.mxu0 0.0
    %2120 = vmatpush1.msra.mxu0 0.0
    %2121 = vmatprep.subr.mxu0 0.0
    %2122 = vmatpush1.msra.mxu0 0.0
    %2123 = vmatprep.subr.mxu0 0.0
    %2124 = vmatpush1.msra.mxu0 0.0
    %2125 = vmatprep.subr.mxu0 0.0
    %2126 = vmatpush1.msra.mxu0 0.0
    %2127 = vmatprep.subr.mxu0 0.0
    %2128 = vmatpush1.msra.mxu0 0.0
    %2129 = vmatprep.subr.mxu0 0.0
    %2130 = vmatpush1.msra.mxu0 0.0
    %2131 = vmatprep.subr.mxu0 0.0
    %2132 = vmatpush1.msra.mxu0 0.0
    %2133 = vmatprep.subr.mxu0 0.0
    %2134 = vmatpush1.msra.mxu0 0.0
    %2135 = vmatprep.subr.mxu0 0.0
    %2136 = vmatpush1.msra.mxu0 0.0
    %2137 = vmatprep.subr.mxu0 0.0
    %2138 = vmatpush1.msra.mxu0 0.0
    %2139 = vmatprep.mubr.f32.mxu0 0.0
    %2140 = vmatmul.mubr.f32.gmra.mrb[0].mxu0 %v2003
    %v2141 = vpop.f32.mrb[0].mxu0
    %v2142 = vadd.f32 0.0, %v2141
    %v2143 = vpop.f32.mrb[0].mxu0
    %2144 = vdwg.mxu0
    %v2146 = vrot.slane %v2142, 2
    %v2148 = vadd.f32 %v184, %v2146
    %v2149 = vxor.u32 %v2148, 2147483648
    %v2150 = vmul.f32 %v2149, 1.442695
    %v2151 = vpow.pop %v2150
    %v2152 = vadd.f32 %v2151, 1.0
    %v2153 = vrcp.pop %v2152
    %v2154 = vmul.f32 1.0, %v2153
    %v2155 = vadd.f32 %v2142, %v300
    %v2157 = vrot.slane %v2155, 2
    %2158 = vrot.lane.b32.xlu0 %v2157, 64
    %v2159 = vpop.permute.xlu0 %2158
    %v2161 = vmul.f32 %v2154, %v2159
    %2163 = vrot.lane.b32.xlu0 %v2161, 64
    %v2164 = vpop.permute.xlu0 %2163
    %v2166 = vadd.f32 %v184, %v2164
    %v2167 = vtanh.pop %v2166
    %v2168 = vsub.f32 1.0, %v2154
    %2170 = vrot.lane.b32.xlu0 %v2167, 96
    %v2171 = vpop.permute.xlu0 %2170
    %v2173 = vmul.f32 %v2168, %v2171
    %v2174 = vrot.slane %v1896, 6
    %v2176 = vmul.f32 %v2154, %v2174
    %v2177 = vadd.f32 %v2173, %v2176
    %2179 = vrot.lane.b32.xlu0 %v1998, 96
    %v2180 = vpop.permute.xlu0 %2179
    %v2181 = vsel %vm218, %v2180, 0
    %2183 = vmatprep.subr.mxu0 0.0
    %2184 = vmatpush1.msra.mxu0 %v191
    %2185 = vmatprep.subr.mxu0 0.0
    %2186 = vmatpush1.msra.mxu0 %v192
    %2187 = vmatprep.subr.mxu0 0.0
    %2188 = vmatpush1.msra.mxu0 %v193
    %2189 = vmatprep.subr.mxu0 0.0
    %2190 = vmatpush1.msra.mxu0 %v194
    %2191 = vmatprep.subr.mxu0 0.0
    %2192 = vmatpush1.msra.mxu0 0.0
    %2193 = vmatprep.subr.mxu0 0.0
    %2194 = vmatpush1.msra.mxu0 0.0
    %2195 = vmatprep.subr.mxu0 0.0
    %2196 = vmatpush1.msra.mxu0 0.0
    %2197 = vmatprep.subr.mxu0 0.0
    %2198 = vmatpush1.msra.mxu0 0.0
    %2199 = vmatprep.subr.mxu0 0.0
    %2200 = vmatpush1.msra.mxu0 0.0
    %2201 = vmatprep.subr.mxu0 0.0
    %2202 = vmatpush1.msra.mxu0 0.0
    %2203 = vmatprep.subr.mxu0 0.0
    %2204 = vmatpush1.msra.mxu0 0.0
    %2205 = vmatprep.subr.mxu0 0.0
    %2206 = vmatpush1.msra.mxu0 0.0
    %2207 = vmatprep.subr.mxu0 0.0
    %2208 = vmatpush1.msra.mxu0 0.0
    %2209 = vmatprep.subr.mxu0 0.0
    %2210 = vmatpush1.msra.mxu0 0.0
    %2211 = vmatprep.subr.mxu0 0.0
    %2212 = vmatpush1.msra.mxu0 0.0
    %2213 = vmatprep.subr.mxu0 0.0
    %2214 = vmatpush1.msra.mxu0 0.0
    %2215 = vmatprep.subr.mxu0 0.0
    %2216 = vmatpush1.msra.mxu0 0.0
    %2217 = vmatprep.subr.mxu0 0.0
    %2218 = vmatpush1.msra.mxu0 0.0
    %2219 = vmatprep.subr.mxu0 0.0
    %2220 = vmatpush1.msra.mxu0 0.0
    %2221 = vmatprep.subr.mxu0 0.0
    %2222 = vmatpush1.msra.mxu0 0.0
    %2223 = vmatprep.subr.mxu0 0.0
    %2224 = vmatpush1.msra.mxu0 0.0
    %2225 = vmatprep.subr.mxu0 0.0
    %2226 = vmatpush1.msra.mxu0 0.0
    %2227 = vmatprep.subr.mxu0 0.0
    %2228 = vmatpush1.msra.mxu0 0.0
    %2229 = vmatprep.subr.mxu0 0.0
    %2230 = vmatpush1.msra.mxu0 0.0
    %2231 = vmatprep.subr.mxu0 0.0
    %2232 = vmatpush1.msra.mxu0 0.0
    %2233 = vmatprep.subr.mxu0 0.0
    %2234 = vmatpush1.msra.mxu0 0.0
    %2235 = vmatprep.subr.mxu0 0.0
    %2236 = vmatpush1.msra.mxu0 0.0
    %2237 = vmatprep.subr.mxu0 0.0
    %2238 = vmatpush1.msra.mxu0 0.0
    %2239 = vmatprep.subr.mxu0 0.0
    %2240 = vmatpush1.msra.mxu0 0.0
    %2241 = vmatprep.subr.mxu0 0.0
    %2242 = vmatpush1.msra.mxu0 0.0
    %2243 = vmatprep.subr.mxu0 0.0
    %2244 = vmatpush1.msra.mxu0 0.0
    %2245 = vmatprep.subr.mxu0 0.0
    %2246 = vmatpush1.msra.mxu0 0.0
    %2247 = vmatprep.mubr.f32.mxu0 0.0
    %2248 = vmatmul.mubr.f32.gmra.mrb[0].mxu0 %v2181
    %v2249 = vpop.f32.mrb[0].mxu0
    %v2250 = vadd.f32 0.0, %v2249
    %v2251 = vpop.f32.mrb[0].mxu0
    %2252 = vdwg.mxu0
    %v2253 = vadd.f32 %v2072, %v2250
    %v2254 = vxor.u32 %v2253, 2147483648
    %v2255 = vmul.f32 %v2254, 1.442695
    %v2256 = vpow.pop %v2255
    %v2257 = vadd.f32 %v2256, 1.0
    %v2258 = vrcp.pop %v2257
    %v2259 = vmul.f32 1.0, %v2258
    %v2260 = vadd.f32 %v2250, %v578
    %2262 = vrot.lane.b32.xlu0 %v2260, 64
    %v2263 = vpop.permute.xlu0 %2262
    %v2265 = vmul.f32 %v2259, %v2263
    %2267 = vrot.lane.b32.xlu0 %v2265, 64
    %v2268 = vpop.permute.xlu0 %2267
    %v2270 = vadd.f32 %v2072, %v2268
    %v2271 = vtanh.pop %v2270
    %v2272 = vsub.f32 1.0, %v2259
    %2274 = vrot.lane.b32.xlu0 %v2271, 96
    %v2275 = vpop.permute.xlu0 %2274
    %v2277 = vmul.f32 %v2272, %v2275
    %v2278 = vmul.f32 %v2259, %v1998
    %v2279 = vadd.f32 %v2277, %v2278
    %v2281 = vrot.slane %v2177, 6
    %2282 = vrot.lane.b32.xlu0 %v2281, 96
    %v2283 = vpop.permute.xlu0 %2282
    %v2284 = vsel %vm218, %v2283, 0
    %2286 = vmatprep.subr.mxu0 0.0
    %2287 = vmatpush1.msra.mxu0 %v195
    %2288 = vmatprep.subr.mxu0 0.0
    %2289 = vmatpush1.msra.mxu0 %v196
    %2290 = vmatprep.subr.mxu0 0.0
    %2291 = vmatpush1.msra.mxu0 %v197
    %2292 = vmatprep.subr.mxu0 0.0
    %2293 = vmatpush1.msra.mxu0 %v198
    %2294 = vmatprep.subr.mxu0 0.0
    %2295 = vmatpush1.msra.mxu0 0.0
    %2296 = vmatprep.subr.mxu0 0.0
    %2297 = vmatpush1.msra.mxu0 0.0
    %2298 = vmatprep.subr.mxu0 0.0
    %2299 = vmatpush1.msra.mxu0 0.0
    %2300 = vmatprep.subr.mxu0 0.0
    %2301 = vmatpush1.msra.mxu0 0.0
    %2302 = vmatprep.subr.mxu0 0.0
    %2303 = vmatpush1.msra.mxu0 0.0
    %2304 = vmatprep.subr.mxu0 0.0
    %2305 = vmatpush1.msra.mxu0 0.0
    %2306 = vmatprep.subr.mxu0 0.0
    %2307 = vmatpush1.msra.mxu0 0.0
    %2308 = vmatprep.subr.mxu0 0.0
    %2309 = vmatpush1.msra.mxu0 0.0
    %2310 = vmatprep.subr.mxu0 0.0
    %2311 = vmatpush1.msra.mxu0 0.0
    %2312 = vmatprep.subr.mxu0 0.0
    %2313 = vmatpush1.msra.mxu0 0.0
    %2314 = vmatprep.subr.mxu0 0.0
    %2315 = vmatpush1.msra.mxu0 0.0
    %2316 = vmatprep.subr.mxu0 0.0
    %2317 = vmatpush1.msra.mxu0 0.0
    %2318 = vmatprep.subr.mxu0 0.0
    %2319 = vmatpush1.msra.mxu0 0.0
    %2320 = vmatprep.subr.mxu0 0.0
    %2321 = vmatpush1.msra.mxu0 0.0
    %2322 = vmatprep.subr.mxu0 0.0
    %2323 = vmatpush1.msra.mxu0 0.0
    %2324 = vmatprep.subr.mxu0 0.0
    %2325 = vmatpush1.msra.mxu0 0.0
    %2326 = vmatprep.subr.mxu0 0.0
    %2327 = vmatpush1.msra.mxu0 0.0
    %2328 = vmatprep.subr.mxu0 0.0
    %2329 = vmatpush1.msra.mxu0 0.0
    %2330 = vmatprep.subr.mxu0 0.0
    %2331 = vmatpush1.msra.mxu0 0.0
    %2332 = vmatprep.subr.mxu0 0.0
    %2333 = vmatpush1.msra.mxu0 0.0
    %2334 = vmatprep.subr.mxu0 0.0
    %2335 = vmatpush1.msra.mxu0 0.0
    %2336 = vmatprep.subr.mxu0 0.0
    %2337 = vmatpush1.msra.mxu0 0.0
    %2338 = vmatprep.subr.mxu0 0.0
    %2339 = vmatpush1.msra.mxu0 0.0
    %2340 = vmatprep.subr.mxu0 0.0
    %2341 = vmatpush1.msra.mxu0 0.0
    %2342 = vmatprep.subr.mxu0 0.0
    %2343 = vmatpush1.msra.mxu0 0.0
    %2344 = vmatprep.subr.mxu0 0.0
    %2345 = vmatpush1.msra.mxu0 0.0
    %2346 = vmatprep.subr.mxu0 0.0
    %2347 = vmatpush1.msra.mxu0 0.0
    %2348 = vmatprep.subr.mxu0 0.0
    %2349 = vmatpush1.msra.mxu0 0.0
    %2350 = vmatprep.mubr.f32.mxu0 0.0
    %2351 = vmatmul.mubr.f32.gmra.mrb[0].mxu0 %v2284
    %v2352 = vpop.f32.mrb[0].mxu0
    %v2353 = vadd.f32 %v216, %v2352
    %v2354 = vpop.f32.mrb[0].mxu0
    %2355 = vdwg.mxu0
    %2357 = vrot.lane.b32.xlu0 %v2279, 96
    %v2358 = vpop.permute.xlu0 %2357
    %v2359 = vsel %vm218, %v2358, 0
    %2361 = vmatprep.subr.mxu0 0.0
    %2362 = vmatpush1.msra.mxu0 %v191
    %2363 = vmatprep.subr.mxu0 0.0
    %2364 = vmatpush1.msra.mxu0 %v192
    %2365 = vmatprep.subr.mxu0 0.0
    %2366 = vmatpush1.msra.mxu0 %v193
    %2367 = vmatprep.subr.mxu0 0.0
    %2368 = vmatpush1.msra.mxu0 %v194
    %2369 = vmatprep.subr.mxu0 0.0
    %2370 = vmatpush1.msra.mxu0 0.0
    %2371 = vmatprep.subr.mxu0 0.0
    %2372 = vmatpush1.msra.mxu0 0.0
    %2373 = vmatprep.subr.mxu0 0.0
    %2374 = vmatpush1.msra.mxu0 0.0
    %2375 = vmatprep.subr.mxu0 0.0
    %2376 = vmatpush1.msra.mxu0 0.0
    %2377 = vmatprep.subr.mxu0 0.0
    %2378 = vmatpush1.msra.mxu0 0.0
    %2379 = vmatprep.subr.mxu0 0.0
    %2380 = vmatpush1.msra.mxu0 0.0
    %2381 = vmatprep.subr.mxu0 0.0
    %2382 = vmatpush1.msra.mxu0 0.0
    %2383 = vmatprep.subr.mxu0 0.0
    %2384 = vmatpush1.msra.mxu0 0.0
    %2385 = vmatprep.subr.mxu0 0.0
    %2386 = vmatpush1.msra.mxu0 0.0
    %2387 = vmatprep.subr.mxu0 0.0
    %2388 = vmatpush1.msra.mxu0 0.0
    %2389 = vmatprep.subr.mxu0 0.0
    %2390 = vmatpush1.msra.mxu0 0.0
    %2391 = vmatprep.subr.mxu0 0.0
    %2392 = vmatpush1.msra.mxu0 0.0
    %2393 = vmatprep.subr.mxu0 0.0
    %2394 = vmatpush1.msra.mxu0 0.0
    %2395 = vmatprep.subr.mxu0 0.0
    %2396 = vmatpush1.msra.mxu0 0.0
    %2397 = vmatprep.subr.mxu0 0.0
    %2398 = vmatpush1.msra.mxu0 0.0
    %2399 = vmatprep.subr.mxu0 0.0
    %2400 = vmatpush1.msra.mxu0 0.0
    %2401 = vmatprep.subr.mxu0 0.0
    %2402 = vmatpush1.msra.mxu0 0.0
    %2403 = vmatprep.subr.mxu0 0.0
    %2404 = vmatpush1.msra.mxu0 0.0
    %2405 = vmatprep.subr.mxu0 0.0
    %2406 = vmatpush1.msra.mxu0 0.0
    %2407 = vmatprep.subr.mxu0 0.0
    %2408 = vmatpush1.msra.mxu0 0.0
    %2409 = vmatprep.subr.mxu0 0.0
    %2410 = vmatpush1.msra.mxu0 0.0
    %2411 = vmatprep.subr.mxu0 0.0
    %2412 = vmatpush1.msra.mxu0 0.0
    %2413 = vmatprep.subr.mxu0 0.0
    %2414 = vmatpush1.msra.mxu0 0.0
    %2415 = vmatprep.subr.mxu0 0.0
    %2416 = vmatpush1.msra.mxu0 0.0
    %2417 = vmatprep.subr.mxu0 0.0
    %2418 = vmatpush1.msra.mxu0 0.0
    %2419 = vmatprep.subr.mxu0 0.0
    %2420 = vmatpush1.msra.mxu0 0.0
    %2421 = vmatprep.subr.mxu0 0.0
    %2422 = vmatpush1.msra.mxu0 0.0
    %2423 = vmatprep.subr.mxu0 0.0
    %2424 = vmatpush1.msra.mxu0 0.0
    %2425 = vmatprep.mubr.f32.mxu0 0.0
    %2426 = vmatmul.mubr.f32.gmra.mrb[0].mxu0 %v2359
    %v2427 = vpop.f32.mrb[0].mxu0
    %v2428 = vadd.f32 0.0, %v2427
    %v2429 = vpop.f32.mrb[0].mxu0
    %2430 = vdwg.mxu0
    %v2431 = vadd.f32 %v2353, %v2428
    %v2432 = vxor.u32 %v2431, 2147483648
    %v2433 = vmul.f32 %v2432, 1.442695
    %v2434 = vpow.pop %v2433
    %v2435 = vadd.f32 %v2434, 1.0
    %v2436 = vrcp.pop %v2435
    %v2437 = vmul.f32 1.0, %v2436
    %v2438 = vadd.f32 %v2428, %v578
    %2440 = vrot.lane.b32.xlu0 %v2438, 64
    %v2441 = vpop.permute.xlu0 %2440
    %v2443 = vmul.f32 %v2437, %v2441
    %2445 = vrot.lane.b32.xlu0 %v2443, 64
    %v2446 = vpop.permute.xlu0 %2445
    %v2448 = vadd.f32 %v2353, %v2446
    %v2449 = vtanh.pop %v2448
    %v2450 = vsub.f32 1.0, %v2437
    %2452 = vrot.lane.b32.xlu0 %v2449, 96
    %v2453 = vpop.permute.xlu0 %2452
    %v2455 = vmul.f32 %v2450, %v2453
    %v2456 = vmul.f32 %v2437, %v2279
    %v2457 = vadd.f32 %v2455, %v2456
    %v2458 = vrot.slane %v880, 6
    %v2460 = vrot.slane %v1161, 4
    %v2462 = vrot.slane %v1437, 2
    %v2464 = vrot.slane %v1998, 6
    %v2466 = vrot.slane %v2279, 4
    %v2469 = vrot.slane %v2457, 2
    %vm2471 = vcmask 1041408
    %v2472 = vsel %vm2471, %v599, %v2458
    %vm2473 = vcmask 1043456
    %v2474 = vsel %vm2473, %v2472, %v2460
    %v2475 = vsel %vm108, %v2474, %v2462
    %v2476 = vsel %vm2471, %v1717, %v2464
    %v2477 = vsel %vm2473, %v2476, %v2466
    %v2478 = vsel %vm108, %v2477, %v2469
    %v2479 = vld [vmem:[%s1] sm:$0xff]
    %v2480 = vld [vmem:[%s1 + $0x8] sm:$0xff]
    %vm2481 = vcmp.gt.f32.partialorder %v2479, 0.5
    %vm2482 = vcmp.gt.f32.partialorder %v2480, 0.5
    %v2483 = vsel %vm2481, 1, 0
    %v2484 = vsel %vm2482, 1, 0
    %2485 = vset.pattern.permute.xlu0 0
    %2486 = vperm.xlu0 %2485, %v2483
    %v2487 = vpop.permute.xlu0 %2486
    %2488 = vset.pattern.permute.xlu0 0
    %2489 = vperm.xlu0 %2488, %v2484
    %v2490 = vpop.permute.xlu0 %2489
    %vm2491 = vcmp.eq.s32.totalorder %v2487, 1
    %vm2492 = vcmp.eq.s32.totalorder %v2490, 1
    %v2493 = vsel %vm2491, %v2475, -2.0
    %v2494 = vsel %vm2492, %v2478, -2.0
    %v2495 = vld [vmem:[#allocation7] sm:$0xff]
    %v2496 = vld [vmem:[#allocation7 + $0x8] sm:$0xff]
    %v2497 = vld [vmem:[#allocation7 + $0x10] sm:$0xff]
    %v2498 = vld [vmem:[#allocation7 + $0x18] sm:$0xff]
    %v2499 = vld [vmem:[%s11] sm:$0x3f]
    %v2501 = vsel %vm108, %v2499, 0
    %2503 = vmatprep.subr.mxu0 0.0
    %2504 = vmatpush1.msra.mxu0 %v2501
    %2505 = vmatprep.subr.mxu0 0.0
    %2506 = vmatpush1.msra.mxu0 0.0
    %2507 = vmatprep.subr.mxu0 0.0
    %2508 = vmatpush1.msra.mxu0 0.0
    %2509 = vmatprep.subr.mxu0 0.0
    %2510 = vmatpush1.msra.mxu0 0.0
    %2511 = vmatprep.subr.mxu0 0.0
    %2512 = vmatpush1.msra.mxu0 0.0
    %2513 = vmatprep.subr.mxu0 0.0
    %2514 = vmatpush1.msra.mxu0 0.0
    %2515 = vmatprep.subr.mxu0 0.0
    %2516 = vmatpush1.msra.mxu0 0.0
    %2517 = vmatprep.subr.mxu0 0.0
    %2518 = vmatpush1.msra.mxu0 0.0
    %2519 = vmatprep.subr.mxu0 0.0
    %2520 = vmatpush1.msra.mxu0 0.0
    %2521 = vmatprep.subr.mxu0 0.0
    %2522 = vmatpush1.msra.mxu0 0.0
    %2523 = vmatprep.subr.mxu0 0.0
    %2524 = vmatpush1.msra.mxu0 0.0
    %2525 = vmatprep.subr.mxu0 0.0
    %2526 = vmatpush1.msra.mxu0 0.0
    %2527 = vmatprep.subr.mxu0 0.0
    %2528 = vmatpush1.msra.mxu0 0.0
    %2529 = vmatprep.subr.mxu0 0.0
    %2530 = vmatpush1.msra.mxu0 0.0
    %2531 = vmatprep.subr.mxu0 0.0
    %2532 = vmatpush1.msra.mxu0 0.0
    %2533 = vmatprep.subr.mxu0 0.0
    %2534 = vmatpush1.msra.mxu0 0.0
    %2535 = vmatprep.subr.mxu0 0.0
    %2536 = vmatpush1.msra.mxu0 0.0
    %2537 = vmatprep.subr.mxu0 0.0
    %2538 = vmatpush1.msra.mxu0 0.0
    %2539 = vmatprep.subr.mxu0 0.0
    %2540 = vmatpush1.msra.mxu0 0.0
    %2541 = vmatprep.subr.mxu0 0.0
    %2542 = vmatpush1.msra.mxu0 0.0
    %2543 = vmatprep.subr.mxu0 0.0
    %2544 = vmatpush1.msra.mxu0 0.0
    %2545 = vmatprep.subr.mxu0 0.0
    %2546 = vmatpush1.msra.mxu0 0.0
    %2547 = vmatprep.subr.mxu0 0.0
    %2548 = vmatpush1.msra.mxu0 0.0
    %2549 = vmatprep.subr.mxu0 0.0
    %2550 = vmatpush1.msra.mxu0 0.0
    %2551 = vmatprep.subr.mxu0 0.0
    %2552 = vmatpush1.msra.mxu0 0.0
    %2553 = vmatprep.subr.mxu0 0.0
    %2554 = vmatpush1.msra.mxu0 0.0
    %2555 = vmatprep.subr.mxu0 0.0
    %2556 = vmatpush1.msra.mxu0 0.0
    %2557 = vmatprep.subr.mxu0 0.0
    %2558 = vmatpush1.msra.mxu0 0.0
    %2559 = vmatprep.subr.mxu0 0.0
    %2560 = vmatpush1.msra.mxu0 0.0
    %2561 = vmatprep.subr.mxu0 0.0
    %2562 = vmatpush1.msra.mxu0 0.0
    %2563 = vmatprep.subr.mxu0 0.0
    %2564 = vmatpush1.msra.mxu0 0.0
    %2565 = vmatprep.subr.mxu0 0.0
    %2566 = vmatpush1.msra.mxu0 0.0
    %2567 = vmatprep.mubr.f32.mxu0 0.0
    %2568 = vmatmul.mubr.f32.gmra.mrb[0].mxu0 %v103
    %v2569 = vpop.f32.mrb[0].mxu0
    %v2570 = vadd.f32 0.0, %v2569
    %v2571 = vpop.f32.mrb[0].mxu0
    %2572 = vmatprep.mubr.f32.mxu0 0.0
    %2573 = vmatmul.mubr.f32.gmra.mrb[0].mxu0 %v106
    %v2574 = vpop.f32.mrb[0].mxu0
    %v2575 = vadd.f32 0.0, %v2574
    %v2576 = vpop.f32.mrb[0].mxu0
    %2577 = vdwg.mxu0
    %2580 = vrot.lane.b32.xlu0 %v2493, 96
    %v2581 = vpop.permute.xlu0 %2580
    %2582 = vrot.lane.b32.xlu0 %v2494, 96
    %v2583 = vpop.permute.xlu0 %2582
    %v2584 = vsel %vm218, %v2581, 0
    %v2586 = vsel %vm218, %v2583, 0
    %2588 = vmatprep.subr.mxu0 0.0
    %2589 = vmatpush1.msra.mxu0 %v2495
    %2590 = vmatprep.subr.mxu0 0.0
    %2591 = vmatpush1.msra.mxu0 %v2496
    %2592 = vmatprep.subr.mxu0 0.0
    %2593 = vmatpush1.msra.mxu0 %v2497
    %2594 = vmatprep.subr.mxu0 0.0
    %2595 = vmatpush1.msra.mxu0 %v2498
    %2596 = vmatprep.subr.mxu0 0.0
    %2597 = vmatpush1.msra.mxu0 0.0
    %2598 = vmatprep.subr.mxu0 0.0
    %2599 = vmatpush1.msra.mxu0 0.0
    %2600 = vmatprep.subr.mxu0 0.0
    %2601 = vmatpush1.msra.mxu0 0.0
    %2602 = vmatprep.subr.mxu0 0.0
    %2603 = vmatpush1.msra.mxu0 0.0
    %2604 = vmatprep.subr.mxu0 0.0
    %2605 = vmatpush1.msra.mxu0 0.0
    %2606 = vmatprep.subr.mxu0 0.0
    %2607 = vmatpush1.msra.mxu0 0.0
    %2608 = vmatprep.subr.mxu0 0.0
    %2609 = vmatpush1.msra.mxu0 0.0
    %2610 = vmatprep.subr.mxu0 0.0
    %2611 = vmatpush1.msra.mxu0 0.0
    %2612 = vmatprep.subr.mxu0 0.0
    %2613 = vmatpush1.msra.mxu0 0.0
    %2614 = vmatprep.subr.mxu0 0.0
    %2615 = vmatpush1.msra.mxu0 0.0
    %2616 = vmatprep.subr.mxu0 0.0
    %2617 = vmatpush1.msra.mxu0 0.0
    %2618 = vmatprep.subr.mxu0 0.0
    %2619 = vmatpush1.msra.mxu0 0.0
    %2620 = vmatprep.subr.mxu0 0.0
    %2621 = vmatpush1.msra.mxu0 0.0
    %2622 = vmatprep.subr.mxu0 0.0
    %2623 = vmatpush1.msra.mxu0 0.0
    %2624 = vmatprep.subr.mxu0 0.0
    %2625 = vmatpush1.msra.mxu0 0.0
    %2626 = vmatprep.subr.mxu0 0.0
    %2627 = vmatpush1.msra.mxu0 0.0
    %2628 = vmatprep.subr.mxu0 0.0
    %2629 = vmatpush1.msra.mxu0 0.0
    %2630 = vmatprep.subr.mxu0 0.0
    %2631 = vmatpush1.msra.mxu0 0.0
    %2632 = vmatprep.subr.mxu0 0.0
    %2633 = vmatpush1.msra.mxu0 0.0
    %2634 = vmatprep.subr.mxu0 0.0
    %2635 = vmatpush1.msra.mxu0 0.0
    %2636 = vmatprep.subr.mxu0 0.0
    %2637 = vmatpush1.msra.mxu0 0.0
    %2638 = vmatprep.subr.mxu0 0.0
    %2639 = vmatpush1.msra.mxu0 0.0
    %2640 = vmatprep.subr.mxu0 0.0
    %2641 = vmatpush1.msra.mxu0 0.0
    %2642 = vmatprep.subr.mxu0 0.0
    %2643 = vmatpush1.msra.mxu0 0.0
    %2644 = vmatprep.subr.mxu0 0.0
    %2645 = vmatpush1.msra.mxu0 0.0
    %2646 = vmatprep.subr.mxu0 0.0
    %2647 = vmatpush1.msra.mxu0 0.0
    %2648 = vmatprep.subr.mxu0 0.0
    %2649 = vmatpush1.msra.mxu0 0.0
    %2650 = vmatprep.subr.mxu0 0.0
    %2651 = vmatpush1.msra.mxu0 0.0
    %2652 = vmatprep.mubr.f32.mxu0 0.0
    %2653 = vmatmul.mubr.f32.gmra.mrb[0].mxu0 %v2584
    %v2654 = vpop.f32.mrb[0].mxu0
    %v2655 = vadd.f32 %v2570, %v2654
    %v2656 = vpop.f32.mrb[0].mxu0
    %2657 = vmatprep.mubr.f32.mxu0 0.0
    %2658 = vmatmul.mubr.f32.gmra.mrb[0].mxu0 %v2586
    %v2659 = vpop.f32.mrb[0].mxu0
    %v2660 = vadd.f32 %v2575, %v2659
    %v2661 = vpop.f32.mrb[0].mxu0
    %2662 = vdwg.mxu0
    %v2663 = vld [vmem:[%s12] sm:$0x1]
    %v2665 = vlaneseq
    %v2666 = vshrl.u32 %v2665, 7
    %v2667 = vsub.s32 0, %v2666
    %v2668 = vrot.slane %v2663, %v2667
    %v2670 = vadd.f32 %v2655, %v2668
    %v2671 = vadd.f32 %v2660, %v2668
    %vm2672 = vcmp.ge.f32.partialorder %v2670, 0.0
    %vm2673 = vcmp.ge.f32.partialorder %v2671, 0.0
    %v2674 = vmul.f32 %v2670, 0.2
    %v2675 = vmul.f32 %v2671, 0.2
    %v2676 = vsel %vm2672, %v2670, %v2674
    %v2677 = vsel %vm2673, %v2671, %v2675
    %v2678 = vld [vmem:[%s13] sm:$0x1]
    %v2680 = vlaneseq
    %v2681 = vshrl.u32 %v2680, 7
    %v2682 = vsub.s32 0, %v2681
    %v2683 = vrot.slane %v2678, %v2682
    %v2685 = vmul.f32 %v2676, %v2683
    %v2686 = vmul.f32 %v2677, %v2683
    %v2687 = vsel %vm218, %v2685, 0.0
    %2688 = vadd.xlane.f32.xlu0 %v2687
    %v2689 = vpop.xlane.xlu0 %2688
    %v2690 = vsel %vm218, %v2686, 0.0
    %2691 = vadd.xlane.f32.xlu0 %v2690
    %v2692 = vpop.xlane.xlu0 %2691
    %v2693 = vld [vmem:[#allocation2] sm:$0x1]
    %v2695 = vlaneseq
    %v2696 = vshrl.u32 %v2695, 7
    %v2697 = vsub.s32 0, %v2696
    %v2698 = vrot.slane %v2693, %v2697
    %v2700 = vadd.f32 %v2689, %v2698
    %v2701 = vadd.f32 %v2692, %v2698
    %vm2702 = vcmask 7168
    %2703 = vst.msk [vmem:[%s15] sm:$0xff] %vm2702, %v2700
    %2704 = vst.msk [vmem:[%s15 + $0x8] sm:$0xff] %vm2702, %v2701
    // Predicated region
    $region74: #{tpu_custom_call.1} parent=1 // pred_check
      _
    $region75: #{tpu_custom_call.1} parent=1 // pred_check_branch
      %2706 = sbr.rel (0) target = $region77
    $region76: #{tpu_custom_call.1} parent=1 // pred_region
      _
    $region77: #{tpu_custom_call.1} parent=1 // pred_fallthru
      _
    // Predicated region
    $region78: #{tpu_custom_call.1} parent=1 // pred_check
      _
    $region79: #{tpu_custom_call.1} parent=1 // pred_check_branch
      %2708 = sbr.rel (0) target = $region81
    $region80: #{tpu_custom_call.1} parent=1 // pred_region
      _
    $region81: #{tpu_custom_call.1} parent=1 // pred_fallthru
      _
    %2709 = vsyncpa [#allocation4], 1
    %2710 = vsyncpa [#allocation6], 1

</llo_original>
